<compile_context>
chip_gen: v5e
topology: v5e:2x2
jax: 0.10.0
libtpu: 0.0.40
codegen_flags: <defaults>
</compile_context>

<pallas_src>
import math
import jax
import jax.numpy as jnp
from jax import lax
from jax.experimental import pallas as pl
from jax.experimental.pallas import tpu as pltpu

# ---- shapes consistent with DropAttention(in_channels=32, num_heads=4, height_width=28) ----
B = 2                 # batch
C = 32                # in_channels == d_model == token_dim
NH = 4                # num_heads
HD = C // NH          # head dim
HW = 28               # height_width  ->  token_num = {28: 128}[28]
N_PIX = HW * HW       # 784 flattened spatial positions
TOKEN_NUM = 128       # tokens selected per batch element
FF = 2 * C            # expand_ratio * in_channels
EPS = 1e-5


def make_kernel(nb, exp_bf16):
    """Build the fused gather + TransformerEncoderLayer + scatter kernel.

    nb       : number of batch elements handled per grid step (1 on 2-TC chips, B on 1-TC).
    exp_bf16 : run the softmax exp/scale in bf16 (v6e/v7x); f32 elsewhere (v5e).
    """

    def kernel(x_ref, idxr_ref, idxc_ref, pe_ref, wattn_ref, wo_ref, w1_ref, w2_ref,
               slab_ref, out_ref):
        n_pix = x_ref.shape[2]

        # ---- one-hot selection matrices (shared by every batch element; indices identical) ----
        # st[r, t]  = (r == idx[t])  -> gather   (N, T)
        # stt[t, r] = (idx[t] == r)  -> scatter  (T, N)
        st = (lax.broadcasted_iota(jnp.int32, (n_pix, TOKEN_NUM), 0)
              == idxr_ref[...]).astype(jnp.float32)
        stt = (lax.broadcasted_iota(jnp.int32, (TOKEN_NUM, n_pix), 1)
               == idxc_ref[...]).astype(jnp.float32)
        pe = pe_ref[...]                                             # (T, C) f32

        # ---- bias / LayerNorm parameter slab (one (16, 128) f32 tile) ----
        slab = slab_ref[...]
        bq, bk, bv = slab[0:1, :C], slab[1:2, :C], slab[2:3, :C]
        bo = slab[3:4, :C]
        b1 = slab[4:5, :FF]
        b2 = slab[5:6, :C]
        g1, be1 = slab[6:7, :C], slab[7:8, :C]
        g2, be2 = slab[8:9, :C], slab[9:10, :C]

        wq, wk, wv = wattn_ref[0], wattn_ref[1], wattn_ref[2]        # (C, C) bf16 each

        # per-head masks (sublane mask for K^T rows, lane mask for V columns)
        rid = lax.broadcasted_iota(jnp.int32, (C, TOKEN_NUM), 0)     # (C, T)
        cid = lax.broadcasted_iota(jnp.int32, (TOKEN_NUM, C), 1)     # (T, C)

        for bb in range(nb):
            x_b = x_ref[bb]                                          # (C, N) f32, lane-dense

            # ---- fused token gather: one-hot MXU matmul (f32) ----
            pix_t = jnp.dot(x_b, st, preferred_element_type=jnp.float32)   # (C, T)
            pix = pix_t.T                                            # (T, C)
            x_tok = pix + pe                                         # add positional encoding

            # ---- Q/K/V projections (bf16 MXU, f32 acc; 1/sqrt(HD) folded into Wq/bq) ----
            x_bf = x_tok.astype(jnp.bfloat16)
            q = jnp.dot(x_bf, wq, preferred_element_type=jnp.float32) + bq
            k = jnp.dot(x_bf, wk, preferred_element_type=jnp.float32) + bk
            v = jnp.dot(x_bf, wv, preferred_element_type=jnp.float32) + bv
            q_bf = q.astype(jnp.bfloat16)
            k_t = k.T                                                # (C, T): single K transpose

            # ---- multi-head attention: masked full-width operands, running ctx accumulator ----
            def head_body(h, ctx):
                lo = h * HD
                hi = lo + HD
                k_h = jnp.where((rid >= lo) & (rid < hi), k_t, 0.0).astype(jnp.bfloat16)
                v_h = jnp.where((cid >= lo) & (cid < hi), v, 0.0).astype(jnp.bfloat16)
                s = jnp.dot(q_bf, k_h, preferred_element_type=jnp.float32)      # (T, T) f32
                m = jnp.max(s, axis=-1, keepdims=True)
                if exp_bf16:
                    e = jnp.exp((s - m).astype(jnp.bfloat16))
                    l = jnp.sum(e, axis=-1, keepdims=True, dtype=jnp.float32)
                    p = e * pl.reciprocal(l, approx=True).astype(jnp.bfloat16)
                else:
                    e = jnp.exp(s - m)
                    l = jnp.sum(e, axis=-1, keepdims=True)
                    p = (e * pl.reciprocal(l, approx=True)).astype(jnp.bfloat16)
                # masked V -> this head's contribution lands in its own lanes; sum == concat
                return ctx + jnp.dot(p, v_h, preferred_element_type=jnp.float32)

            ctx = lax.fori_loop(0, NH, head_body,
                                jnp.zeros((TOKEN_NUM, C), jnp.float32))

            attn = jnp.dot(ctx.astype(jnp.bfloat16), wo_ref[...],
                           preferred_element_type=jnp.float32) + bo

            # ---- residual + LayerNorm1 (concurrent E[y], E[y^2]) ----
            y = x_tok + attn
            mu = jnp.mean(y, axis=-1, keepdims=True)
            ms = jnp.mean(y * y, axis=-1, keepdims=True)
            y = (y - mu) * lax.rsqrt(ms - mu * mu + EPS) * g1 + be1

            # ---- FFN (ReLU) + residual + LayerNorm2 ----
            h1 = jnp.maximum(
                jnp.dot(y.astype(jnp.bfloat16), w1_ref[...],
                        preferred_element_type=jnp.float32) + b1, 0.0)
            h2 = jnp.dot(h1.astype(jnp.bfloat16), w2_ref[...],
                         preferred_element_type=jnp.float32) + b2
            z = y + h2
            mu2 = jnp.mean(z, axis=-1, keepdims=True)
            ms2 = jnp.mean(z * z, axis=-1, keepdims=True)
            z = (z - mu2) * lax.rsqrt(ms2 - mu2 * mu2 + EPS) * g2 + be2

            # ---- fused scatter-back: out = x + onehot^T @ (z - pix); non-token pixels unchanged ----
            delta = z - pix                                          # (T, C) f32
            scat = jnp.dot(delta.T, stt, preferred_element_type=jnp.float32)    # (C, N)
            out_ref[bb] = x_b + scat                                 # lane-dense store

    return kernel


def drop_attention_forward(x_nchw, params, pe, flat_idx):
    """Full DropAttention forward.  x_nchw: (B, C, H, W).  Everything fused in one pallas_call."""
    bn = x_nchw.shape[0]
    x_cn = x_nchw.reshape(bn, C, N_PIX)                              # free reshape, no transpose
    idx = flat_idx.astype(jnp.int32)
    idx_row = idx.reshape(1, TOKEN_NUM)
    idx_col = idx.reshape(TOKEN_NUM, 1)
    pe_sel = pe[flat_idx]                                            # (T, C) from constant table

    kind = jax.devices()[0].device_kind.lower().replace(" ", "")
    two_tc = ("v7" in kind) or ("7x" in kind) or ("v4" in kind)      # 2 TensorCores per chip
    exp_bf16 = ("v6" in kind) or ("v7" in kind) or ("7x" in kind)    # bf16 VPU/EUP available
    nb = 1 if two_tc else bn                                         # collapse grid on 1-TC chips
    grid = (bn // nb,)

    out = pl.pallas_call(
        make_kernel(nb, exp_bf16),
        out_shape=jax.ShapeDtypeStruct((bn, C, N_PIX), jnp.float32),
        grid=grid,
        in_specs=[
            pl.BlockSpec((nb, C, N_PIX), lambda b: (b, 0, 0)),       # x (C on sublanes, N on lanes)
            pl.BlockSpec((1, TOKEN_NUM), lambda b: (0, 0)),          # token indices (row layout)
            pl.BlockSpec((TOKEN_NUM, 1), lambda b: (0, 0)),          # token indices (col layout)
            pl.BlockSpec((TOKEN_NUM, C), lambda b: (0, 0)),          # selected positional encoding
            pl.BlockSpec((3, C, C), lambda b: (0, 0, 0)),            # Wq*scale / Wk / Wv (bf16)
            pl.BlockSpec((C, C), lambda b: (0, 0)),                  # out-proj weight (bf16)
            pl.BlockSpec((C, FF), lambda b: (0, 0)),                 # FFN weight 1 (bf16)
            pl.BlockSpec((FF, C), lambda b: (0, 0)),                 # FFN weight 2 (bf16)
            pl.BlockSpec((16, 128), lambda b: (0, 0)),               # bias / LayerNorm slab (f32)
        ],
        out_specs=pl.BlockSpec((nb, C, N_PIX), lambda b: (b, 0, 0)),
        compiler_params=pltpu.CompilerParams(dimension_semantics=("parallel",)),
    )(x_cn, idx_row, idx_col, pe_sel, params["w_attn"], params["wo"],
      params["w1"], params["w2"], params["slab"])
    return out.reshape(bn, C, HW, HW)


# ---------------- plain-JAX glue: parameter init, positional encoding, f32 reference ----------------
def init_params(key):
    ks = jax.random.split(key, 6)
    in_proj_w = 0.05 * jax.random.normal(ks[0], (3 * C, C), jnp.float32)
    in_proj_b = 0.01 * jax.random.normal(ks[1], (3 * C,), jnp.float32)
    out_proj_w = 0.05 * jax.random.normal(ks[2], (C, C), jnp.float32)
    out_proj_b = 0.01 * jax.random.normal(ks[3], (C,), jnp.float32)
    lin1_w = 0.05 * jax.random.normal(ks[4], (FF, C), jnp.float32)
    lin1_b = jnp.zeros((FF,), jnp.float32)
    lin2_w = 0.05 * jax.random.normal(ks[5], (C, FF), jnp.float32)
    lin2_b = jnp.zeros((C,), jnp.float32)

    scale = 1.0 / math.sqrt(HD)
    wq = in_proj_w[0 * C:1 * C].T
    wk = in_proj_w[1 * C:2 * C].T
    wv = in_proj_w[2 * C:3 * C].T
    bq = in_proj_b[0 * C:1 * C]
    bk = in_proj_b[1 * C:2 * C]
    bv = in_proj_b[2 * C:3 * C]

    def row(v):
        return jnp.pad(v, (0, 128 - v.shape[0]))

    ones_c = jnp.ones((C,), jnp.float32)
    zeros_c = jnp.zeros((C,), jnp.float32)
    slab = jnp.zeros((16, 128), jnp.float32)
    rows = [row(bq * scale), row(bk), row(bv), row(out_proj_b), row(lin1_b), row(lin2_b),
            row(ones_c), row(zeros_c), row(ones_c), row(zeros_c)]
    slab = slab.at[:len(rows)].set(jnp.stack(rows))

    kernel_params = {
        "w_attn": jnp.stack([wq * scale, wk, wv]).astype(jnp.bfloat16),   # (3, C, C)
        "wo": out_proj_w.T.astype(jnp.bfloat16),
        "w1": lin1_w.T.astype(jnp.bfloat16),
        "w2": lin2_w.T.astype(jnp.bfloat16),
        "slab": slab,
    }
    ref_params = {
        "wq": wq, "wk": wk, "wv": wv, "bq": bq, "bk": bk, "bv": bv,
        "wo": out_proj_w.T, "bo": out_proj_b,
        "w1": lin1_w.T, "b1": lin1_b, "w2": lin2_w.T, "b2": lin2_b,
        "g1": ones_c, "be1": zeros_c, "g2": ones_c, "be2": zeros_c,
    }
    return kernel_params, ref_params


def sinusoidal_pe(seq_len, dim):
    pos = jnp.arange(seq_len, dtype=jnp.float32)[:, None]
    div = jnp.exp(jnp.arange(0, dim, 2, dtype=jnp.float32) * -(jnp.log(10000.0) / dim))
    pe = jnp.zeros((seq_len, dim), jnp.float32)
    pe = pe.at[:, 0::2].set(jnp.sin(pos * div))
    pe = pe.at[:, 1::2].set(jnp.cos(pos * div))
    return pe


def ref_encoder(tokens, P):
    x = tokens
    q = jnp.einsum("btc,cd->btd", x, P["wq"]) + P["bq"]
    k = jnp.einsum("btc,cd->btd", x, P["wk"]) + P["bk"]
    v = jnp.einsum("btc,cd->btd", x, P["wv"]) + P["bv"]
    bn, t, _ = x.shape
    heads = lambda u: u.reshape(bn, t, NH, HD).transpose(0, 2, 1, 3)
    s = jnp.einsum("bhqd,bhkd->bhqk", heads(q), heads(k)) / math.sqrt(HD)
    p = jax.nn.softmax(s, axis=-1)
    ctx = jnp.einsum("bhqk,bhkd->bhqd", p, heads(v)).transpose(0, 2, 1, 3).reshape(bn, t, C)
    attn = jnp.einsum("btc,cd->btd", ctx, P["wo"]) + P["bo"]

    def ln(u, g, b):
        mu = u.mean(-1, keepdims=True)
        var = jnp.square(u - mu).mean(-1, keepdims=True)
        return (u - mu) / jnp.sqrt(var + EPS) * g + b

    y = ln(x + attn, P["g1"], P["be1"])
    h = jnp.maximum(jnp.einsum("btc,cf->btf", y, P["w1"]) + P["b1"], 0.0)
    ff = jnp.einsum("btf,fc->btc", h, P["w2"]) + P["b2"]
    return ln(y + ff, P["g2"], P["be2"])


def ref_forward(x_nchw, flat_idx, pe, P):
    bn = x_nchw.shape[0]
    xf = jnp.transpose(x_nchw, (0, 2, 3, 1)).reshape(bn, N_PIX, C)
    pix = xf[:, flat_idx, :]
    tok = pix + pe[flat_idx][None]
    tok_out = ref_encoder(tok, P)
    xf = xf.at[:, flat_idx, :].set(tok_out)
    return xf.reshape(bn, HW, HW, C).transpose(0, 3, 1, 2)


if __name__ == "__main__":
    key = jax.random.PRNGKey(0)
    kx, kidx, kp = jax.random.split(key, 3)

    x = jax.random.normal(kx, (B, C, HW, HW), jnp.float32)            # NCHW like PyTorch
    params, ref_params = init_params(kp)
    pe = sinusoidal_pe(N_PIX, C)

    # normalize_mask: same random positions for every batch element, nonzero() => sorted order.
    flat_idx = jnp.sort(jax.random.permutation(kidx, N_PIX)[:TOKEN_NUM])

    x_out = drop_attention_forward(x, params, pe, flat_idx)
    x_out = jax.block_until_ready(x_out)

    # correctness vs f32 pure-JAX reference of the full forward (gather -> encoder -> scatter)
    # tolerance covers bf16 MXU operands + approximate EUP reciprocal + (v6e/v7x) bf16 softmax exp
    ref = ref_forward(x, flat_idx, pe, ref_params)
    err = float(jnp.max(jnp.abs(x_out - ref)))
    assert x_out.shape == (B, C, HW, HW)
    assert bool(jnp.all(jnp.isfinite(x_out)))
    assert err < 2e-2, f"mismatch vs reference: max abs err {err}"

    print("KERNEL_OK")
</pallas_src>

<mosaic_0001>
module attributes {stable_mosaic.version = 11 : i64} {
  func.func @kernel(%arg0: i32, %arg1: memref<2x32x784xf32, #tpu.memory_space<vmem>>, %arg2: memref<1x128xi32, #tpu.memory_space<vmem>>, %arg3: memref<128x1xi32, #tpu.memory_space<vmem>>, %arg4: memref<128x32xf32, #tpu.memory_space<vmem>>, %arg5: memref<3x32x32xbf16, #tpu.memory_space<vmem>>, %arg6: memref<32x32xbf16, #tpu.memory_space<vmem>>, %arg7: memref<32x64xbf16, #tpu.memory_space<vmem>>, %arg8: memref<64x32xbf16, #tpu.memory_space<vmem>>, %arg9: memref<16x128xf32, #tpu.memory_space<vmem>>, %arg10: memref<2x32x784xf32, #tpu.memory_space<vmem>>) attributes {dimension_semantics = [#tpu.dimension_semantics<parallel>], iteration_bounds = array<i64: 1>, scalar_prefetch = 0 : i64, scratch_operands = 0 : i64, tpu.core_type = #tpu.core_type<tc>, window_params = [{transform_indices = @transform_0, window_bounds = array<i64: 2, 32, 784>}, {pipeline_mode = #tpu.pipeline_mode<synchronous>, transform_indices = @transform_1, window_bounds = array<i64: 1, 128>}, {pipeline_mode = #tpu.pipeline_mode<synchronous>, transform_indices = @transform_2, window_bounds = array<i64: 128, 1>}, {pipeline_mode = #tpu.pipeline_mode<synchronous>, transform_indices = @transform_3, window_bounds = array<i64: 128, 32>}, {pipeline_mode = #tpu.pipeline_mode<synchronous>, transform_indices = @transform_4, window_bounds = array<i64: 3, 32, 32>}, {pipeline_mode = #tpu.pipeline_mode<synchronous>, transform_indices = @transform_5, window_bounds = array<i64: 32, 32>}, {pipeline_mode = #tpu.pipeline_mode<synchronous>, transform_indices = @transform_6, window_bounds = array<i64: 32, 64>}, {pipeline_mode = #tpu.pipeline_mode<synchronous>, transform_indices = @transform_7, window_bounds = array<i64: 64, 32>}, {pipeline_mode = #tpu.pipeline_mode<synchronous>, transform_indices = @transform_8, window_bounds = array<i64: 16, 128>}, {transform_indices = @transform_9, window_bounds = array<i64: 2, 32, 784>}]} {
    %0 = tpu.iota {dimensions = array<i32: 0>} : vector<784x128xi32>
    %c0 = arith.constant 0 : index
    %c0_0 = arith.constant 0 : index
    %1 = vector.load %arg2[%c0, %c0_0] : memref<1x128xi32, #tpu.memory_space<vmem>>, vector<1x128xi32>
    %2 = vector.broadcast %1 : vector<1x128xi32> to vector<784x128xi32>
    %3 = arith.cmpi eq, %0, %2 : vector<784x128xi32>
    %4 = arith.extui %3 : vector<784x128xi1> to vector<784x128xi32>
    %5 = arith.sitofp %4 : vector<784x128xi32> to vector<784x128xf32>
    %6 = tpu.iota {dimensions = array<i32: 1>} : vector<128x784xi32>
    %c0_1 = arith.constant 0 : index
    %c0_2 = arith.constant 0 : index
    %7 = vector.load %arg3[%c0_1, %c0_2] : memref<128x1xi32, #tpu.memory_space<vmem>>, vector<128x1xi32>
    %8 = vector.broadcast %7 : vector<128x1xi32> to vector<128x784xi32>
    %9 = arith.cmpi eq, %6, %8 : vector<128x784xi32>
    %10 = arith.extui %9 : vector<128x784xi1> to vector<128x784xi32>
    %11 = arith.sitofp %10 : vector<128x784xi32> to vector<128x784xf32>
    %c0_3 = arith.constant 0 : index
    %c0_4 = arith.constant 0 : index
    %12 = vector.load %arg4[%c0_3, %c0_4] : memref<128x32xf32, #tpu.memory_space<vmem>>, vector<128x32xf32>
    %c0_5 = arith.constant 0 : index
    %c0_6 = arith.constant 0 : index
    %13 = vector.load %arg9[%c0_5, %c0_6] : memref<16x128xf32, #tpu.memory_space<vmem>>, vector<16x128xf32>
    %14 = vector.extract_strided_slice %13 {offsets = [0, 0], sizes = [1, 32], strides = [1, 1]} : vector<16x128xf32> to vector<1x32xf32>
    %15 = vector.extract_strided_slice %13 {offsets = [1, 0], sizes = [1, 32], strides = [1, 1]} : vector<16x128xf32> to vector<1x32xf32>
    %16 = vector.extract_strided_slice %13 {offsets = [2, 0], sizes = [1, 32], strides = [1, 1]} : vector<16x128xf32> to vector<1x32xf32>
    %17 = vector.extract_strided_slice %13 {offsets = [3, 0], sizes = [1, 32], strides = [1, 1]} : vector<16x128xf32> to vector<1x32xf32>
    %18 = vector.extract_strided_slice %13 {offsets = [4, 0], sizes = [1, 64], strides = [1, 1]} : vector<16x128xf32> to vector<1x64xf32>
    %19 = vector.extract_strided_slice %13 {offsets = [5, 0], sizes = [1, 32], strides = [1, 1]} : vector<16x128xf32> to vector<1x32xf32>
    %20 = vector.extract_strided_slice %13 {offsets = [6, 0], sizes = [1, 32], strides = [1, 1]} : vector<16x128xf32> to vector<1x32xf32>
    %21 = vector.extract_strided_slice %13 {offsets = [7, 0], sizes = [1, 32], strides = [1, 1]} : vector<16x128xf32> to vector<1x32xf32>
    %22 = vector.extract_strided_slice %13 {offsets = [8, 0], sizes = [1, 32], strides = [1, 1]} : vector<16x128xf32> to vector<1x32xf32>
    %23 = vector.extract_strided_slice %13 {offsets = [9, 0], sizes = [1, 32], strides = [1, 1]} : vector<16x128xf32> to vector<1x32xf32>
    %c0_7 = arith.constant 0 : index
    %c0_8 = arith.constant 0 : index
    %c0_9 = arith.constant 0 : index
    %24 = vector.load %arg5[%c0_7, %c0_8, %c0_9] : memref<3x32x32xbf16, #tpu.memory_space<vmem>>, vector<1x32x32xbf16>
    %25 = vector.shape_cast %24 : vector<1x32x32xbf16> to vector<32x32xbf16>
    %c1 = arith.constant 1 : index
    %c0_10 = arith.constant 0 : index
    %c0_11 = arith.constant 0 : index
    %26 = vector.load %arg5[%c1, %c0_10, %c0_11] : memref<3x32x32xbf16, #tpu.memory_space<vmem>>, vector<1x32x32xbf16>
    %27 = vector.shape_cast %26 : vector<1x32x32xbf16> to vector<32x32xbf16>
    %c2 = arith.constant 2 : index
    %c0_12 = arith.constant 0 : index
    %c0_13 = arith.constant 0 : index
    %28 = vector.load %arg5[%c2, %c0_12, %c0_13] : memref<3x32x32xbf16, #tpu.memory_space<vmem>>, vector<1x32x32xbf16>
    %29 = vector.shape_cast %28 : vector<1x32x32xbf16> to vector<32x32xbf16>
    %30 = tpu.iota {dimensions = array<i32: 0>} : vector<32x128xi32>
    %31 = tpu.iota {dimensions = array<i32: 1>} : vector<128x32xi32>
    %c0_14 = arith.constant 0 : index
    %c0_15 = arith.constant 0 : index
    %c0_16 = arith.constant 0 : index
    %32 = vector.load %arg1[%c0_14, %c0_15, %c0_16] : memref<2x32x784xf32, #tpu.memory_space<vmem>>, vector<1x32x784xf32>
    %33 = vector.shape_cast %32 : vector<1x32x784xf32> to vector<32x784xf32>
    %cst = arith.constant dense<0.000000e+00> : vector<32x128xf32>
    %34 = tpu.matmul %33, %5, %cst {dimension_numbers = #tpu.dot_dimension_numbers<[1], [0], [0], [1], [0, 0, 1, 1], [], []>} : vector<32x784xf32>, vector<784x128xf32>, vector<32x128xf32> -> vector<32x128xf32>
    %35 = tpu.transpose %34, [1, 0] : vector<32x128xf32> -> vector<128x32xf32>
    %36 = arith.addf %35, %12 : vector<128x32xf32>
    %37 = arith.truncf %36 : vector<128x32xf32> to vector<128x32xbf16>
    %cst_17 = arith.constant dense<0.000000e+00> : vector<128x32xf32>
    %38 = tpu.matmul %37, %25, %cst_17 {dimension_numbers = #tpu.dot_dimension_numbers<[1], [0], [0], [1], [0, 0, 1, 1], [], []>} : vector<128x32xbf16>, vector<32x32xbf16>, vector<128x32xf32> -> vector<128x32xf32>
    %39 = vector.broadcast %14 : vector<1x32xf32> to vector<128x32xf32>
    %40 = arith.addf %38, %39 : vector<128x32xf32>
    %cst_18 = arith.constant dense<0.000000e+00> : vector<128x32xf32>
    %41 = tpu.matmul %37, %27, %cst_18 {dimension_numbers = #tpu.dot_dimension_numbers<[1], [0], [0], [1], [0, 0, 1, 1], [], []>} : vector<128x32xbf16>, vector<32x32xbf16>, vector<128x32xf32> -> vector<128x32xf32>
    %42 = vector.broadcast %15 : vector<1x32xf32> to vector<128x32xf32>
    %43 = arith.addf %41, %42 : vector<128x32xf32>
    %cst_19 = arith.constant dense<0.000000e+00> : vector<128x32xf32>
    %44 = tpu.matmul %37, %29, %cst_19 {dimension_numbers = #tpu.dot_dimension_numbers<[1], [0], [0], [1], [0, 0, 1, 1], [], []>} : vector<128x32xbf16>, vector<32x32xbf16>, vector<128x32xf32> -> vector<128x32xf32>
    %45 = vector.broadcast %16 : vector<1x32xf32> to vector<128x32xf32>
    %46 = arith.addf %44, %45 : vector<128x32xf32>
    %47 = arith.truncf %40 : vector<128x32xf32> to vector<128x32xbf16>
    %48 = tpu.transpose %43, [1, 0] : vector<128x32xf32> -> vector<32x128xf32>
    %cst_20 = arith.constant 0.000000e+00 : f32
    %49 = vector.broadcast %cst_20 : f32 to vector<128x32xf32>
    %c0_i32 = arith.constant 0 : i32
    %c4_i32 = arith.constant 4 : i32
    %50 = arith.addi %c0_i32, %c4_i32 : i32
    %c1_i32 = arith.constant 1 : i32
    %51 = scf.for %arg11 = %c0_i32 to %50 step %c1_i32 iter_args(%arg12 = %49) -> (vector<128x32xf32>)  : i32 {
      %c8_i32 = arith.constant 8 : i32
      %212 = arith.muli %arg11, %c8_i32 : i32
      %c8_i32_82 = arith.constant 8 : i32
      %213 = arith.addi %212, %c8_i32_82 : i32
      %214 = vector.broadcast %212 : i32 to vector<32x128xi32>
      %215 = arith.cmpi sge, %30, %214 : vector<32x128xi32>
      %216 = vector.broadcast %213 : i32 to vector<32x128xi32>
      %217 = arith.cmpi slt, %30, %216 : vector<32x128xi32>
      %218 = arith.andi %215, %217 : vector<32x128xi1>
      %cst_83 = arith.constant 0.000000e+00 : f32
      %219 = vector.broadcast %cst_83 : f32 to vector<32x128xf32>
      %220 = arith.select %218, %48, %219 : vector<32x128xi1>, vector<32x128xf32>
      %221 = arith.truncf %220 : vector<32x128xf32> to vector<32x128xbf16>
      %222 = vector.broadcast %212 : i32 to vector<128x32xi32>
      %223 = arith.cmpi sge, %31, %222 : vector<128x32xi32>
      %224 = vector.broadcast %213 : i32 to vector<128x32xi32>
      %225 = arith.cmpi slt, %31, %224 : vector<128x32xi32>
      %226 = arith.andi %223, %225 : vector<128x32xi1>
      %cst_84 = arith.constant 0.000000e+00 : f32
      %227 = vector.broadcast %cst_84 : f32 to vector<128x32xf32>
      %228 = arith.select %226, %46, %227 : vector<128x32xi1>, vector<128x32xf32>
      %229 = arith.truncf %228 : vector<128x32xf32> to vector<128x32xbf16>
      %cst_85 = arith.constant dense<0.000000e+00> : vector<128x128xf32>
      %230 = tpu.matmul %47, %221, %cst_85 {dimension_numbers = #tpu.dot_dimension_numbers<[1], [0], [0], [1], [0, 0, 1, 1], [], []>} : vector<128x32xbf16>, vector<32x128xbf16>, vector<128x128xf32> -> vector<128x128xf32>
      %cst_86 = arith.constant dense<0xFF800000> : vector<128xf32>
      %231 = vector.multi_reduction <maximumf>, %230, %cst_86 [1] : vector<128x128xf32> to vector<128xf32>
      %232 = vector.shape_cast %231 : vector<128xf32> to vector<128x1xf32>
      %233 = vector.broadcast %232 : vector<128x1xf32> to vector<128x128xf32>
      %234 = arith.subf %230, %233 : vector<128x128xf32>
      %235 = math.exp %234 : vector<128x128xf32>
      %cst_87 = arith.constant dense<0.000000e+00> : vector<128xf32>
      %236 = vector.multi_reduction <add>, %235, %cst_87 [1] : vector<128x128xf32> to vector<128xf32>
      %237 = vector.shape_cast %236 : vector<128xf32> to vector<128x1xf32>
      %238 = tpu.reciprocal %237 {approx = true} : vector<128x1xf32> -> vector<128x1xf32>
      %239 = vector.broadcast %238 : vector<128x1xf32> to vector<128x128xf32>
      %240 = arith.mulf %235, %239 : vector<128x128xf32>
      %241 = arith.truncf %240 : vector<128x128xf32> to vector<128x128xbf16>
      %cst_88 = arith.constant dense<0.000000e+00> : vector<128x32xf32>
      %242 = tpu.matmul %241, %229, %cst_88 {dimension_numbers = #tpu.dot_dimension_numbers<[1], [0], [0], [1], [0, 0, 1, 1], [], []>} : vector<128x128xbf16>, vector<128x32xbf16>, vector<128x32xf32> -> vector<128x32xf32>
      %243 = arith.addf %arg12, %242 : vector<128x32xf32>
      scf.yield %243 : vector<128x32xf32>
    }
    %c4_i32_21 = arith.constant 4 : i32
    %52 = arith.truncf %51 : vector<128x32xf32> to vector<128x32xbf16>
    %c0_22 = arith.constant 0 : index
    %c0_23 = arith.constant 0 : index
    %53 = vector.load %arg6[%c0_22, %c0_23] : memref<32x32xbf16, #tpu.memory_space<vmem>>, vector<32x32xbf16>
    %cst_24 = arith.constant dense<0.000000e+00> : vector<128x32xf32>
    %54 = tpu.matmul %52, %53, %cst_24 {dimension_numbers = #tpu.dot_dimension_numbers<[1], [0], [0], [1], [0, 0, 1, 1], [], []>} : vector<128x32xbf16>, vector<32x32xbf16>, vector<128x32xf32> -> vector<128x32xf32>
    %55 = vector.broadcast %17 : vector<1x32xf32> to vector<128x32xf32>
    %56 = arith.addf %54, %55 : vector<128x32xf32>
    %57 = arith.addf %36, %56 : vector<128x32xf32>
    %cst_25 = arith.constant dense<0.000000e+00> : vector<128xf32>
    %58 = vector.multi_reduction <add>, %57, %cst_25 [1] : vector<128x32xf32> to vector<128xf32>
    %59 = vector.shape_cast %58 : vector<128xf32> to vector<128x1xf32>
    %cst_26 = arith.constant 3.200000e+01 : f32
    %60 = vector.broadcast %cst_26 : f32 to vector<128x1xf32>
    %61 = arith.divf %59, %60 : vector<128x1xf32>
    %62 = arith.mulf %57, %57 : vector<128x32xf32>
    %cst_27 = arith.constant dense<0.000000e+00> : vector<128xf32>
    %63 = vector.multi_reduction <add>, %62, %cst_27 [1] : vector<128x32xf32> to vector<128xf32>
    %64 = vector.shape_cast %63 : vector<128xf32> to vector<128x1xf32>
    %cst_28 = arith.constant 3.200000e+01 : f32
    %65 = vector.broadcast %cst_28 : f32 to vector<128x1xf32>
    %66 = arith.divf %64, %65 : vector<128x1xf32>
    %67 = vector.broadcast %61 : vector<128x1xf32> to vector<128x32xf32>
    %68 = arith.subf %57, %67 : vector<128x32xf32>
    %69 = arith.mulf %61, %61 : vector<128x1xf32>
    %70 = arith.subf %66, %69 : vector<128x1xf32>
    %cst_29 = arith.constant 9.99999974E-6 : f32
    %71 = vector.broadcast %cst_29 : f32 to vector<128x1xf32>
    %72 = arith.addf %70, %71 : vector<128x1xf32>
    %73 = math.rsqrt %72 : vector<128x1xf32>
    %74 = vector.broadcast %73 : vector<128x1xf32> to vector<128x32xf32>
    %75 = arith.mulf %68, %74 : vector<128x32xf32>
    %76 = vector.broadcast %20 : vector<1x32xf32> to vector<128x32xf32>
    %77 = arith.mulf %75, %76 : vector<128x32xf32>
    %78 = vector.broadcast %21 : vector<1x32xf32> to vector<128x32xf32>
    %79 = arith.addf %77, %78 : vector<128x32xf32>
    %80 = arith.truncf %79 : vector<128x32xf32> to vector<128x32xbf16>
    %c0_30 = arith.constant 0 : index
    %c0_31 = arith.constant 0 : index
    %81 = vector.load %arg7[%c0_30, %c0_31] : memref<32x64xbf16, #tpu.memory_space<vmem>>, vector<32x64xbf16>
    %cst_32 = arith.constant dense<0.000000e+00> : vector<128x64xf32>
    %82 = tpu.matmul %80, %81, %cst_32 {dimension_numbers = #tpu.dot_dimension_numbers<[1], [0], [0], [1], [0, 0, 1, 1], [], []>} : vector<128x32xbf16>, vector<32x64xbf16>, vector<128x64xf32> -> vector<128x64xf32>
    %83 = vector.broadcast %18 : vector<1x64xf32> to vector<128x64xf32>
    %84 = arith.addf %82, %83 : vector<128x64xf32>
    %cst_33 = arith.constant 0.000000e+00 : f32
    %85 = vector.broadcast %cst_33 : f32 to vector<128x64xf32>
    %86 = arith.maximumf %84, %85 : vector<128x64xf32>
    %87 = arith.truncf %86 : vector<128x64xf32> to vector<128x64xbf16>
    %c0_34 = arith.constant 0 : index
    %c0_35 = arith.constant 0 : index
    %88 = vector.load %arg8[%c0_34, %c0_35] : memref<64x32xbf16, #tpu.memory_space<vmem>>, vector<64x32xbf16>
    %cst_36 = arith.constant dense<0.000000e+00> : vector<128x32xf32>
    %89 = tpu.matmul %87, %88, %cst_36 {dimension_numbers = #tpu.dot_dimension_numbers<[1], [0], [0], [1], [0, 0, 1, 1], [], []>} : vector<128x64xbf16>, vector<64x32xbf16>, vector<128x32xf32> -> vector<128x32xf32>
    %90 = vector.broadcast %19 : vector<1x32xf32> to vector<128x32xf32>
    %91 = arith.addf %89, %90 : vector<128x32xf32>
    %92 = arith.addf %79, %91 : vector<128x32xf32>
    %cst_37 = arith.constant dense<0.000000e+00> : vector<128xf32>
    %93 = vector.multi_reduction <add>, %92, %cst_37 [1] : vector<128x32xf32> to vector<128xf32>
    %94 = vector.shape_cast %93 : vector<128xf32> to vector<128x1xf32>
    %cst_38 = arith.constant 3.200000e+01 : f32
    %95 = vector.broadcast %cst_38 : f32 to vector<128x1xf32>
    %96 = arith.divf %94, %95 : vector<128x1xf32>
    %97 = arith.mulf %92, %92 : vector<128x32xf32>
    %cst_39 = arith.constant dense<0.000000e+00> : vector<128xf32>
    %98 = vector.multi_reduction <add>, %97, %cst_39 [1] : vector<128x32xf32> to vector<128xf32>
    %99 = vector.shape_cast %98 : vector<128xf32> to vector<128x1xf32>
    %cst_40 = arith.constant 3.200000e+01 : f32
    %100 = vector.broadcast %cst_40 : f32 to vector<128x1xf32>
    %101 = arith.divf %99, %100 : vector<128x1xf32>
    %102 = vector.broadcast %96 : vector<128x1xf32> to vector<128x32xf32>
    %103 = arith.subf %92, %102 : vector<128x32xf32>
    %104 = arith.mulf %96, %96 : vector<128x1xf32>
    %105 = arith.subf %101, %104 : vector<128x1xf32>
    %cst_41 = arith.constant 9.99999974E-6 : f32
    %106 = vector.broadcast %cst_41 : f32 to vector<128x1xf32>
    %107 = arith.addf %105, %106 : vector<128x1xf32>
    %108 = math.rsqrt %107 : vector<128x1xf32>
    %109 = vector.broadcast %108 : vector<128x1xf32> to vector<128x32xf32>
    %110 = arith.mulf %103, %109 : vector<128x32xf32>
    %111 = vector.broadcast %22 : vector<1x32xf32> to vector<128x32xf32>
    %112 = arith.mulf %110, %111 : vector<128x32xf32>
    %113 = vector.broadcast %23 : vector<1x32xf32> to vector<128x32xf32>
    %114 = arith.addf %112, %113 : vector<128x32xf32>
    %115 = arith.subf %114, %35 : vector<128x32xf32>
    %116 = tpu.transpose %115, [1, 0] : vector<128x32xf32> -> vector<32x128xf32>
    %cst_42 = arith.constant dense<0.000000e+00> : vector<32x784xf32>
    %117 = tpu.matmul %116, %11, %cst_42 {dimension_numbers = #tpu.dot_dimension_numbers<[1], [0], [0], [1], [0, 0, 1, 1], [], []>} : vector<32x128xf32>, vector<128x784xf32>, vector<32x784xf32> -> vector<32x784xf32>
    %118 = arith.addf %33, %117 : vector<32x784xf32>
    %c0_43 = arith.constant 0 : index
    %c0_44 = arith.constant 0 : index
    %c0_45 = arith.constant 0 : index
    %119 = vector.load %arg10[%c0_43, %c0_44, %c0_45] : memref<2x32x784xf32, #tpu.memory_space<vmem>>, vector<1x32x784xf32>
    %120 = vector.shape_cast %119 : vector<1x32x784xf32> to vector<32x784xf32>
    %121 = vector.shape_cast %118 : vector<32x784xf32> to vector<1x32x784xf32>
    tpu.vector_store %arg10[%c0_43, %c0_44, %c0_45], %121 {strides = array<i32>} : memref<2x32x784xf32, #tpu.memory_space<vmem>>, vector<1x32x784xf32>,
    %c1_46 = arith.constant 1 : index
    %c0_47 = arith.constant 0 : index
    %c0_48 = arith.constant 0 : index
    %122 = vector.load %arg1[%c1_46, %c0_47, %c0_48] : memref<2x32x784xf32, #tpu.memory_space<vmem>>, vector<1x32x784xf32>
    %123 = vector.shape_cast %122 : vector<1x32x784xf32> to vector<32x784xf32>
    %cst_49 = arith.constant dense<0.000000e+00> : vector<32x128xf32>
    %124 = tpu.matmul %123, %5, %cst_49 {dimension_numbers = #tpu.dot_dimension_numbers<[1], [0], [0], [1], [0, 0, 1, 1], [], []>} : vector<32x784xf32>, vector<784x128xf32>, vector<32x128xf32> -> vector<32x128xf32>
    %125 = tpu.transpose %124, [1, 0] : vector<32x128xf32> -> vector<128x32xf32>
    %126 = arith.addf %125, %12 : vector<128x32xf32>
    %127 = arith.truncf %126 : vector<128x32xf32> to vector<128x32xbf16>
    %cst_50 = arith.constant dense<0.000000e+00> : vector<128x32xf32>
    %128 = tpu.matmul %127, %25, %cst_50 {dimension_numbers = #tpu.dot_dimension_numbers<[1], [0], [0], [1], [0, 0, 1, 1], [], []>} : vector<128x32xbf16>, vector<32x32xbf16>, vector<128x32xf32> -> vector<128x32xf32>
    %129 = vector.broadcast %14 : vector<1x32xf32> to vector<128x32xf32>
    %130 = arith.addf %128, %129 : vector<128x32xf32>
    %cst_51 = arith.constant dense<0.000000e+00> : vector<128x32xf32>
    %131 = tpu.matmul %127, %27, %cst_51 {dimension_numbers = #tpu.dot_dimension_numbers<[1], [0], [0], [1], [0, 0, 1, 1], [], []>} : vector<128x32xbf16>, vector<32x32xbf16>, vector<128x32xf32> -> vector<128x32xf32>
    %132 = vector.broadcast %15 : vector<1x32xf32> to vector<128x32xf32>
    %133 = arith.addf %131, %132 : vector<128x32xf32>
    %cst_52 = arith.constant dense<0.000000e+00> : vector<128x32xf32>
    %134 = tpu.matmul %127, %29, %cst_52 {dimension_numbers = #tpu.dot_dimension_numbers<[1], [0], [0], [1], [0, 0, 1, 1], [], []>} : vector<128x32xbf16>, vector<32x32xbf16>, vector<128x32xf32> -> vector<128x32xf32>
    %135 = vector.broadcast %16 : vector<1x32xf32> to vector<128x32xf32>
    %136 = arith.addf %134, %135 : vector<128x32xf32>
    %137 = arith.truncf %130 : vector<128x32xf32> to vector<128x32xbf16>
    %138 = tpu.transpose %133, [1, 0] : vector<128x32xf32> -> vector<32x128xf32>
    %cst_53 = arith.constant 0.000000e+00 : f32
    %139 = vector.broadcast %cst_53 : f32 to vector<128x32xf32>
    %c0_i32_54 = arith.constant 0 : i32
    %c4_i32_55 = arith.constant 4 : i32
    %140 = arith.addi %c0_i32_54, %c4_i32_55 : i32
    %c1_i32_56 = arith.constant 1 : i32
    %141 = scf.for %arg11 = %c0_i32_54 to %140 step %c1_i32_56 iter_args(%arg12 = %139) -> (vector<128x32xf32>)  : i32 {
      %c8_i32 = arith.constant 8 : i32
      %212 = arith.muli %arg11, %c8_i32 : i32
      %c8_i32_82 = arith.constant 8 : i32
      %213 = arith.addi %212, %c8_i32_82 : i32
      %214 = vector.broadcast %212 : i32 to vector<32x128xi32>
      %215 = arith.cmpi sge, %30, %214 : vector<32x128xi32>
      %216 = vector.broadcast %213 : i32 to vector<32x128xi32>
      %217 = arith.cmpi slt, %30, %216 : vector<32x128xi32>
      %218 = arith.andi %215, %217 : vector<32x128xi1>
      %cst_83 = arith.constant 0.000000e+00 : f32
      %219 = vector.broadcast %cst_83 : f32 to vector<32x128xf32>
      %220 = arith.select %218, %138, %219 : vector<32x128xi1>, vector<32x128xf32>
      %221 = arith.truncf %220 : vector<32x128xf32> to vector<32x128xbf16>
      %222 = vector.broadcast %212 : i32 to vector<128x32xi32>
      %223 = arith.cmpi sge, %31, %222 : vector<128x32xi32>
      %224 = vector.broadcast %213 : i32 to vector<128x32xi32>
      %225 = arith.cmpi slt, %31, %224 : vector<128x32xi32>
      %226 = arith.andi %223, %225 : vector<128x32xi1>
      %cst_84 = arith.constant 0.000000e+00 : f32
      %227 = vector.broadcast %cst_84 : f32 to vector<128x32xf32>
      %228 = arith.select %226, %136, %227 : vector<128x32xi1>, vector<128x32xf32>
      %229 = arith.truncf %228 : vector<128x32xf32> to vector<128x32xbf16>
      %cst_85 = arith.constant dense<0.000000e+00> : vector<128x128xf32>
      %230 = tpu.matmul %137, %221, %cst_85 {dimension_numbers = #tpu.dot_dimension_numbers<[1], [0], [0], [1], [0, 0, 1, 1], [], []>} : vector<128x32xbf16>, vector<32x128xbf16>, vector<128x128xf32> -> vector<128x128xf32>
      %cst_86 = arith.constant dense<0xFF800000> : vector<128xf32>
      %231 = vector.multi_reduction <maximumf>, %230, %cst_86 [1] : vector<128x128xf32> to vector<128xf32>
      %232 = vector.shape_cast %231 : vector<128xf32> to vector<128x1xf32>
      %233 = vector.broadcast %232 : vector<128x1xf32> to vector<128x128xf32>
      %234 = arith.subf %230, %233 : vector<128x128xf32>
      %235 = math.exp %234 : vector<128x128xf32>
      %cst_87 = arith.constant dense<0.000000e+00> : vector<128xf32>
      %236 = vector.multi_reduction <add>, %235, %cst_87 [1] : vector<128x128xf32> to vector<128xf32>
      %237 = vector.shape_cast %236 : vector<128xf32> to vector<128x1xf32>
      %238 = tpu.reciprocal %237 {approx = true} : vector<128x1xf32> -> vector<128x1xf32>
      %239 = vector.broadcast %238 : vector<128x1xf32> to vector<128x128xf32>
      %240 = arith.mulf %235, %239 : vector<128x128xf32>
      %241 = arith.truncf %240 : vector<128x128xf32> to vector<128x128xbf16>
      %cst_88 = arith.constant dense<0.000000e+00> : vector<128x32xf32>
      %242 = tpu.matmul %241, %229, %cst_88 {dimension_numbers = #tpu.dot_dimension_numbers<[1], [0], [0], [1], [0, 0, 1, 1], [], []>} : vector<128x128xbf16>, vector<128x32xbf16>, vector<128x32xf32> -> vector<128x32xf32>
      %243 = arith.addf %arg12, %242 : vector<128x32xf32>
      scf.yield %243 : vector<128x32xf32>
    }
    %c4_i32_57 = arith.constant 4 : i32
    %142 = arith.truncf %141 : vector<128x32xf32> to vector<128x32xbf16>
    %c0_58 = arith.constant 0 : index
    %c0_59 = arith.constant 0 : index
    %143 = vector.load %arg6[%c0_58, %c0_59] : memref<32x32xbf16, #tpu.memory_space<vmem>>, vector<32x32xbf16>
    %cst_60 = arith.constant dense<0.000000e+00> : vector<128x32xf32>
    %144 = tpu.matmul %142, %143, %cst_60 {dimension_numbers = #tpu.dot_dimension_numbers<[1], [0], [0], [1], [0, 0, 1, 1], [], []>} : vector<128x32xbf16>, vector<32x32xbf16>, vector<128x32xf32> -> vector<128x32xf32>
    %145 = vector.broadcast %17 : vector<1x32xf32> to vector<128x32xf32>
    %146 = arith.addf %144, %145 : vector<128x32xf32>
    %147 = arith.addf %126, %146 : vector<128x32xf32>
    %cst_61 = arith.constant dense<0.000000e+00> : vector<128xf32>
    %148 = vector.multi_reduction <add>, %147, %cst_61 [1] : vector<128x32xf32> to vector<128xf32>
    %149 = vector.shape_cast %148 : vector<128xf32> to vector<128x1xf32>
    %cst_62 = arith.constant 3.200000e+01 : f32
    %150 = vector.broadcast %cst_62 : f32 to vector<128x1xf32>
    %151 = arith.divf %149, %150 : vector<128x1xf32>
    %152 = arith.mulf %147, %147 : vector<128x32xf32>
    %cst_63 = arith.constant dense<0.000000e+00> : vector<128xf32>
    %153 = vector.multi_reduction <add>, %152, %cst_63 [1] : vector<128x32xf32> to vector<128xf32>
    %154 = vector.shape_cast %153 : vector<128xf32> to vector<128x1xf32>
    %cst_64 = arith.constant 3.200000e+01 : f32
    %155 = vector.broadcast %cst_64 : f32 to vector<128x1xf32>
    %156 = arith.divf %154, %155 : vector<128x1xf32>
    %157 = vector.broadcast %151 : vector<128x1xf32> to vector<128x32xf32>
    %158 = arith.subf %147, %157 : vector<128x32xf32>
    %159 = arith.mulf %151, %151 : vector<128x1xf32>
    %160 = arith.subf %156, %159 : vector<128x1xf32>
    %cst_65 = arith.constant 9.99999974E-6 : f32
    %161 = vector.broadcast %cst_65 : f32 to vector<128x1xf32>
    %162 = arith.addf %160, %161 : vector<128x1xf32>
    %163 = math.rsqrt %162 : vector<128x1xf32>
    %164 = vector.broadcast %163 : vector<128x1xf32> to vector<128x32xf32>
    %165 = arith.mulf %158, %164 : vector<128x32xf32>
    %166 = vector.broadcast %20 : vector<1x32xf32> to vector<128x32xf32>
    %167 = arith.mulf %165, %166 : vector<128x32xf32>
    %168 = vector.broadcast %21 : vector<1x32xf32> to vector<128x32xf32>
    %169 = arith.addf %167, %168 : vector<128x32xf32>
    %170 = arith.truncf %169 : vector<128x32xf32> to vector<128x32xbf16>
    %c0_66 = arith.constant 0 : index
    %c0_67 = arith.constant 0 : index
    %171 = vector.load %arg7[%c0_66, %c0_67] : memref<32x64xbf16, #tpu.memory_space<vmem>>, vector<32x64xbf16>
    %cst_68 = arith.constant dense<0.000000e+00> : vector<128x64xf32>
    %172 = tpu.matmul %170, %171, %cst_68 {dimension_numbers = #tpu.dot_dimension_numbers<[1], [0], [0], [1], [0, 0, 1, 1], [], []>} : vector<128x32xbf16>, vector<32x64xbf16>, vector<128x64xf32> -> vector<128x64xf32>
    %173 = vector.broadcast %18 : vector<1x64xf32> to vector<128x64xf32>
    %174 = arith.addf %172, %173 : vector<128x64xf32>
    %cst_69 = arith.constant 0.000000e+00 : f32
    %175 = vector.broadcast %cst_69 : f32 to vector<128x64xf32>
    %176 = arith.maximumf %174, %175 : vector<128x64xf32>
    %177 = arith.truncf %176 : vector<128x64xf32> to vector<128x64xbf16>
    %c0_70 = arith.constant 0 : index
    %c0_71 = arith.constant 0 : index
    %178 = vector.load %arg8[%c0_70, %c0_71] : memref<64x32xbf16, #tpu.memory_space<vmem>>, vector<64x32xbf16>
    %cst_72 = arith.constant dense<0.000000e+00> : vector<128x32xf32>
    %179 = tpu.matmul %177, %178, %cst_72 {dimension_numbers = #tpu.dot_dimension_numbers<[1], [0], [0], [1], [0, 0, 1, 1], [], []>} : vector<128x64xbf16>, vector<64x32xbf16>, vector<128x32xf32> -> vector<128x32xf32>
    %180 = vector.broadcast %19 : vector<1x32xf32> to vector<128x32xf32>
    %181 = arith.addf %179, %180 : vector<128x32xf32>
    %182 = arith.addf %169, %181 : vector<128x32xf32>
    %cst_73 = arith.constant dense<0.000000e+00> : vector<128xf32>
    %183 = vector.multi_reduction <add>, %182, %cst_73 [1] : vector<128x32xf32> to vector<128xf32>
    %184 = vector.shape_cast %183 : vector<128xf32> to vector<128x1xf32>
    %cst_74 = arith.constant 3.200000e+01 : f32
    %185 = vector.broadcast %cst_74 : f32 to vector<128x1xf32>
    %186 = arith.divf %184, %185 : vector<128x1xf32>
    %187 = arith.mulf %182, %182 : vector<128x32xf32>
    %cst_75 = arith.constant dense<0.000000e+00> : vector<128xf32>
    %188 = vector.multi_reduction <add>, %187, %cst_75 [1] : vector<128x32xf32> to vector<128xf32>
    %189 = vector.shape_cast %188 : vector<128xf32> to vector<128x1xf32>
    %cst_76 = arith.constant 3.200000e+01 : f32
    %190 = vector.broadcast %cst_76 : f32 to vector<128x1xf32>
    %191 = arith.divf %189, %190 : vector<128x1xf32>
    %192 = vector.broadcast %186 : vector<128x1xf32> to vector<128x32xf32>
    %193 = arith.subf %182, %192 : vector<128x32xf32>
    %194 = arith.mulf %186, %186 : vector<128x1xf32>
    %195 = arith.subf %191, %194 : vector<128x1xf32>
    %cst_77 = arith.constant 9.99999974E-6 : f32
    %196 = vector.broadcast %cst_77 : f32 to vector<128x1xf32>
    %197 = arith.addf %195, %196 : vector<128x1xf32>
    %198 = math.rsqrt %197 : vector<128x1xf32>
    %199 = vector.broadcast %198 : vector<128x1xf32> to vector<128x32xf32>
    %200 = arith.mulf %193, %199 : vector<128x32xf32>
    %201 = vector.broadcast %22 : vector<1x32xf32> to vector<128x32xf32>
    %202 = arith.mulf %200, %201 : vector<128x32xf32>
    %203 = vector.broadcast %23 : vector<1x32xf32> to vector<128x32xf32>
    %204 = arith.addf %202, %203 : vector<128x32xf32>
    %205 = arith.subf %204, %125 : vector<128x32xf32>
    %206 = tpu.transpose %205, [1, 0] : vector<128x32xf32> -> vector<32x128xf32>
    %cst_78 = arith.constant dense<0.000000e+00> : vector<32x784xf32>
    %207 = tpu.matmul %206, %11, %cst_78 {dimension_numbers = #tpu.dot_dimension_numbers<[1], [0], [0], [1], [0, 0, 1, 1], [], []>} : vector<32x128xf32>, vector<128x784xf32>, vector<32x784xf32> -> vector<32x784xf32>
    %208 = arith.addf %123, %207 : vector<32x784xf32>
    %c1_79 = arith.constant 1 : index
    %c0_80 = arith.constant 0 : index
    %c0_81 = arith.constant 0 : index
    %209 = vector.load %arg10[%c1_79, %c0_80, %c0_81] : memref<2x32x784xf32, #tpu.memory_space<vmem>>, vector<1x32x784xf32>
    %210 = vector.shape_cast %209 : vector<1x32x784xf32> to vector<32x784xf32>
    %211 = vector.shape_cast %208 : vector<32x784xf32> to vector<1x32x784xf32>
    tpu.vector_store %arg10[%c1_79, %c0_80, %c0_81], %211 {strides = array<i32>} : memref<2x32x784xf32, #tpu.memory_space<vmem>>, vector<1x32x784xf32>,
    return
  }
  func.func @transform_0(%arg0: i32) -> (i32, i32, i32) {
    %c0_i32 = arith.constant 0 : i32
    %c0_i32_0 = arith.constant 0 : i32
    %c0_i32_1 = arith.constant 0 : i32
    return %arg0, %c0_i32, %c0_i32_0 : i32, i32, i32
  }
  func.func @transform_1(%arg0: i32) -> (i32, i32) {
    %c0_i32 = arith.constant 0 : i32
    %c0_i32_0 = arith.constant 0 : i32
    %c0_i32_1 = arith.constant 0 : i32
    return %c0_i32, %c0_i32_0 : i32, i32
  }
  func.func @transform_2(%arg0: i32) -> (i32, i32) {
    %c0_i32 = arith.constant 0 : i32
    %c0_i32_0 = arith.constant 0 : i32
    %c0_i32_1 = arith.constant 0 : i32
    return %c0_i32, %c0_i32_0 : i32, i32
  }
  func.func @transform_3(%arg0: i32) -> (i32, i32) {
    %c0_i32 = arith.constant 0 : i32
    %c0_i32_0 = arith.constant 0 : i32
    %c0_i32_1 = arith.constant 0 : i32
    return %c0_i32, %c0_i32_0 : i32, i32
  }
  func.func @transform_4(%arg0: i32) -> (i32, i32, i32) {
    %c0_i32 = arith.constant 0 : i32
    %c0_i32_0 = arith.constant 0 : i32
    %c0_i32_1 = arith.constant 0 : i32
    %c0_i32_2 = arith.constant 0 : i32
    return %c0_i32, %c0_i32_0, %c0_i32_1 : i32, i32, i32
  }
  func.func @transform_5(%arg0: i32) -> (i32, i32) {
    %c0_i32 = arith.constant 0 : i32
    %c0_i32_0 = arith.constant 0 : i32
    %c0_i32_1 = arith.constant 0 : i32
    return %c0_i32, %c0_i32_0 : i32, i32
  }
  func.func @transform_6(%arg0: i32) -> (i32, i32) {
    %c0_i32 = arith.constant 0 : i32
    %c0_i32_0 = arith.constant 0 : i32
    %c0_i32_1 = arith.constant 0 : i32
    return %c0_i32, %c0_i32_0 : i32, i32
  }
  func.func @transform_7(%arg0: i32) -> (i32, i32) {
    %c0_i32 = arith.constant 0 : i32
    %c0_i32_0 = arith.constant 0 : i32
    %c0_i32_1 = arith.constant 0 : i32
    return %c0_i32, %c0_i32_0 : i32, i32
  }
  func.func @transform_8(%arg0: i32) -> (i32, i32) {
    %c0_i32 = arith.constant 0 : i32
    %c0_i32_0 = arith.constant 0 : i32
    %c0_i32_1 = arith.constant 0 : i32
    return %c0_i32, %c0_i32_0 : i32, i32
  }
  func.func @transform_9(%arg0: i32) -> (i32, i32, i32) {
    %c0_i32 = arith.constant 0 : i32
    %c0_i32_0 = arith.constant 0 : i32
    %c0_i32_1 = arith.constant 0 : i32
    return %arg0, %c0_i32, %c0_i32_0 : i32, i32, i32
  }
}

</mosaic_0001>

<llo_original>
// kernel: tpu_custom_call.1
$region0: #{tpu_custom_call.1}
  #allocation0 [shape = 'u32[]', space=smem, size = 0x4, offset = 0x4, fixed_abs, tag = 'smem constant byte address 0x4 - core index']
  #allocation1 [shape = 'u32[72,128]{1,0:T(1,128)}', space=vmem, size = 0x9000, scoped, tag = 'internal scratch']
  %s0 = inlined_call_operand.hbm [shape: f32[2,32,784], index: 0, kind: input, shape index: {}]
  %s1 = inlined_call_operand.vmem [shape: s32[1,128], index: 1, kind: input, shape index: {}]
  %s2 = inlined_call_operand.vmem [shape: s32[128,1], index: 2, kind: input, shape index: {}]
  %s3 = inlined_call_operand.vmem [shape: f32[128,32], index: 3, kind: input, shape index: {}]
  %s4 = inlined_call_operand.vmem [shape: bf16[3,32,32], index: 4, kind: input, shape index: {}]
  %s5 = inlined_call_operand.vmem [shape: bf16[32,32], index: 5, kind: input, shape index: {}]
  %s6 = inlined_call_operand.vmem [shape: bf16[32,64], index: 6, kind: input, shape index: {}]
  %s7 = inlined_call_operand.vmem [shape: bf16[64,32], index: 7, kind: input, shape index: {}]
  %s8 = inlined_call_operand.vmem [shape: f32[16,128], index: 8, kind: input, shape index: {}]
  %s9 = inlined_call_operand.hbm [shape: f32[2,32,784], index: 9, kind: output, shape index: {}]
  %s10 = sld [smem:[#allocation0]]
  $region64: #{tpu_custom_call.1} parent=0
    _
  %s12 = ssub.s32 1, %s10
  %s13 = scalar_select 0, %s12, %s10
  $region1: #{tpu_custom_call.1} parent=0
    #allocation2 [shape = 'u8[229376]{0}', space=vmem, size = 0x38000, scoped, tag = 'input window, operand 0, single buffered']
    #allocation3 [shape = 's32[1]{0}', space=sflag, size = 0x4, scoped, tag = 'scoped memory for tpu_custom_call.1']
    #allocation4 [shape = 's32[1]{0}', space=sflag, size = 0x4, scoped, tag = 'scoped memory for tpu_custom_call.1']
    #allocation5 [shape = 'u8[229376]{0}', space=vmem, size = 0x38000, scoped, tag = 'output window, operand 0, single buffered']
    %14 = vsyncpa [#allocation3], 0
    %15 = vsyncpa [#allocation4], 0
    // Predicated region
    $region2: #{tpu_custom_call.1} parent=1 // pred_check
      _
    $region3: #{tpu_custom_call.1} parent=1 // pred_check_branch
      %17 = sbr.rel (0) target = $region5
    $region4: #{tpu_custom_call.1} parent=1 // pred_region
      %19 = vsyncadd [#allocation3], 0
      %s20 = sshll.u32 %s0, 4
      %s21 = int_to_ptr.hbm [resolvable:$true] %s20
      %s22 = sshll.u32 [#allocation2], 4
      %s23 = int_to_ptr.vmem [resolvable:$true] %s22
      %28 = dma.hbm_to_vmem [thread:$0]  %s21, 7168, %s23, [#allocation3], 896, 896, 56
    $region5: #{tpu_custom_call.1} parent=1 // pred_fallthru
      _
    // Predicated region
    $region6: #{tpu_custom_call.1} parent=1 // pred_check
      _
    $region7: #{tpu_custom_call.1} parent=1 // pred_check_branch
      %30 = sbr.rel (0) target = $region9
    $region8: #{tpu_custom_call.1} parent=1 // pred_region
      _
    $region9: #{tpu_custom_call.1} parent=1 // pred_fallthru
      _
    // Predicated region
    $region10: #{tpu_custom_call.1} parent=1 // pred_check
      _
    $region11: #{tpu_custom_call.1} parent=1 // pred_check_branch
      %32 = sbr.rel (0) target = $region13
    $region12: #{tpu_custom_call.1} parent=1 // pred_region
      _
    $region13: #{tpu_custom_call.1} parent=1 // pred_fallthru
      _
    // Predicated region
    $region14: #{tpu_custom_call.1} parent=1 // pred_check
      _
    $region15: #{tpu_custom_call.1} parent=1 // pred_check_branch
      %34 = sbr.rel (0) target = $region17
    $region16: #{tpu_custom_call.1} parent=1 // pred_region
      _
    $region17: #{tpu_custom_call.1} parent=1 // pred_fallthru
      _
    // Predicated region
    $region18: #{tpu_custom_call.1} parent=1 // pred_check
      _
    $region19: #{tpu_custom_call.1} parent=1 // pred_check_branch
      %36 = sbr.rel (0) target = $region21
    $region20: #{tpu_custom_call.1} parent=1 // pred_region
      _
    $region21: #{tpu_custom_call.1} parent=1 // pred_fallthru
      _
    // Predicated region
    $region22: #{tpu_custom_call.1} parent=1 // pred_check
      _
    $region23: #{tpu_custom_call.1} parent=1 // pred_check_branch
      %38 = sbr.rel (0) target = $region25
    $region24: #{tpu_custom_call.1} parent=1 // pred_region
      _
    $region25: #{tpu_custom_call.1} parent=1 // pred_fallthru
      _
    // Predicated region
    $region26: #{tpu_custom_call.1} parent=1 // pred_check
      _
    $region27: #{tpu_custom_call.1} parent=1 // pred_check_branch
      %40 = sbr.rel (0) target = $region29
    $region28: #{tpu_custom_call.1} parent=1 // pred_region
      _
    $region29: #{tpu_custom_call.1} parent=1 // pred_fallthru
      _
    // Predicated region
    $region30: #{tpu_custom_call.1} parent=1 // pred_check
      _
    $region31: #{tpu_custom_call.1} parent=1 // pred_check_branch
      %42 = sbr.rel (0) target = $region33
    $region32: #{tpu_custom_call.1} parent=1 // pred_region
      _
    $region33: #{tpu_custom_call.1} parent=1 // pred_fallthru
      _
    // Predicated region
    $region34: #{tpu_custom_call.1} parent=1 // pred_check
      _
    $region35: #{tpu_custom_call.1} parent=1 // pred_check_branch
      %44 = sbr.rel (0) target = $region37
    $region36: #{tpu_custom_call.1} parent=1 // pred_region
      _
    $region37: #{tpu_custom_call.1} parent=1 // pred_fallthru
      _
    // Predicated region
    $region38: #{tpu_custom_call.1} parent=1 // pred_check
      _
    $region39: #{tpu_custom_call.1} parent=1 // pred_check_branch
      %46 = sbr.rel (0) target = $region41
    $region40: #{tpu_custom_call.1} parent=1 // pred_region
      %48 = dma.done [#allocation3], 7168
    $region41: #{tpu_custom_call.1} parent=1 // pred_fallthru
      _
    %v50 = vlaneseq
    %v51 = vshrl.u32 %v50, 7
    %v52 = vadd.s32 %v51, 8
    %v53 = vadd.s32 %v51, 16
    %v54 = vadd.s32 %v51, 24
    %v55 = vadd.s32 %v51, 32
    %v56 = vadd.s32 %v51, 40
    %v57 = vadd.s32 %v51, 48
    %v58 = vadd.s32 %v51, 56
    %v59 = vadd.s32 %v51, 64
    %v60 = vadd.s32 %v51, 72
    %v61 = vadd.s32 %v51, 80
    %v62 = vadd.s32 %v51, 88
    %v63 = vadd.s32 %v51, 96
    %v64 = vadd.s32 %v51, 104
    %v65 = vadd.s32 %v51, 112
    %v66 = vadd.s32 %v51, 120
    %v67 = vadd.s32 %v51, 128
    %v68 = vadd.s32 %v51, 136
    %v69 = vadd.s32 %v51, 144
    %v70 = vadd.s32 %v51, 152
    %v71 = vadd.s32 %v51, 160
    %v72 = vadd.s32 %v51, 168
    %v73 = vadd.s32 %v51, 176
    %v74 = vadd.s32 %v51, 184
    %v75 = vadd.s32 %v51, 192
    %v76 = vadd.s32 %v51, 200
    %v77 = vadd.s32 %v51, 208
    %v78 = vadd.s32 %v51, 216
    %v79 = vadd.s32 %v51, 224
    %v80 = vadd.s32 %v51, 232
    %v81 = vadd.s32 %v51, 240
    %v82 = vadd.s32 %v51, 248
    %v83 = vadd.s32 %v51, 256
    %v84 = vadd.s32 %v51, 264
    %v85 = vadd.s32 %v51, 272
    %v86 = vadd.s32 %v51, 280
    %v87 = vadd.s32 %v51, 288
    %v88 = vadd.s32 %v51, 296
    %v89 = vadd.s32 %v51, 304
    %v90 = vadd.s32 %v51, 312
    %v91 = vadd.s32 %v51, 320
    %v92 = vadd.s32 %v51, 328
    %v93 = vadd.s32 %v51, 336
    %v94 = vadd.s32 %v51, 344
    %v95 = vadd.s32 %v51, 352
    %v96 = vadd.s32 %v51, 360
    %v97 = vadd.s32 %v51, 368
    %v98 = vadd.s32 %v51, 376
    %v99 = vadd.s32 %v51, 384
    %v100 = vadd.s32 %v51, 392
    %v101 = vadd.s32 %v51, 400
    %v102 = vadd.s32 %v51, 408
    %v103 = vadd.s32 %v51, 416
    %v104 = vadd.s32 %v51, 424
    %v105 = vadd.s32 %v51, 432
    %v106 = vadd.s32 %v51, 440
    %v107 = vadd.s32 %v51, 448
    %v108 = vadd.s32 %v51, 456
    %v109 = vadd.s32 %v51, 464
    %v110 = vadd.s32 %v51, 472
    %v111 = vadd.s32 %v51, 480
    %v112 = vadd.s32 %v51, 488
    %v113 = vadd.s32 %v51, 496
    %v114 = vadd.s32 %v51, 504
    %v115 = vadd.s32 %v51, 512
    %v116 = vadd.s32 %v51, 520
    %v117 = vadd.s32 %v51, 528
    %v118 = vadd.s32 %v51, 536
    %v119 = vadd.s32 %v51, 544
    %v120 = vadd.s32 %v51, 552
    %v121 = vadd.s32 %v51, 560
    %v122 = vadd.s32 %v51, 568
    %v123 = vadd.s32 %v51, 576
    %v124 = vadd.s32 %v51, 584
    %v125 = vadd.s32 %v51, 592
    %v126 = vadd.s32 %v51, 600
    %v127 = vadd.s32 %v51, 608
    %v128 = vadd.s32 %v51, 616
    %v129 = vadd.s32 %v51, 624
    %v130 = vadd.s32 %v51, 632
    %v131 = vadd.s32 %v51, 640
    %v132 = vadd.s32 %v51, 648
    %v133 = vadd.s32 %v51, 656
    %v134 = vadd.s32 %v51, 664
    %v135 = vadd.s32 %v51, 672
    %v136 = vadd.s32 %v51, 680
    %v137 = vadd.s32 %v51, 688
    %v138 = vadd.s32 %v51, 696
    %v139 = vadd.s32 %v51, 704
    %v140 = vadd.s32 %v51, 712
    %v141 = vadd.s32 %v51, 720
    %v142 = vadd.s32 %v51, 728
    %v143 = vadd.s32 %v51, 736
    %v144 = vadd.s32 %v51, 744
    %v145 = vadd.s32 %v51, 752
    %v146 = vadd.s32 %v51, 760
    %v147 = vadd.s32 %v51, 768
    %v148 = vadd.s32 %v51, 776
    %v149 = vld [vmem:[%s1] sm:$0x1]
    %v150 = vperm.slane %v149, 0
    %vm151 = vcmp.eq.s32.totalorder %v51, %v150
    %vm152 = vcmp.eq.s32.totalorder %v52, %v150
    %vm153 = vcmp.eq.s32.totalorder %v53, %v150
    %vm154 = vcmp.eq.s32.totalorder %v54, %v150
    %vm155 = vcmp.eq.s32.totalorder %v55, %v150
    %vm156 = vcmp.eq.s32.totalorder %v56, %v150
    %vm157 = vcmp.eq.s32.totalorder %v57, %v150
    %vm158 = vcmp.eq.s32.totalorder %v58, %v150
    %vm159 = vcmp.eq.s32.totalorder %v59, %v150
    %vm160 = vcmp.eq.s32.totalorder %v60, %v150
    %vm161 = vcmp.eq.s32.totalorder %v61, %v150
    %vm162 = vcmp.eq.s32.totalorder %v62, %v150
    %vm163 = vcmp.eq.s32.totalorder %v63, %v150
    %vm164 = vcmp.eq.s32.totalorder %v64, %v150
    %vm165 = vcmp.eq.s32.totalorder %v65, %v150
    %vm166 = vcmp.eq.s32.totalorder %v66, %v150
    %vm167 = vcmp.eq.s32.totalorder %v67, %v150
    %vm168 = vcmp.eq.s32.totalorder %v68, %v150
    %vm169 = vcmp.eq.s32.totalorder %v69, %v150
    %vm170 = vcmp.eq.s32.totalorder %v70, %v150
    %vm171 = vcmp.eq.s32.totalorder %v71, %v150
    %vm172 = vcmp.eq.s32.totalorder %v72, %v150
    %vm173 = vcmp.eq.s32.totalorder %v73, %v150
    %vm174 = vcmp.eq.s32.totalorder %v74, %v150
    %vm175 = vcmp.eq.s32.totalorder %v75, %v150
    %vm176 = vcmp.eq.s32.totalorder %v76, %v150
    %vm177 = vcmp.eq.s32.totalorder %v77, %v150
    %vm178 = vcmp.eq.s32.totalorder %v78, %v150
    %vm179 = vcmp.eq.s32.totalorder %v79, %v150
    %vm180 = vcmp.eq.s32.totalorder %v80, %v150
    %vm181 = vcmp.eq.s32.totalorder %v81, %v150
    %vm182 = vcmp.eq.s32.totalorder %v82, %v150
    %vm183 = vcmp.eq.s32.totalorder %v83, %v150
    %vm184 = vcmp.eq.s32.totalorder %v84, %v150
    %vm185 = vcmp.eq.s32.totalorder %v85, %v150
    %vm186 = vcmp.eq.s32.totalorder %v86, %v150
    %vm187 = vcmp.eq.s32.totalorder %v87, %v150
    %vm188 = vcmp.eq.s32.totalorder %v88, %v150
    %vm189 = vcmp.eq.s32.totalorder %v89, %v150
    %vm190 = vcmp.eq.s32.totalorder %v90, %v150
    %vm191 = vcmp.eq.s32.totalorder %v91, %v150
    %vm192 = vcmp.eq.s32.totalorder %v92, %v150
    %vm193 = vcmp.eq.s32.totalorder %v93, %v150
    %vm194 = vcmp.eq.s32.totalorder %v94, %v150
    %vm195 = vcmp.eq.s32.totalorder %v95, %v150
    %vm196 = vcmp.eq.s32.totalorder %v96, %v150
    %vm197 = vcmp.eq.s32.totalorder %v97, %v150
    %vm198 = vcmp.eq.s32.totalorder %v98, %v150
    %vm199 = vcmp.eq.s32.totalorder %v99, %v150
    %vm200 = vcmp.eq.s32.totalorder %v100, %v150
    %vm201 = vcmp.eq.s32.totalorder %v101, %v150
    %vm202 = vcmp.eq.s32.totalorder %v102, %v150
    %vm203 = vcmp.eq.s32.totalorder %v103, %v150
    %vm204 = vcmp.eq.s32.totalorder %v104, %v150
    %vm205 = vcmp.eq.s32.totalorder %v105, %v150
    %vm206 = vcmp.eq.s32.totalorder %v106, %v150
    %vm207 = vcmp.eq.s32.totalorder %v107, %v150
    %vm208 = vcmp.eq.s32.totalorder %v108, %v150
    %vm209 = vcmp.eq.s32.totalorder %v109, %v150
    %vm210 = vcmp.eq.s32.totalorder %v110, %v150
    %vm211 = vcmp.eq.s32.totalorder %v111, %v150
    %vm212 = vcmp.eq.s32.totalorder %v112, %v150
    %vm213 = vcmp.eq.s32.totalorder %v113, %v150
    %vm214 = vcmp.eq.s32.totalorder %v114, %v150
    %vm215 = vcmp.eq.s32.totalorder %v115, %v150
    %vm216 = vcmp.eq.s32.totalorder %v116, %v150
    %vm217 = vcmp.eq.s32.totalorder %v117, %v150
    %vm218 = vcmp.eq.s32.totalorder %v118, %v150
    %vm219 = vcmp.eq.s32.totalorder %v119, %v150
    %vm220 = vcmp.eq.s32.totalorder %v120, %v150
    %vm221 = vcmp.eq.s32.totalorder %v121, %v150
    %vm222 = vcmp.eq.s32.totalorder %v122, %v150
    %vm223 = vcmp.eq.s32.totalorder %v123, %v150
    %vm224 = vcmp.eq.s32.totalorder %v124, %v150
    %vm225 = vcmp.eq.s32.totalorder %v125, %v150
    %vm226 = vcmp.eq.s32.totalorder %v126, %v150
    %vm227 = vcmp.eq.s32.totalorder %v127, %v150
    %vm228 = vcmp.eq.s32.totalorder %v128, %v150
    %vm229 = vcmp.eq.s32.totalorder %v129, %v150
    %vm230 = vcmp.eq.s32.totalorder %v130, %v150
    %vm231 = vcmp.eq.s32.totalorder %v131, %v150
    %vm232 = vcmp.eq.s32.totalorder %v132, %v150
    %vm233 = vcmp.eq.s32.totalorder %v133, %v150
    %vm234 = vcmp.eq.s32.totalorder %v134, %v150
    %vm235 = vcmp.eq.s32.totalorder %v135, %v150
    %vm236 = vcmp.eq.s32.totalorder %v136, %v150
    %vm237 = vcmp.eq.s32.totalorder %v137, %v150
    %vm238 = vcmp.eq.s32.totalorder %v138, %v150
    %vm239 = vcmp.eq.s32.totalorder %v139, %v150
    %vm240 = vcmp.eq.s32.totalorder %v140, %v150
    %vm241 = vcmp.eq.s32.totalorder %v141, %v150
    %vm242 = vcmp.eq.s32.totalorder %v142, %v150
    %vm243 = vcmp.eq.s32.totalorder %v143, %v150
    %vm244 = vcmp.eq.s32.totalorder %v144, %v150
    %vm245 = vcmp.eq.s32.totalorder %v145, %v150
    %vm246 = vcmp.eq.s32.totalorder %v146, %v150
    %vm247 = vcmp.eq.s32.totalorder %v147, %v150
    %vm248 = vcmp.eq.s32.totalorder %v148, %v150
    %v249 = vsel %vm151, 1, 0
    %v250 = vsel %vm152, 1, 0
    %v251 = vsel %vm153, 1, 0
    %v252 = vsel %vm154, 1, 0
    %v253 = vsel %vm155, 1, 0
    %v254 = vsel %vm156, 1, 0
    %v255 = vsel %vm157, 1, 0
    %v256 = vsel %vm158, 1, 0
    %v257 = vsel %vm159, 1, 0
    %v258 = vsel %vm160, 1, 0
    %v259 = vsel %vm161, 1, 0
    %v260 = vsel %vm162, 1, 0
    %v261 = vsel %vm163, 1, 0
    %v262 = vsel %vm164, 1, 0
    %v263 = vsel %vm165, 1, 0
    %v264 = vsel %vm166, 1, 0
    %v265 = vsel %vm167, 1, 0
    %v266 = vsel %vm168, 1, 0
    %v267 = vsel %vm169, 1, 0
    %v268 = vsel %vm170, 1, 0
    %v269 = vsel %vm171, 1, 0
    %v270 = vsel %vm172, 1, 0
    %v271 = vsel %vm173, 1, 0
    %v272 = vsel %vm174, 1, 0
    %v273 = vsel %vm175, 1, 0
    %v274 = vsel %vm176, 1, 0
    %v275 = vsel %vm177, 1, 0
    %v276 = vsel %vm178, 1, 0
    %v277 = vsel %vm179, 1, 0
    %v278 = vsel %vm180, 1, 0
    %v279 = vsel %vm181, 1, 0
    %v280 = vsel %vm182, 1, 0
    %v281 = vsel %vm183, 1, 0
    %v282 = vsel %vm184, 1, 0
    %v283 = vsel %vm185, 1, 0
    %v284 = vsel %vm186, 1, 0
    %v285 = vsel %vm187, 1, 0
    %v286 = vsel %vm188, 1, 0
    %v287 = vsel %vm189, 1, 0
    %v288 = vsel %vm190, 1, 0
    %v289 = vsel %vm191, 1, 0
    %v290 = vsel %vm192, 1, 0
    %v291 = vsel %vm193, 1, 0
    %v292 = vsel %vm194, 1, 0
    %v293 = vsel %vm195, 1, 0
    %v294 = vsel %vm196, 1, 0
    %v295 = vsel %vm197, 1, 0
    %v296 = vsel %vm198, 1, 0
    %v297 = vsel %vm199, 1, 0
    %v298 = vsel %vm200, 1, 0
    %v299 = vsel %vm201, 1, 0
    %v300 = vsel %vm202, 1, 0
    %v301 = vsel %vm203, 1, 0
    %v302 = vsel %vm204, 1, 0
    %v303 = vsel %vm205, 1, 0
    %v304 = vsel %vm206, 1, 0
    %v305 = vsel %vm207, 1, 0
    %v306 = vsel %vm208, 1, 0
    %v307 = vsel %vm209, 1, 0
    %v308 = vsel %vm210, 1, 0
    %v309 = vsel %vm211, 1, 0
    %v310 = vsel %vm212, 1, 0
    %v311 = vsel %vm213, 1, 0
    %v312 = vsel %vm214, 1, 0
    %v313 = vsel %vm215, 1, 0
    %v314 = vsel %vm216, 1, 0
    %v315 = vsel %vm217, 1, 0
    %v316 = vsel %vm218, 1, 0
    %v317 = vsel %vm219, 1, 0
    %v318 = vsel %vm220, 1, 0
    %v319 = vsel %vm221, 1, 0
    %v320 = vsel %vm222, 1, 0
    %v321 = vsel %vm223, 1, 0
    %v322 = vsel %vm224, 1, 0
    %v323 = vsel %vm225, 1, 0
    %v324 = vsel %vm226, 1, 0
    %v325 = vsel %vm227, 1, 0
    %v326 = vsel %vm228, 1, 0
    %v327 = vsel %vm229, 1, 0
    %v328 = vsel %vm230, 1, 0
    %v329 = vsel %vm231, 1, 0
    %v330 = vsel %vm232, 1, 0
    %v331 = vsel %vm233, 1, 0
    %v332 = vsel %vm234, 1, 0
    %v333 = vsel %vm235, 1, 0
    %v334 = vsel %vm236, 1, 0
    %v335 = vsel %vm237, 1, 0
    %v336 = vsel %vm238, 1, 0
    %v337 = vsel %vm239, 1, 0
    %v338 = vsel %vm240, 1, 0
    %v339 = vsel %vm241, 1, 0
    %v340 = vsel %vm242, 1, 0
    %v341 = vsel %vm243, 1, 0
    %v342 = vsel %vm244, 1, 0
    %v343 = vsel %vm245, 1, 0
    %v344 = vsel %vm246, 1, 0
    %v345 = vsel %vm247, 1, 0
    %v346 = vsel %vm248, 1, 0
    %v347 = vcvt.s32.f32 %v249
    %v348 = vcvt.s32.f32 %v250
    %v349 = vcvt.s32.f32 %v251
    %v350 = vcvt.s32.f32 %v252
    %v351 = vcvt.s32.f32 %v253
    %v352 = vcvt.s32.f32 %v254
    %v353 = vcvt.s32.f32 %v255
    %v354 = vcvt.s32.f32 %v256
    %v355 = vcvt.s32.f32 %v257
    %v356 = vcvt.s32.f32 %v258
    %v357 = vcvt.s32.f32 %v259
    %v358 = vcvt.s32.f32 %v260
    %v359 = vcvt.s32.f32 %v261
    %v360 = vcvt.s32.f32 %v262
    %v361 = vcvt.s32.f32 %v263
    %v362 = vcvt.s32.f32 %v264
    %v363 = vcvt.s32.f32 %v265
    %v364 = vcvt.s32.f32 %v266
    %v365 = vcvt.s32.f32 %v267
    %v366 = vcvt.s32.f32 %v268
    %v367 = vcvt.s32.f32 %v269
    %v368 = vcvt.s32.f32 %v270
    %v369 = vcvt.s32.f32 %v271
    %v370 = vcvt.s32.f32 %v272
    %v371 = vcvt.s32.f32 %v273
    %v372 = vcvt.s32.f32 %v274
    %v373 = vcvt.s32.f32 %v275
    %v374 = vcvt.s32.f32 %v276
    %v375 = vcvt.s32.f32 %v277
    %v376 = vcvt.s32.f32 %v278
    %v377 = vcvt.s32.f32 %v279
    %v378 = vcvt.s32.f32 %v280
    %v379 = vcvt.s32.f32 %v281
    %v380 = vcvt.s32.f32 %v282
    %v381 = vcvt.s32.f32 %v283
    %v382 = vcvt.s32.f32 %v284
    %v383 = vcvt.s32.f32 %v285
    %v384 = vcvt.s32.f32 %v286
    %v385 = vcvt.s32.f32 %v287
    %v386 = vcvt.s32.f32 %v288
    %v387 = vcvt.s32.f32 %v289
    %v388 = vcvt.s32.f32 %v290
    %v389 = vcvt.s32.f32 %v291
    %v390 = vcvt.s32.f32 %v292
    %v391 = vcvt.s32.f32 %v293
    %v392 = vcvt.s32.f32 %v294
    %v393 = vcvt.s32.f32 %v295
    %v394 = vcvt.s32.f32 %v296
    %v395 = vcvt.s32.f32 %v297
    %v396 = vcvt.s32.f32 %v298
    %v397 = vcvt.s32.f32 %v299
    %v398 = vcvt.s32.f32 %v300
    %v399 = vcvt.s32.f32 %v301
    %v400 = vcvt.s32.f32 %v302
    %v401 = vcvt.s32.f32 %v303
    %v402 = vcvt.s32.f32 %v304
    %v403 = vcvt.s32.f32 %v305
    %v404 = vcvt.s32.f32 %v306
    %v405 = vcvt.s32.f32 %v307
    %v406 = vcvt.s32.f32 %v308
    %v407 = vcvt.s32.f32 %v309
    %v408 = vcvt.s32.f32 %v310
    %v409 = vcvt.s32.f32 %v311
    %v410 = vcvt.s32.f32 %v312
    %v411 = vcvt.s32.f32 %v313
    %v412 = vcvt.s32.f32 %v314
    %v413 = vcvt.s32.f32 %v315
    %v414 = vcvt.s32.f32 %v316
    %v415 = vcvt.s32.f32 %v317
    %v416 = vcvt.s32.f32 %v318
    %v417 = vcvt.s32.f32 %v319
    %v418 = vcvt.s32.f32 %v320
    %v419 = vcvt.s32.f32 %v321
    %v420 = vcvt.s32.f32 %v322
    %v421 = vcvt.s32.f32 %v323
    %v422 = vcvt.s32.f32 %v324
    %v423 = vcvt.s32.f32 %v325
    %v424 = vcvt.s32.f32 %v326
    %v425 = vcvt.s32.f32 %v327
    %v426 = vcvt.s32.f32 %v328
    %v427 = vcvt.s32.f32 %v329
    %v428 = vcvt.s32.f32 %v330
    %v429 = vcvt.s32.f32 %v331
    %v430 = vcvt.s32.f32 %v332
    %v431 = vcvt.s32.f32 %v333
    %v432 = vcvt.s32.f32 %v334
    %v433 = vcvt.s32.f32 %v335
    %v434 = vcvt.s32.f32 %v336
    %v435 = vcvt.s32.f32 %v337
    %v436 = vcvt.s32.f32 %v338
    %v437 = vcvt.s32.f32 %v339
    %v438 = vcvt.s32.f32 %v340
    %v439 = vcvt.s32.f32 %v341
    %v440 = vcvt.s32.f32 %v342
    %v441 = vcvt.s32.f32 %v343
    %v442 = vcvt.s32.f32 %v344
    %v443 = vcvt.s32.f32 %v345
    %v444 = vcvt.s32.f32 %v346
    %v445 = vlaneseq
    %v446 = vand.u32 %v445, 127
    %v447 = vadd.s32 %v446, 128
    %v448 = vadd.s32 %v446, 256
    %v449 = vadd.s32 %v446, 384
    %v450 = vadd.s32 %v446, 512
    %v451 = vadd.s32 %v446, 640
    %v452 = vadd.s32 %v446, 768
    %v453 = vld [vmem:[%s2] sm:$0xff]
    %v454 = vld [vmem:[%s2 + $0x8] sm:$0xff]
    %v455 = vld [vmem:[%s2 + $0x10] sm:$0xff]
    %v456 = vld [vmem:[%s2 + $0x18] sm:$0xff]
    %v457 = vld [vmem:[%s2 + $0x20] sm:$0xff]
    %v458 = vld [vmem:[%s2 + $0x28] sm:$0xff]
    %v459 = vld [vmem:[%s2 + $0x30] sm:$0xff]
    %v460 = vld [vmem:[%s2 + $0x38] sm:$0xff]
    %v461 = vld [vmem:[%s2 + $0x40] sm:$0xff]
    %v462 = vld [vmem:[%s2 + $0x48] sm:$0xff]
    %v463 = vld [vmem:[%s2 + $0x50] sm:$0xff]
    %v464 = vld [vmem:[%s2 + $0x58] sm:$0xff]
    %v465 = vld [vmem:[%s2 + $0x60] sm:$0xff]
    %v466 = vld [vmem:[%s2 + $0x68] sm:$0xff]
    %v467 = vld [vmem:[%s2 + $0x70] sm:$0xff]
    %v468 = vld [vmem:[%s2 + $0x78] sm:$0xff]
    %469 = vset.pattern.permute.xlu0 0
    %470 = vperm.xlu0 %469, %v453
    %v471 = vpop.permute.xlu0 %470
    %472 = vset.pattern.permute.xlu0 0
    %473 = vperm.xlu0 %472, %v454
    %v474 = vpop.permute.xlu0 %473
    %475 = vset.pattern.permute.xlu0 0
    %476 = vperm.xlu0 %475, %v455
    %v477 = vpop.permute.xlu0 %476
    %478 = vset.pattern.permute.xlu0 0
    %479 = vperm.xlu0 %478, %v456
    %v480 = vpop.permute.xlu0 %479
    %481 = vset.pattern.permute.xlu0 0
    %482 = vperm.xlu0 %481, %v457
    %v483 = vpop.permute.xlu0 %482
    %484 = vset.pattern.permute.xlu0 0
    %485 = vperm.xlu0 %484, %v458
    %v486 = vpop.permute.xlu0 %485
    %487 = vset.pattern.permute.xlu0 0
    %488 = vperm.xlu0 %487, %v459
    %v489 = vpop.permute.xlu0 %488
    %490 = vset.pattern.permute.xlu0 0
    %491 = vperm.xlu0 %490, %v460
    %v492 = vpop.permute.xlu0 %491
    %493 = vset.pattern.permute.xlu0 0
    %494 = vperm.xlu0 %493, %v461
    %v495 = vpop.permute.xlu0 %494
    %496 = vset.pattern.permute.xlu0 0
    %497 = vperm.xlu0 %496, %v462
    %v498 = vpop.permute.xlu0 %497
    %499 = vset.pattern.permute.xlu0 0
    %500 = vperm.xlu0 %499, %v463
    %v501 = vpop.permute.xlu0 %500
    %502 = vset.pattern.permute.xlu0 0
    %503 = vperm.xlu0 %502, %v464
    %v504 = vpop.permute.xlu0 %503
    %505 = vset.pattern.permute.xlu0 0
    %506 = vperm.xlu0 %505, %v465
    %v507 = vpop.permute.xlu0 %506
    %508 = vset.pattern.permute.xlu0 0
    %509 = vperm.xlu0 %508, %v466
    %v510 = vpop.permute.xlu0 %509
    %511 = vset.pattern.permute.xlu0 0
    %512 = vperm.xlu0 %511, %v467
    %v513 = vpop.permute.xlu0 %512
    %514 = vset.pattern.permute.xlu0 0
    %515 = vperm.xlu0 %514, %v468
    %v516 = vpop.permute.xlu0 %515
    %vm517 = vcmp.eq.s32.totalorder %v446, %v471
    %vm518 = vcmp.eq.s32.totalorder %v447, %v471
    %vm519 = vcmp.eq.s32.totalorder %v448, %v471
    %vm520 = vcmp.eq.s32.totalorder %v449, %v471
    %vm521 = vcmp.eq.s32.totalorder %v450, %v471
    %vm522 = vcmp.eq.s32.totalorder %v451, %v471
    %vm523 = vcmp.eq.s32.totalorder %v452, %v471
    %vm524 = vcmp.eq.s32.totalorder %v446, %v474
    %vm525 = vcmp.eq.s32.totalorder %v447, %v474
    %vm526 = vcmp.eq.s32.totalorder %v448, %v474
    %vm527 = vcmp.eq.s32.totalorder %v449, %v474
    %vm528 = vcmp.eq.s32.totalorder %v450, %v474
    %vm529 = vcmp.eq.s32.totalorder %v451, %v474
    %vm530 = vcmp.eq.s32.totalorder %v452, %v474
    %vm531 = vcmp.eq.s32.totalorder %v446, %v477
    %vm532 = vcmp.eq.s32.totalorder %v447, %v477
    %vm533 = vcmp.eq.s32.totalorder %v448, %v477
    %vm534 = vcmp.eq.s32.totalorder %v449, %v477
    %vm535 = vcmp.eq.s32.totalorder %v450, %v477
    %vm536 = vcmp.eq.s32.totalorder %v451, %v477
    %vm537 = vcmp.eq.s32.totalorder %v452, %v477
    %vm538 = vcmp.eq.s32.totalorder %v446, %v480
    %vm539 = vcmp.eq.s32.totalorder %v447, %v480
    %vm540 = vcmp.eq.s32.totalorder %v448, %v480
    %vm541 = vcmp.eq.s32.totalorder %v449, %v480
    %vm542 = vcmp.eq.s32.totalorder %v450, %v480
    %vm543 = vcmp.eq.s32.totalorder %v451, %v480
    %vm544 = vcmp.eq.s32.totalorder %v452, %v480
    %vm545 = vcmp.eq.s32.totalorder %v446, %v483
    %vm546 = vcmp.eq.s32.totalorder %v447, %v483
    %vm547 = vcmp.eq.s32.totalorder %v448, %v483
    %vm548 = vcmp.eq.s32.totalorder %v449, %v483
    %vm549 = vcmp.eq.s32.totalorder %v450, %v483
    %vm550 = vcmp.eq.s32.totalorder %v451, %v483
    %vm551 = vcmp.eq.s32.totalorder %v452, %v483
    %vm552 = vcmp.eq.s32.totalorder %v446, %v486
    %vm553 = vcmp.eq.s32.totalorder %v447, %v486
    %vm554 = vcmp.eq.s32.totalorder %v448, %v486
    %vm555 = vcmp.eq.s32.totalorder %v449, %v486
    %vm556 = vcmp.eq.s32.totalorder %v450, %v486
    %vm557 = vcmp.eq.s32.totalorder %v451, %v486
    %vm558 = vcmp.eq.s32.totalorder %v452, %v486
    %vm559 = vcmp.eq.s32.totalorder %v446, %v489
    %vm560 = vcmp.eq.s32.totalorder %v447, %v489
    %vm561 = vcmp.eq.s32.totalorder %v448, %v489
    %vm562 = vcmp.eq.s32.totalorder %v449, %v489
    %vm563 = vcmp.eq.s32.totalorder %v450, %v489
    %vm564 = vcmp.eq.s32.totalorder %v451, %v489
    %vm565 = vcmp.eq.s32.totalorder %v452, %v489
    %vm566 = vcmp.eq.s32.totalorder %v446, %v492
    %vm567 = vcmp.eq.s32.totalorder %v447, %v492
    %vm568 = vcmp.eq.s32.totalorder %v448, %v492
    %vm569 = vcmp.eq.s32.totalorder %v449, %v492
    %vm570 = vcmp.eq.s32.totalorder %v450, %v492
    %vm571 = vcmp.eq.s32.totalorder %v451, %v492
    %vm572 = vcmp.eq.s32.totalorder %v452, %v492
    %vm573 = vcmp.eq.s32.totalorder %v446, %v495
    %vm574 = vcmp.eq.s32.totalorder %v447, %v495
    %vm575 = vcmp.eq.s32.totalorder %v448, %v495
    %vm576 = vcmp.eq.s32.totalorder %v449, %v495
    %vm577 = vcmp.eq.s32.totalorder %v450, %v495
    %vm578 = vcmp.eq.s32.totalorder %v451, %v495
    %vm579 = vcmp.eq.s32.totalorder %v452, %v495
    %vm580 = vcmp.eq.s32.totalorder %v446, %v498
    %vm581 = vcmp.eq.s32.totalorder %v447, %v498
    %vm582 = vcmp.eq.s32.totalorder %v448, %v498
    %vm583 = vcmp.eq.s32.totalorder %v449, %v498
    %vm584 = vcmp.eq.s32.totalorder %v450, %v498
    %vm585 = vcmp.eq.s32.totalorder %v451, %v498
    %vm586 = vcmp.eq.s32.totalorder %v452, %v498
    %vm587 = vcmp.eq.s32.totalorder %v446, %v501
    %vm588 = vcmp.eq.s32.totalorder %v447, %v501
    %vm589 = vcmp.eq.s32.totalorder %v448, %v501
    %vm590 = vcmp.eq.s32.totalorder %v449, %v501
    %vm591 = vcmp.eq.s32.totalorder %v450, %v501
    %vm592 = vcmp.eq.s32.totalorder %v451, %v501
    %vm593 = vcmp.eq.s32.totalorder %v452, %v501
    %vm594 = vcmp.eq.s32.totalorder %v446, %v504
    %vm595 = vcmp.eq.s32.totalorder %v447, %v504
    %vm596 = vcmp.eq.s32.totalorder %v448, %v504
    %vm597 = vcmp.eq.s32.totalorder %v449, %v504
    %vm598 = vcmp.eq.s32.totalorder %v450, %v504
    %vm599 = vcmp.eq.s32.totalorder %v451, %v504
    %vm600 = vcmp.eq.s32.totalorder %v452, %v504
    %vm601 = vcmp.eq.s32.totalorder %v446, %v507
    %vm602 = vcmp.eq.s32.totalorder %v447, %v507
    %vm603 = vcmp.eq.s32.totalorder %v448, %v507
    %vm604 = vcmp.eq.s32.totalorder %v449, %v507
    %vm605 = vcmp.eq.s32.totalorder %v450, %v507
    %vm606 = vcmp.eq.s32.totalorder %v451, %v507
    %vm607 = vcmp.eq.s32.totalorder %v452, %v507
    %vm608 = vcmp.eq.s32.totalorder %v446, %v510
    %vm609 = vcmp.eq.s32.totalorder %v447, %v510
    %vm610 = vcmp.eq.s32.totalorder %v448, %v510
    %vm611 = vcmp.eq.s32.totalorder %v449, %v510
    %vm612 = vcmp.eq.s32.totalorder %v450, %v510
    %vm613 = vcmp.eq.s32.totalorder %v451, %v510
    %vm614 = vcmp.eq.s32.totalorder %v452, %v510
    %vm615 = vcmp.eq.s32.totalorder %v446, %v513
    %vm616 = vcmp.eq.s32.totalorder %v447, %v513
    %vm617 = vcmp.eq.s32.totalorder %v448, %v513
    %vm618 = vcmp.eq.s32.totalorder %v449, %v513
    %vm619 = vcmp.eq.s32.totalorder %v450, %v513
    %vm620 = vcmp.eq.s32.totalorder %v451, %v513
    %vm621 = vcmp.eq.s32.totalorder %v452, %v513
    %vm622 = vcmp.eq.s32.totalorder %v446, %v516
    %vm623 = vcmp.eq.s32.totalorder %v447, %v516
    %vm624 = vcmp.eq.s32.totalorder %v448, %v516
    %vm625 = vcmp.eq.s32.totalorder %v449, %v516
    %vm626 = vcmp.eq.s32.totalorder %v450, %v516
    %vm627 = vcmp.eq.s32.totalorder %v451, %v516
    %vm628 = vcmp.eq.s32.totalorder %v452, %v516
    %v629 = vsel %vm517, 1, 0
    %v630 = vsel %vm518, 1, 0
    %v631 = vsel %vm519, 1, 0
    %v632 = vsel %vm520, 1, 0
    %v633 = vsel %vm521, 1, 0
    %v634 = vsel %vm522, 1, 0
    %v635 = vsel %vm523, 1, 0
    %v636 = vsel %vm524, 1, 0
    %v637 = vsel %vm525, 1, 0
    %v638 = vsel %vm526, 1, 0
    %v639 = vsel %vm527, 1, 0
    %v640 = vsel %vm528, 1, 0
    %v641 = vsel %vm529, 1, 0
    %v642 = vsel %vm530, 1, 0
    %v643 = vsel %vm531, 1, 0
    %v644 = vsel %vm532, 1, 0
    %v645 = vsel %vm533, 1, 0
    %v646 = vsel %vm534, 1, 0
    %v647 = vsel %vm535, 1, 0
    %v648 = vsel %vm536, 1, 0
    %v649 = vsel %vm537, 1, 0
    %v650 = vsel %vm538, 1, 0
    %v651 = vsel %vm539, 1, 0
    %v652 = vsel %vm540, 1, 0
    %v653 = vsel %vm541, 1, 0
    %v654 = vsel %vm542, 1, 0
    %v655 = vsel %vm543, 1, 0
    %v656 = vsel %vm544, 1, 0
    %v657 = vsel %vm545, 1, 0
    %v658 = vsel %vm546, 1, 0
    %v659 = vsel %vm547, 1, 0
    %v660 = vsel %vm548, 1, 0
    %v661 = vsel %vm549, 1, 0
    %v662 = vsel %vm550, 1, 0
    %v663 = vsel %vm551, 1, 0
    %v664 = vsel %vm552, 1, 0
    %v665 = vsel %vm553, 1, 0
    %v666 = vsel %vm554, 1, 0
    %v667 = vsel %vm555, 1, 0
    %v668 = vsel %vm556, 1, 0
    %v669 = vsel %vm557, 1, 0
    %v670 = vsel %vm558, 1, 0
    %v671 = vsel %vm559, 1, 0
    %v672 = vsel %vm560, 1, 0
    %v673 = vsel %vm561, 1, 0
    %v674 = vsel %vm562, 1, 0
    %v675 = vsel %vm563, 1, 0
    %v676 = vsel %vm564, 1, 0
    %v677 = vsel %vm565, 1, 0
    %v678 = vsel %vm566, 1, 0
    %v679 = vsel %vm567, 1, 0
    %v680 = vsel %vm568, 1, 0
    %v681 = vsel %vm569, 1, 0
    %v682 = vsel %vm570, 1, 0
    %v683 = vsel %vm571, 1, 0
    %v684 = vsel %vm572, 1, 0
    %v685 = vsel %vm573, 1, 0
    %v686 = vsel %vm574, 1, 0
    %v687 = vsel %vm575, 1, 0
    %v688 = vsel %vm576, 1, 0
    %v689 = vsel %vm577, 1, 0
    %v690 = vsel %vm578, 1, 0
    %v691 = vsel %vm579, 1, 0
    %v692 = vsel %vm580, 1, 0
    %v693 = vsel %vm581, 1, 0
    %v694 = vsel %vm582, 1, 0
    %v695 = vsel %vm583, 1, 0
    %v696 = vsel %vm584, 1, 0
    %v697 = vsel %vm585, 1, 0
    %v698 = vsel %vm586, 1, 0
    %v699 = vsel %vm587, 1, 0
    %v700 = vsel %vm588, 1, 0
    %v701 = vsel %vm589, 1, 0
    %v702 = vsel %vm590, 1, 0
    %v703 = vsel %vm591, 1, 0
    %v704 = vsel %vm592, 1, 0
    %v705 = vsel %vm593, 1, 0
    %v706 = vsel %vm594, 1, 0
    %v707 = vsel %vm595, 1, 0
    %v708 = vsel %vm596, 1, 0
    %v709 = vsel %vm597, 1, 0
    %v710 = vsel %vm598, 1, 0
    %v711 = vsel %vm599, 1, 0
    %v712 = vsel %vm600, 1, 0
    %v713 = vsel %vm601, 1, 0
    %v714 = vsel %vm602, 1, 0
    %v715 = vsel %vm603, 1, 0
    %v716 = vsel %vm604, 1, 0
    %v717 = vsel %vm605, 1, 0
    %v718 = vsel %vm606, 1, 0
    %v719 = vsel %vm607, 1, 0
    %v720 = vsel %vm608, 1, 0
    %v721 = vsel %vm609, 1, 0
    %v722 = vsel %vm610, 1, 0
    %v723 = vsel %vm611, 1, 0
    %v724 = vsel %vm612, 1, 0
    %v725 = vsel %vm613, 1, 0
    %v726 = vsel %vm614, 1, 0
    %v727 = vsel %vm615, 1, 0
    %v728 = vsel %vm616, 1, 0
    %v729 = vsel %vm617, 1, 0
    %v730 = vsel %vm618, 1, 0
    %v731 = vsel %vm619, 1, 0
    %v732 = vsel %vm620, 1, 0
    %v733 = vsel %vm621, 1, 0
    %v734 = vsel %vm622, 1, 0
    %v735 = vsel %vm623, 1, 0
    %v736 = vsel %vm624, 1, 0
    %v737 = vsel %vm625, 1, 0
    %v738 = vsel %vm626, 1, 0
    %v739 = vsel %vm627, 1, 0
    %v740 = vsel %vm628, 1, 0
    %v741 = vcvt.s32.f32 %v629
    %v742 = vcvt.s32.f32 %v630
    %v743 = vcvt.s32.f32 %v631
    %v744 = vcvt.s32.f32 %v632
    %v745 = vcvt.s32.f32 %v633
    %v746 = vcvt.s32.f32 %v634
    %v747 = vcvt.s32.f32 %v635
    %v748 = vcvt.s32.f32 %v636
    %v749 = vcvt.s32.f32 %v637
    %v750 = vcvt.s32.f32 %v638
    %v751 = vcvt.s32.f32 %v639
    %v752 = vcvt.s32.f32 %v640
    %v753 = vcvt.s32.f32 %v641
    %v754 = vcvt.s32.f32 %v642
    %v755 = vcvt.s32.f32 %v643
    %v756 = vcvt.s32.f32 %v644
    %v757 = vcvt.s32.f32 %v645
    %v758 = vcvt.s32.f32 %v646
    %v759 = vcvt.s32.f32 %v647
    %v760 = vcvt.s32.f32 %v648
    %v761 = vcvt.s32.f32 %v649
    %v762 = vcvt.s32.f32 %v650
    %v763 = vcvt.s32.f32 %v651
    %v764 = vcvt.s32.f32 %v652
    %v765 = vcvt.s32.f32 %v653
    %v766 = vcvt.s32.f32 %v654
    %v767 = vcvt.s32.f32 %v655
    %v768 = vcvt.s32.f32 %v656
    %v769 = vcvt.s32.f32 %v657
    %v770 = vcvt.s32.f32 %v658
    %v771 = vcvt.s32.f32 %v659
    %v772 = vcvt.s32.f32 %v660
    %v773 = vcvt.s32.f32 %v661
    %v774 = vcvt.s32.f32 %v662
    %v775 = vcvt.s32.f32 %v663
    %v776 = vcvt.s32.f32 %v664
    %v777 = vcvt.s32.f32 %v665
    %v778 = vcvt.s32.f32 %v666
    %v779 = vcvt.s32.f32 %v667
    %v780 = vcvt.s32.f32 %v668
    %v781 = vcvt.s32.f32 %v669
    %v782 = vcvt.s32.f32 %v670
    %v783 = vcvt.s32.f32 %v671
    %v784 = vcvt.s32.f32 %v672
    %v785 = vcvt.s32.f32 %v673
    %v786 = vcvt.s32.f32 %v674
    %v787 = vcvt.s32.f32 %v675
    %v788 = vcvt.s32.f32 %v676
    %v789 = vcvt.s32.f32 %v677
    %v790 = vcvt.s32.f32 %v678
    %v791 = vcvt.s32.f32 %v679
    %v792 = vcvt.s32.f32 %v680
    %v793 = vcvt.s32.f32 %v681
    %v794 = vcvt.s32.f32 %v682
    %v795 = vcvt.s32.f32 %v683
    %v796 = vcvt.s32.f32 %v684
    %v797 = vcvt.s32.f32 %v685
    %v798 = vcvt.s32.f32 %v686
    %v799 = vcvt.s32.f32 %v687
    %v800 = vcvt.s32.f32 %v688
    %v801 = vcvt.s32.f32 %v689
    %v802 = vcvt.s32.f32 %v690
    %v803 = vcvt.s32.f32 %v691
    %v804 = vcvt.s32.f32 %v692
    %v805 = vcvt.s32.f32 %v693
    %v806 = vcvt.s32.f32 %v694
    %v807 = vcvt.s32.f32 %v695
    %v808 = vcvt.s32.f32 %v696
    %v809 = vcvt.s32.f32 %v697
    %v810 = vcvt.s32.f32 %v698
    %v811 = vcvt.s32.f32 %v699
    %v812 = vcvt.s32.f32 %v700
    %v813 = vcvt.s32.f32 %v701
    %v814 = vcvt.s32.f32 %v702
    %v815 = vcvt.s32.f32 %v703
    %v816 = vcvt.s32.f32 %v704
    %v817 = vcvt.s32.f32 %v705
    %v818 = vcvt.s32.f32 %v706
    %v819 = vcvt.s32.f32 %v707
    %v820 = vcvt.s32.f32 %v708
    %v821 = vcvt.s32.f32 %v709
    %v822 = vcvt.s32.f32 %v710
    %v823 = vcvt.s32.f32 %v711
    %v824 = vcvt.s32.f32 %v712
    %v825 = vcvt.s32.f32 %v713
    %v826 = vcvt.s32.f32 %v714
    %v827 = vcvt.s32.f32 %v715
    %v828 = vcvt.s32.f32 %v716
    %v829 = vcvt.s32.f32 %v717
    %v830 = vcvt.s32.f32 %v718
    %v831 = vcvt.s32.f32 %v719
    %v832 = vcvt.s32.f32 %v720
    %v833 = vcvt.s32.f32 %v721
    %v834 = vcvt.s32.f32 %v722
    %v835 = vcvt.s32.f32 %v723
    %v836 = vcvt.s32.f32 %v724
    %v837 = vcvt.s32.f32 %v725
    %v838 = vcvt.s32.f32 %v726
    %v839 = vcvt.s32.f32 %v727
    %v840 = vcvt.s32.f32 %v728
    %v841 = vcvt.s32.f32 %v729
    %v842 = vcvt.s32.f32 %v730
    %v843 = vcvt.s32.f32 %v731
    %v844 = vcvt.s32.f32 %v732
    %v845 = vcvt.s32.f32 %v733
    %v846 = vcvt.s32.f32 %v734
    %v847 = vcvt.s32.f32 %v735
    %v848 = vcvt.s32.f32 %v736
    %v849 = vcvt.s32.f32 %v737
    %v850 = vcvt.s32.f32 %v738
    %v851 = vcvt.s32.f32 %v739
    %v852 = vcvt.s32.f32 %v740
    %v853 = vld [vmem:[%s3] sm:$0xff]
    %v854 = vld [vmem:[%s3 + $0x8] sm:$0xff]
    %v855 = vld [vmem:[%s3 + $0x10] sm:$0xff]
    %v856 = vld [vmem:[%s3 + $0x18] sm:$0xff]
    %v857 = vld [vmem:[%s3 + $0x20] sm:$0xff]
    %v858 = vld [vmem:[%s3 + $0x28] sm:$0xff]
    %v859 = vld [vmem:[%s3 + $0x30] sm:$0xff]
    %v860 = vld [vmem:[%s3 + $0x38] sm:$0xff]
    %v861 = vld [vmem:[%s3 + $0x40] sm:$0xff]
    %v862 = vld [vmem:[%s3 + $0x48] sm:$0xff]
    %v863 = vld [vmem:[%s3 + $0x50] sm:$0xff]
    %v864 = vld [vmem:[%s3 + $0x58] sm:$0xff]
    %v865 = vld [vmem:[%s3 + $0x60] sm:$0xff]
    %v866 = vld [vmem:[%s3 + $0x68] sm:$0xff]
    %v867 = vld [vmem:[%s3 + $0x70] sm:$0xff]
    %v868 = vld [vmem:[%s3 + $0x78] sm:$0xff]
    %v869 = vld [vmem:[%s8] sm:$0xff]
    %v870 = vld [vmem:[%s8 + $0x8] sm:$0xff]
    %v871 = vld [vmem:[%s4] sm:$0xf]
    %v872 = vld [vmem:[%s4 + $0x4] sm:$0xf]
    %v873 = vld [vmem:[%s4 + $0x8] sm:$0xf]
    %v874 = vld [vmem:[%s4 + $0xc] sm:$0xf]
    %s875 = scalar_lea.vmem %s4, 16
    %v876 = vld [vmem:[%s875] sm:$0xf]
    %v877 = vld [vmem:[%s875 + $0x4] sm:$0xf]
    %v878 = vld [vmem:[%s875 + $0x8] sm:$0xf]
    %v879 = vld [vmem:[%s875 + $0xc] sm:$0xf]
    %s880 = scalar_lea.vmem %s4, 32
    %v881 = vld [vmem:[%s880] sm:$0xf]
    %v882 = vld [vmem:[%s880 + $0x4] sm:$0xf]
    %v883 = vld [vmem:[%s880 + $0x8] sm:$0xf]
    %v884 = vld [vmem:[%s880 + $0xc] sm:$0xf]
    %v885 = vld [vmem:[#allocation2] sm:$0xff]
    %v886 = vld [vmem:[#allocation2 + $0x8] sm:$0xff]
    %v887 = vld [vmem:[#allocation2 + $0x10] sm:$0xff]
    %v888 = vld [vmem:[#allocation2 + $0x18] sm:$0xff]
    %v889 = vld [vmem:[#allocation2 + $0x20] sm:$0xff]
    %v890 = vld [vmem:[#allocation2 + $0x28] sm:$0xff]
    %v891 = vld [vmem:[#allocation2 + $0x30] sm:$0xff]
    %v892 = vld [vmem:[#allocation2 + $0x38] sm:$0xff]
    %v893 = vld [vmem:[#allocation2 + $0x40] sm:$0xff]
    %v894 = vld [vmem:[#allocation2 + $0x48] sm:$0xff]
    %v895 = vld [vmem:[#allocation2 + $0x50] sm:$0xff]
    %v896 = vld [vmem:[#allocation2 + $0x58] sm:$0xff]
    %v897 = vld [vmem:[#allocation2 + $0x60] sm:$0xff]
    %v898 = vld [vmem:[#allocation2 + $0x68] sm:$0xff]
    %v899 = vld [vmem:[#allocation2 + $0x70] sm:$0xff]
    %v900 = vld [vmem:[#allocation2 + $0x78] sm:$0xff]
    %v901 = vld [vmem:[#allocation2 + $0x80] sm:$0xff]
    %v902 = vld [vmem:[#allocation2 + $0x88] sm:$0xff]
    %v903 = vld [vmem:[#allocation2 + $0x90] sm:$0xff]
    %v904 = vld [vmem:[#allocation2 + $0x98] sm:$0xff]
    %v905 = vld [vmem:[#allocation2 + $0xa0] sm:$0xff]
    %v906 = vld [vmem:[#allocation2 + $0xa8] sm:$0xff]
    %v907 = vld [vmem:[#allocation2 + $0xb0] sm:$0xff]
    %v908 = vld [vmem:[#allocation2 + $0xb8] sm:$0xff]
    %v909 = vld [vmem:[#allocation2 + $0xc0] sm:$0xff]
    %v910 = vld [vmem:[#allocation2 + $0xc8] sm:$0xff]
    %v911 = vld [vmem:[#allocation2 + $0xd0] sm:$0xff]
    %v912 = vld [vmem:[#allocation2 + $0xd8] sm:$0xff]
    %vm913 = vcmask 130048
    %v915 = vsel %vm913, %v891, 0
    %v918 = vsel %vm913, %v898, 0
    %v921 = vsel %vm913, %v905, 0
    %v924 = vsel %vm913, %v912, 0
    %926 = vmatpush.msra.mxu0 %v362
    %927 = vmatpush.msra.mxu0 %v361
    %928 = vmatpush.msra.mxu0 %v360
    %929 = vmatpush.msra.mxu0 %v359
    %930 = vmatpush.msra.mxu0 %v358
    %931 = vmatpush.msra.mxu0 %v357
    %932 = vmatpush.msra.mxu0 %v356
    %933 = vmatpush.msra.mxu0 %v355
    %934 = vmatpush.msra.mxu0 %v354
    %935 = vmatpush.msra.mxu0 %v353
    %936 = vmatpush.msra.mxu0 %v352
    %937 = vmatpush.msra.mxu0 %v351
    %938 = vmatpush.msra.mxu0 %v350
    %939 = vmatpush.msra.mxu0 %v349
    %940 = vmatpush.msra.mxu0 %v348
    %941 = vmatpush.msra.mxu0 %v347
    %942 = vmatmul.f32.gmra.mxu0 %v885
    %v943 = vpop.f32.mrf.mxu0
    %v944 = vadd.f32 0.0, %v943
    %945 = vmatmul.f32.gmra.mxu0 %v892
    %v946 = vpop.f32.mrf.mxu0
    %v947 = vadd.f32 0.0, %v946
    %948 = vmatmul.f32.gmra.mxu0 %v899
    %v949 = vpop.f32.mrf.mxu0
    %v950 = vadd.f32 0.0, %v949
    %951 = vmatmul.f32.gmra.mxu0 %v906
    %v952 = vpop.f32.mrf.mxu0
    %v953 = vadd.f32 0.0, %v952
    %954 = vdwg.mxu0
    %955 = vmatpush.msra.mxu0 %v378
    %956 = vmatpush.msra.mxu0 %v377
    %957 = vmatpush.msra.mxu0 %v376
    %958 = vmatpush.msra.mxu0 %v375
    %959 = vmatpush.msra.mxu0 %v374
    %960 = vmatpush.msra.mxu0 %v373
    %961 = vmatpush.msra.mxu0 %v372
    %962 = vmatpush.msra.mxu0 %v371
    %963 = vmatpush.msra.mxu0 %v370
    %964 = vmatpush.msra.mxu0 %v369
    %965 = vmatpush.msra.mxu0 %v368
    %966 = vmatpush.msra.mxu0 %v367
    %967 = vmatpush.msra.mxu0 %v366
    %968 = vmatpush.msra.mxu0 %v365
    %969 = vmatpush.msra.mxu0 %v364
    %970 = vmatpush.msra.mxu0 %v363
    %971 = vmatmul.f32.gmra.mxu0 %v886
    %v972 = vpop.f32.mrf.mxu0
    %v973 = vadd.f32 %v944, %v972
    %974 = vmatmul.f32.gmra.mxu0 %v893
    %v975 = vpop.f32.mrf.mxu0
    %v976 = vadd.f32 %v947, %v975
    %977 = vmatmul.f32.gmra.mxu0 %v900
    %v978 = vpop.f32.mrf.mxu0
    %v979 = vadd.f32 %v950, %v978
    %980 = vmatmul.f32.gmra.mxu0 %v907
    %v981 = vpop.f32.mrf.mxu0
    %v982 = vadd.f32 %v953, %v981
    %983 = vdwg.mxu0
    %984 = vmatpush.msra.mxu0 %v394
    %985 = vmatpush.msra.mxu0 %v393
    %986 = vmatpush.msra.mxu0 %v392
    %987 = vmatpush.msra.mxu0 %v391
    %988 = vmatpush.msra.mxu0 %v390
    %989 = vmatpush.msra.mxu0 %v389
    %990 = vmatpush.msra.mxu0 %v388
    %991 = vmatpush.msra.mxu0 %v387
    %992 = vmatpush.msra.mxu0 %v386
    %993 = vmatpush.msra.mxu0 %v385
    %994 = vmatpush.msra.mxu0 %v384
    %995 = vmatpush.msra.mxu0 %v383
    %996 = vmatpush.msra.mxu0 %v382
    %997 = vmatpush.msra.mxu0 %v381
    %998 = vmatpush.msra.mxu0 %v380
    %999 = vmatpush.msra.mxu0 %v379
    %1000 = vmatmul.f32.gmra.mxu0 %v887
    %v1001 = vpop.f32.mrf.mxu0
    %v1002 = vadd.f32 %v973, %v1001
    %1003 = vmatmul.f32.gmra.mxu0 %v894
    %v1004 = vpop.f32.mrf.mxu0
    %v1005 = vadd.f32 %v976, %v1004
    %1006 = vmatmul.f32.gmra.mxu0 %v901
    %v1007 = vpop.f32.mrf.mxu0
    %v1008 = vadd.f32 %v979, %v1007
    %1009 = vmatmul.f32.gmra.mxu0 %v908
    %v1010 = vpop.f32.mrf.mxu0
    %v1011 = vadd.f32 %v982, %v1010
    %1012 = vdwg.mxu0
    %1013 = vmatpush.msra.mxu0 %v410
    %1014 = vmatpush.msra.mxu0 %v409
    %1015 = vmatpush.msra.mxu0 %v408
    %1016 = vmatpush.msra.mxu0 %v407
    %1017 = vmatpush.msra.mxu0 %v406
    %1018 = vmatpush.msra.mxu0 %v405
    %1019 = vmatpush.msra.mxu0 %v404
    %1020 = vmatpush.msra.mxu0 %v403
    %1021 = vmatpush.msra.mxu0 %v402
    %1022 = vmatpush.msra.mxu0 %v401
    %1023 = vmatpush.msra.mxu0 %v400
    %1024 = vmatpush.msra.mxu0 %v399
    %1025 = vmatpush.msra.mxu0 %v398
    %1026 = vmatpush.msra.mxu0 %v397
    %1027 = vmatpush.msra.mxu0 %v396
    %1028 = vmatpush.msra.mxu0 %v395
    %1029 = vmatmul.f32.gmra.mxu0 %v888
    %v1030 = vpop.f32.mrf.mxu0
    %v1031 = vadd.f32 %v1002, %v1030
    %1032 = vmatmul.f32.gmra.mxu0 %v895
    %v1033 = vpop.f32.mrf.mxu0
    %v1034 = vadd.f32 %v1005, %v1033
    %1035 = vmatmul.f32.gmra.mxu0 %v902
    %v1036 = vpop.f32.mrf.mxu0
    %v1037 = vadd.f32 %v1008, %v1036
    %1038 = vmatmul.f32.gmra.mxu0 %v909
    %v1039 = vpop.f32.mrf.mxu0
    %v1040 = vadd.f32 %v1011, %v1039
    %1041 = vdwg.mxu0
    %1042 = vmatpush.msra.mxu0 %v426
    %1043 = vmatpush.msra.mxu0 %v425
    %1044 = vmatpush.msra.mxu0 %v424
    %1045 = vmatpush.msra.mxu0 %v423
    %1046 = vmatpush.msra.mxu0 %v422
    %1047 = vmatpush.msra.mxu0 %v421
    %1048 = vmatpush.msra.mxu0 %v420
    %1049 = vmatpush.msra.mxu0 %v419
    %1050 = vmatpush.msra.mxu0 %v418
    %1051 = vmatpush.msra.mxu0 %v417
    %1052 = vmatpush.msra.mxu0 %v416
    %1053 = vmatpush.msra.mxu0 %v415
    %1054 = vmatpush.msra.mxu0 %v414
    %1055 = vmatpush.msra.mxu0 %v413
    %1056 = vmatpush.msra.mxu0 %v412
    %1057 = vmatpush.msra.mxu0 %v411
    %1058 = vmatmul.f32.gmra.mxu0 %v889
    %v1059 = vpop.f32.mrf.mxu0
    %v1060 = vadd.f32 %v1031, %v1059
    %1061 = vmatmul.f32.gmra.mxu0 %v896
    %v1062 = vpop.f32.mrf.mxu0
    %v1063 = vadd.f32 %v1034, %v1062
    %1064 = vmatmul.f32.gmra.mxu0 %v903
    %v1065 = vpop.f32.mrf.mxu0
    %v1066 = vadd.f32 %v1037, %v1065
    %1067 = vmatmul.f32.gmra.mxu0 %v910
    %v1068 = vpop.f32.mrf.mxu0
    %v1069 = vadd.f32 %v1040, %v1068
    %1070 = vdwg.mxu0
    %1071 = vmatpush.msra.mxu0 %v442
    %1072 = vmatpush.msra.mxu0 %v441
    %1073 = vmatpush.msra.mxu0 %v440
    %1074 = vmatpush.msra.mxu0 %v439
    %1075 = vmatpush.msra.mxu0 %v438
    %1076 = vmatpush.msra.mxu0 %v437
    %1077 = vmatpush.msra.mxu0 %v436
    %1078 = vmatpush.msra.mxu0 %v435
    %1079 = vmatpush.msra.mxu0 %v434
    %1080 = vmatpush.msra.mxu0 %v433
    %1081 = vmatpush.msra.mxu0 %v432
    %1082 = vmatpush.msra.mxu0 %v431
    %1083 = vmatpush.msra.mxu0 %v430
    %1084 = vmatpush.msra.mxu0 %v429
    %1085 = vmatpush.msra.mxu0 %v428
    %1086 = vmatpush.msra.mxu0 %v427
    %1087 = vmatmul.f32.gmra.mxu0 %v890
    %v1088 = vpop.f32.mrf.mxu0
    %v1089 = vadd.f32 %v1060, %v1088
    %1090 = vmatmul.f32.gmra.mxu0 %v897
    %v1091 = vpop.f32.mrf.mxu0
    %v1092 = vadd.f32 %v1063, %v1091
    %1093 = vmatmul.f32.gmra.mxu0 %v904
    %v1094 = vpop.f32.mrf.mxu0
    %v1095 = vadd.f32 %v1066, %v1094
    %1096 = vmatmul.f32.gmra.mxu0 %v911
    %v1097 = vpop.f32.mrf.mxu0
    %v1098 = vadd.f32 %v1069, %v1097
    %1099 = vdwg.mxu0
    %1100 = vmatpush.msra.mxu0 0.0
    %1101 = vmatpush.msra.mxu0 0.0
    %1102 = vmatpush.msra.mxu0 0.0
    %1103 = vmatpush.msra.mxu0 0.0
    %1104 = vmatpush.msra.mxu0 0.0
    %1105 = vmatpush.msra.mxu0 0.0
    %1106 = vmatpush.msra.mxu0 0.0
    %1107 = vmatpush.msra.mxu0 0.0
    %1108 = vmatpush.msra.mxu0 0.0
    %1109 = vmatpush.msra.mxu0 0.0
    %1110 = vmatpush.msra.mxu0 0.0
    %1111 = vmatpush.msra.mxu0 0.0
    %1112 = vmatpush.msra.mxu0 0.0
    %1113 = vmatpush.msra.mxu0 0.0
    %1114 = vmatpush.msra.mxu0 %v444
    %1115 = vmatpush.msra.mxu0 %v443
    %1116 = vmatmul.f32.gmra.mxu0 %v915
    %v1117 = vpop.f32.mrf.mxu0
    %v1118 = vadd.f32 %v1089, %v1117
    %1119 = vmatmul.f32.gmra.mxu0 %v918
    %v1120 = vpop.f32.mrf.mxu0
    %v1121 = vadd.f32 %v1092, %v1120
    %1122 = vmatmul.f32.gmra.mxu0 %v921
    %v1123 = vpop.f32.mrf.mxu0
    %v1124 = vadd.f32 %v1095, %v1123
    %1125 = vmatmul.f32.gmra.mxu0 %v924
    %v1126 = vpop.f32.mrf.mxu0
    %v1127 = vadd.f32 %v1098, %v1126
    %1128 = vdwg.mxu0
    %1129 = vxpose.xlu0.b32.start [1/16] %v1118, 128
    %1130 = vxpose.xlu0.b32.cont [2/16] %v1121, 128
    %1131 = vxpose.xlu0.b32.cont [3/16] %v1124, 128
    %1132 = vxpose.xlu0.b32.cont [4/16] %v1127, 128
    %1133 = vxpose.xlu0.b32.cont [5/16] 0.0, 128
    %1134 = vxpose.xlu0.b32.cont [6/16] 0.0, 128
    %1135 = vxpose.xlu0.b32.cont [7/16] 0.0, 128
    %1136 = vxpose.xlu0.b32.cont [8/16] 0.0, 128
    %1137 = vxpose.xlu0.b32.cont [9/16] 0.0, 128
    %1138 = vxpose.xlu0.b32.cont [10/16] 0.0, 128
    %1139 = vxpose.xlu0.b32.cont [11/16] 0.0, 128
    %1140 = vxpose.xlu0.b32.cont [12/16] 0.0, 128
    %1141 = vxpose.xlu0.b32.cont [13/16] 0.0, 128
    %1142 = vxpose.xlu0.b32.cont [14/16] 0.0, 128
    %1143 = vxpose.xlu0.b32.cont [15/16] 0.0, 128
    %1144 = vxpose.xlu0.b32.end [16/16] 0.0, 128
    %v1145 = vpop.trf.xlu0
    %v1146 = vpop.trf.xlu0
    %v1147 = vpop.trf.xlu0
    %v1148 = vpop.trf.xlu0
    %v1149 = vpop.trf.xlu0
    %v1150 = vpop.trf.xlu0
    %v1151 = vpop.trf.xlu0
    %v1152 = vpop.trf.xlu0
    %v1153 = vpop.trf.xlu0
    %v1154 = vpop.trf.xlu0
    %v1155 = vpop.trf.xlu0
    %v1156 = vpop.trf.xlu0
    %v1157 = vpop.trf.xlu0
    %v1158 = vpop.trf.xlu0
    %v1159 = vpop.trf.xlu0
    %v1160 = vpop.trf.xlu0
    %v1161 = vadd.f32 %v1145, %v853
    %v1162 = vadd.f32 %v1146, %v854
    %v1163 = vadd.f32 %v1147, %v855
    %v1164 = vadd.f32 %v1148, %v856
    %v1165 = vadd.f32 %v1149, %v857
    %v1166 = vadd.f32 %v1150, %v858
    %v1167 = vadd.f32 %v1151, %v859
    %v1168 = vadd.f32 %v1152, %v860
    %v1169 = vadd.f32 %v1153, %v861
    %v1170 = vadd.f32 %v1154, %v862
    %v1171 = vadd.f32 %v1155, %v863
    %v1172 = vadd.f32 %v1156, %v864
    %v1173 = vadd.f32 %v1157, %v865
    %v1174 = vadd.f32 %v1158, %v866
    %v1175 = vadd.f32 %v1159, %v867
    %v1176 = vadd.f32 %v1160, %v868
    %v1177 = vpack.c.bf16 %v1162, %v1161
    %v1178 = vpack.c.bf16 %v1164, %v1163
    %v1179 = vpack.c.bf16 %v1166, %v1165
    %v1180 = vpack.c.bf16 %v1168, %v1167
    %v1181 = vpack.c.bf16 %v1170, %v1169
    %v1182 = vpack.c.bf16 %v1172, %v1171
    %v1183 = vpack.c.bf16 %v1174, %v1173
    %v1184 = vpack.c.bf16 %v1176, %v1175
    %v1185 = vperm.slane %v869, 0
    %v1190 = vunpack.c.l.b16 %v871
    %v1191 = vunpack.c.l.b16 %v872
    %v1192 = vunpack.c.l.b16 %v873
    %v1193 = vunpack.c.l.b16 %v874
    %v1194 = vpack.c.b16 %v1191, %v1190
    %v1195 = vpack.c.b16 %v1193, %v1192
    %vm1198 = vcmask 261120
    %v1200 = vsel %vm1198, %v1177, 0
    %v1203 = vsel %vm1198, %v1178, 0
    %v1206 = vsel %vm1198, %v1179, 0
    %v1209 = vsel %vm1198, %v1180, 0
    %v1212 = vsel %vm1198, %v1181, 0
    %v1215 = vsel %vm1198, %v1182, 0
    %v1218 = vsel %vm1198, %v1183, 0
    %v1221 = vsel %vm1198, %v1184, 0
    %1223 = vmatpush.bf16.msra.mxu0 0
    %1224 = vmatpush.bf16.msra.mxu0 0
    %1225 = vmatpush.bf16.msra.mxu0 0
    %1226 = vmatpush.bf16.msra.mxu0 0
    %1227 = vmatpush.bf16.msra.mxu0 0
    %1228 = vmatpush.bf16.msra.mxu0 0
    %1229 = vmatpush.bf16.msra.mxu0 %v1195
    %1230 = vmatpush.bf16.msra.mxu0 %v1194
    %1231 = vmatmul.bf16.gmra.mxu0 %v1200
    %v1232 = vpop.f32.mrf.mxu0
    %v1233 = vadd.f32 %v1185, %v1232
    %v1234 = vpop.f32.mrf.mxu0
    %v1235 = vadd.f32 %v1185, %v1234
    %1236 = vmatmul.bf16.gmra.mxu0 %v1203
    %v1237 = vpop.f32.mrf.mxu0
    %v1238 = vadd.f32 %v1185, %v1237
    %v1239 = vpop.f32.mrf.mxu0
    %v1240 = vadd.f32 %v1185, %v1239
    %1241 = vmatmul.bf16.gmra.mxu0 %v1206
    %v1242 = vpop.f32.mrf.mxu0
    %v1243 = vadd.f32 %v1185, %v1242
    %v1244 = vpop.f32.mrf.mxu0
    %v1245 = vadd.f32 %v1185, %v1244
    %1246 = vmatmul.bf16.gmra.mxu0 %v1209
    %v1247 = vpop.f32.mrf.mxu0
    %v1248 = vadd.f32 %v1185, %v1247
    %v1249 = vpop.f32.mrf.mxu0
    %v1250 = vadd.f32 %v1185, %v1249
    %1251 = vmatmul.bf16.gmra.mxu0 %v1212
    %v1252 = vpop.f32.mrf.mxu0
    %v1253 = vadd.f32 %v1185, %v1252
    %v1254 = vpop.f32.mrf.mxu0
    %v1255 = vadd.f32 %v1185, %v1254
    %1256 = vmatmul.bf16.gmra.mxu0 %v1215
    %v1257 = vpop.f32.mrf.mxu0
    %v1258 = vadd.f32 %v1185, %v1257
    %v1259 = vpop.f32.mrf.mxu0
    %v1260 = vadd.f32 %v1185, %v1259
    %1261 = vmatmul.bf16.gmra.mxu0 %v1218
    %v1262 = vpop.f32.mrf.mxu0
    %v1263 = vadd.f32 %v1185, %v1262
    %v1264 = vpop.f32.mrf.mxu0
    %v1265 = vadd.f32 %v1185, %v1264
    %1266 = vmatmul.bf16.gmra.mxu0 %v1221
    %v1267 = vpop.f32.mrf.mxu0
    %v1268 = vadd.f32 %v1185, %v1267
    %v1269 = vpop.f32.mrf.mxu0
    %v1270 = vadd.f32 %v1185, %v1269
    %1271 = vdwg.mxu0
    %v1272 = vperm.slane %v869, 1
    %v1277 = vunpack.c.l.b16 %v876
    %v1278 = vunpack.c.l.b16 %v877
    %v1279 = vunpack.c.l.b16 %v878
    %v1280 = vunpack.c.l.b16 %v879
    %v1281 = vpack.c.b16 %v1278, %v1277
    %v1282 = vpack.c.b16 %v1280, %v1279
    %1285 = vmatpush.bf16.msra.mxu0 0
    %1286 = vmatpush.bf16.msra.mxu0 0
    %1287 = vmatpush.bf16.msra.mxu0 0
    %1288 = vmatpush.bf16.msra.mxu0 0
    %1289 = vmatpush.bf16.msra.mxu0 0
    %1290 = vmatpush.bf16.msra.mxu0 0
    %1291 = vmatpush.bf16.msra.mxu0 %v1282
    %1292 = vmatpush.bf16.msra.mxu0 %v1281
    %1293 = vmatmul.bf16.gmra.mxu0 %v1200
    %v1294 = vpop.f32.mrf.mxu0
    %v1295 = vadd.f32 %v1272, %v1294
    %v1296 = vpop.f32.mrf.mxu0
    %v1297 = vadd.f32 %v1272, %v1296
    %1298 = vmatmul.bf16.gmra.mxu0 %v1203
    %v1299 = vpop.f32.mrf.mxu0
    %v1300 = vadd.f32 %v1272, %v1299
    %v1301 = vpop.f32.mrf.mxu0
    %v1302 = vadd.f32 %v1272, %v1301
    %1303 = vmatmul.bf16.gmra.mxu0 %v1206
    %v1304 = vpop.f32.mrf.mxu0
    %v1305 = vadd.f32 %v1272, %v1304
    %v1306 = vpop.f32.mrf.mxu0
    %v1307 = vadd.f32 %v1272, %v1306
    %1308 = vmatmul.bf16.gmra.mxu0 %v1209
    %v1309 = vpop.f32.mrf.mxu0
    %v1310 = vadd.f32 %v1272, %v1309
    %v1311 = vpop.f32.mrf.mxu0
    %v1312 = vadd.f32 %v1272, %v1311
    %1313 = vmatmul.bf16.gmra.mxu0 %v1212
    %v1314 = vpop.f32.mrf.mxu0
    %v1315 = vadd.f32 %v1272, %v1314
    %v1316 = vpop.f32.mrf.mxu0
    %v1317 = vadd.f32 %v1272, %v1316
    %1318 = vmatmul.bf16.gmra.mxu0 %v1215
    %v1319 = vpop.f32.mrf.mxu0
    %v1320 = vadd.f32 %v1272, %v1319
    %v1321 = vpop.f32.mrf.mxu0
    %v1322 = vadd.f32 %v1272, %v1321
    %1323 = vmatmul.bf16.gmra.mxu0 %v1218
    %v1324 = vpop.f32.mrf.mxu0
    %v1325 = vadd.f32 %v1272, %v1324
    %v1326 = vpop.f32.mrf.mxu0
    %v1327 = vadd.f32 %v1272, %v1326
    %1328 = vmatmul.bf16.gmra.mxu0 %v1221
    %v1329 = vpop.f32.mrf.mxu0
    %v1330 = vadd.f32 %v1272, %v1329
    %v1331 = vpop.f32.mrf.mxu0
    %v1332 = vadd.f32 %v1272, %v1331
    %1333 = vdwg.mxu0
    %v1334 = vperm.slane %v869, 2
    %v1339 = vunpack.c.l.b16 %v881
    %v1340 = vunpack.c.l.b16 %v882
    %v1341 = vunpack.c.l.b16 %v883
    %v1342 = vunpack.c.l.b16 %v884
    %v1343 = vpack.c.b16 %v1340, %v1339
    %v1344 = vpack.c.b16 %v1342, %v1341
    %1347 = vmatpush.bf16.msra.mxu0 0
    %1348 = vmatpush.bf16.msra.mxu0 0
    %1349 = vmatpush.bf16.msra.mxu0 0
    %1350 = vmatpush.bf16.msra.mxu0 0
    %1351 = vmatpush.bf16.msra.mxu0 0
    %1352 = vmatpush.bf16.msra.mxu0 0
    %1353 = vmatpush.bf16.msra.mxu0 %v1344
    %1354 = vmatpush.bf16.msra.mxu0 %v1343
    %1355 = vmatmul.bf16.gmra.mxu0 %v1200
    %v1356 = vpop.f32.mrf.mxu0
    %v1357 = vadd.f32 %v1334, %v1356
    %v1358 = vpop.f32.mrf.mxu0
    %v1359 = vadd.f32 %v1334, %v1358
    %1360 = vmatmul.bf16.gmra.mxu0 %v1203
    %v1361 = vpop.f32.mrf.mxu0
    %v1362 = vadd.f32 %v1334, %v1361
    %v1363 = vpop.f32.mrf.mxu0
    %v1364 = vadd.f32 %v1334, %v1363
    %1365 = vmatmul.bf16.gmra.mxu0 %v1206
    %v1366 = vpop.f32.mrf.mxu0
    %v1367 = vadd.f32 %v1334, %v1366
    %v1368 = vpop.f32.mrf.mxu0
    %v1369 = vadd.f32 %v1334, %v1368
    %1370 = vmatmul.bf16.gmra.mxu0 %v1209
    %v1371 = vpop.f32.mrf.mxu0
    %v1372 = vadd.f32 %v1334, %v1371
    %v1373 = vpop.f32.mrf.mxu0
    %v1374 = vadd.f32 %v1334, %v1373
    %1375 = vmatmul.bf16.gmra.mxu0 %v1212
    %v1376 = vpop.f32.mrf.mxu0
    %v1377 = vadd.f32 %v1334, %v1376
    %v1378 = vpop.f32.mrf.mxu0
    %v1379 = vadd.f32 %v1334, %v1378
    %1380 = vmatmul.bf16.gmra.mxu0 %v1215
    %v1381 = vpop.f32.mrf.mxu0
    %v1382 = vadd.f32 %v1334, %v1381
    %v1383 = vpop.f32.mrf.mxu0
    %v1384 = vadd.f32 %v1334, %v1383
    %1385 = vmatmul.bf16.gmra.mxu0 %v1218
    %v1386 = vpop.f32.mrf.mxu0
    %v1387 = vadd.f32 %v1334, %v1386
    %v1388 = vpop.f32.mrf.mxu0
    %v1389 = vadd.f32 %v1334, %v1388
    %1390 = vmatmul.bf16.gmra.mxu0 %v1221
    %v1391 = vpop.f32.mrf.mxu0
    %v1392 = vadd.f32 %v1334, %v1391
    %v1393 = vpop.f32.mrf.mxu0
    %v1394 = vadd.f32 %v1334, %v1393
    %1395 = vdwg.mxu0
    %v1396 = vpack.c.bf16 %v1235, %v1233
    %v1397 = vpack.c.bf16 %v1240, %v1238
    %v1398 = vpack.c.bf16 %v1245, %v1243
    %v1399 = vpack.c.bf16 %v1250, %v1248
    %v1400 = vpack.c.bf16 %v1255, %v1253
    %v1401 = vpack.c.bf16 %v1260, %v1258
    %v1402 = vpack.c.bf16 %v1265, %v1263
    %v1403 = vpack.c.bf16 %v1270, %v1268
    %1404 = vxpose.xlu0.b32.start [1/16] %v1295, 128
    %1405 = vxpose.xlu0.b32.cont [2/16] %v1297, 128
    %1406 = vxpose.xlu0.b32.cont [3/16] %v1300, 128
    %1407 = vxpose.xlu0.b32.cont [4/16] %v1302, 128
    %1408 = vxpose.xlu0.b32.cont [5/16] %v1305, 128
    %1409 = vxpose.xlu0.b32.cont [6/16] %v1307, 128
    %1410 = vxpose.xlu0.b32.cont [7/16] %v1310, 128
    %1411 = vxpose.xlu0.b32.cont [8/16] %v1312, 128
    %1412 = vxpose.xlu0.b32.cont [9/16] %v1315, 128
    %1413 = vxpose.xlu0.b32.cont [10/16] %v1317, 128
    %1414 = vxpose.xlu0.b32.cont [11/16] %v1320, 128
    %1415 = vxpose.xlu0.b32.cont [12/16] %v1322, 128
    %1416 = vxpose.xlu0.b32.cont [13/16] %v1325, 128
    %1417 = vxpose.xlu0.b32.cont [14/16] %v1327, 128
    %1418 = vxpose.xlu0.b32.cont [15/16] %v1330, 128
    %1419 = vxpose.xlu0.b32.end [16/16] %v1332, 128
    %v1420 = vpop.trf.xlu0
    %v1421 = vpop.trf.xlu0
    %v1422 = vpop.trf.xlu0
    %v1423 = vpop.trf.xlu0
    %v1424 = vpop.trf.xlu0
    %v1425 = vpop.trf.xlu0
    %v1426 = vpop.trf.xlu0
    %v1427 = vpop.trf.xlu0
    %v1428 = vpop.trf.xlu0
    %v1429 = vpop.trf.xlu0
    %v1430 = vpop.trf.xlu0
    %v1431 = vpop.trf.xlu0
    %v1432 = vpop.trf.xlu0
    %v1433 = vpop.trf.xlu0
    %v1434 = vpop.trf.xlu0
    %v1435 = vpop.trf.xlu0
    loop: start=0, step=1, limit=4
    $region42: #{tpu_custom_call.1} parent=1 // loop_pre_header
      _
    $region43: #{tpu_custom_call.1} parent=1 // loop_header
      %s1437 = sphi 0, %s1441
      %p1438 = scmp.ge.s32.totalorder %s1437, 4
      %v1442 = vphi 0.0, %v1781
      %v1443 = vphi 0.0, %v1782
      %v1444 = vphi 0.0, %v1783
      %v1445 = vphi 0.0, %v1784
      %v1446 = vphi 0.0, %v1785
      %v1447 = vphi 0.0, %v1786
      %v1448 = vphi 0.0, %v1787
      %v1449 = vphi 0.0, %v1788
      %v1450 = vphi 0.0, %v1789
      %v1451 = vphi 0.0, %v1790
      %v1452 = vphi 0.0, %v1791
      %v1453 = vphi 0.0, %v1792
      %v1454 = vphi 0.0, %v1793
      %v1455 = vphi 0.0, %v1794
      %v1456 = vphi 0.0, %v1795
      %v1457 = vphi 0.0, %v1796
    $region44: #{tpu_custom_call.1} parent=1 // loop_header_branch
      %1440 = sbr.rel (%p1438) target = $region48
    $region45: #{tpu_custom_call.1} parent=1 // loop_body
      %s1458 = smul.u32 %s1437, 8
      %s1459 = sadd.s32 %s1458, 8
      %v1460 = vstv %s1458
      %vm1461 = vcmp.ge.s32.totalorder %v51, %v1460
      %vm1462 = vcmp.ge.s32.totalorder %v52, %v1460
      %vm1463 = vcmp.ge.s32.totalorder %v53, %v1460
      %vm1464 = vcmp.ge.s32.totalorder %v54, %v1460
      %v1465 = vstv %s1459
      %vm1466 = vcmp.lt.s32.totalorder %v51, %v1465
      %vm1467 = vcmp.lt.s32.totalorder %v52, %v1465
      %vm1468 = vcmp.lt.s32.totalorder %v53, %v1465
      %vm1469 = vcmp.lt.s32.totalorder %v54, %v1465
      %vm1470 = vmand %vm1461, %vm1466
      %vm1471 = vmand %vm1462, %vm1467
      %vm1472 = vmand %vm1463, %vm1468
      %vm1473 = vmand %vm1464, %vm1469
      %v1474 = vsel %vm1470, %v1420, 0.0
      %v1475 = vsel %vm1471, %v1421, 0.0
      %v1476 = vsel %vm1472, %v1422, 0.0
      %v1477 = vsel %vm1473, %v1423, 0.0
      %v1478 = vpack.c.bf16 %v1475, %v1474
      %v1479 = vpack.c.bf16 %v1477, %v1476
      %vm1480 = vcmp.ge.s32.totalorder %v446, %v1460
      %vm1481 = vcmp.lt.s32.totalorder %v446, %v1465
      %vm1482 = vmand %vm1480, %vm1481
      %v1483 = vsel %vm1482, %v1357, 0.0
      %v1484 = vsel %vm1482, %v1359, 0.0
      %v1485 = vsel %vm1482, %v1362, 0.0
      %v1486 = vsel %vm1482, %v1364, 0.0
      %v1487 = vsel %vm1482, %v1367, 0.0
      %v1488 = vsel %vm1482, %v1369, 0.0
      %v1489 = vsel %vm1482, %v1372, 0.0
      %v1490 = vsel %vm1482, %v1374, 0.0
      %v1491 = vsel %vm1482, %v1377, 0.0
      %v1492 = vsel %vm1482, %v1379, 0.0
      %v1493 = vsel %vm1482, %v1382, 0.0
      %v1494 = vsel %vm1482, %v1384, 0.0
      %v1495 = vsel %vm1482, %v1387, 0.0
      %v1496 = vsel %vm1482, %v1389, 0.0
      %v1497 = vsel %vm1482, %v1392, 0.0
      %v1498 = vsel %vm1482, %v1394, 0.0
      %v1499 = vpack.c.bf16 %v1484, %v1483
      %v1500 = vpack.c.bf16 %v1486, %v1485
      %v1501 = vpack.c.bf16 %v1488, %v1487
      %v1502 = vpack.c.bf16 %v1490, %v1489
      %v1503 = vpack.c.bf16 %v1492, %v1491
      %v1504 = vpack.c.bf16 %v1494, %v1493
      %v1505 = vpack.c.bf16 %v1496, %v1495
      %v1506 = vpack.c.bf16 %v1498, %v1497
      %v1508 = vsel %vm1198, %v1396, 0
      %v1511 = vsel %vm1198, %v1397, 0
      %v1514 = vsel %vm1198, %v1398, 0
      %v1517 = vsel %vm1198, %v1399, 0
      %v1520 = vsel %vm1198, %v1400, 0
      %v1523 = vsel %vm1198, %v1401, 0
      %v1526 = vsel %vm1198, %v1402, 0
      %v1529 = vsel %vm1198, %v1403, 0
      %1531 = vmatpush.bf16.msra.mxu0 0
      %1532 = vmatpush.bf16.msra.mxu0 0
      %1533 = vmatpush.bf16.msra.mxu0 0
      %1534 = vmatpush.bf16.msra.mxu0 0
      %1535 = vmatpush.bf16.msra.mxu0 0
      %1536 = vmatpush.bf16.msra.mxu0 0
      %1537 = vmatpush.bf16.msra.mxu0 %v1479
      %1538 = vmatpush.bf16.msra.mxu0 %v1478
      %1539 = vmatmul.bf16.gmra.mxu0 %v1508
      %v1540 = vpop.f32.mrf.mxu0
      %v1541 = vadd.f32 0.0, %v1540
      %v1542 = vpop.f32.mrf.mxu0
      %v1543 = vadd.f32 0.0, %v1542
      %1544 = vmatmul.bf16.gmra.mxu0 %v1511
      %v1545 = vpop.f32.mrf.mxu0
      %v1546 = vadd.f32 0.0, %v1545
      %v1547 = vpop.f32.mrf.mxu0
      %v1548 = vadd.f32 0.0, %v1547
      %1549 = vmatmul.bf16.gmra.mxu0 %v1514
      %v1550 = vpop.f32.mrf.mxu0
      %v1551 = vadd.f32 0.0, %v1550
      %v1552 = vpop.f32.mrf.mxu0
      %v1553 = vadd.f32 0.0, %v1552
      %1554 = vmatmul.bf16.gmra.mxu0 %v1517
      %v1555 = vpop.f32.mrf.mxu0
      %v1556 = vadd.f32 0.0, %v1555
      %v1557 = vpop.f32.mrf.mxu0
      %v1558 = vadd.f32 0.0, %v1557
      %1559 = vmatmul.bf16.gmra.mxu0 %v1520
      %v1560 = vpop.f32.mrf.mxu0
      %v1561 = vadd.f32 0.0, %v1560
      %v1562 = vpop.f32.mrf.mxu0
      %v1563 = vadd.f32 0.0, %v1562
      %1564 = vmatmul.bf16.gmra.mxu0 %v1523
      %v1565 = vpop.f32.mrf.mxu0
      %v1566 = vadd.f32 0.0, %v1565
      %v1567 = vpop.f32.mrf.mxu0
      %v1568 = vadd.f32 0.0, %v1567
      %1569 = vmatmul.bf16.gmra.mxu0 %v1526
      %v1570 = vpop.f32.mrf.mxu0
      %v1571 = vadd.f32 0.0, %v1570
      %v1572 = vpop.f32.mrf.mxu0
      %v1573 = vadd.f32 0.0, %v1572
      %1574 = vmatmul.bf16.gmra.mxu0 %v1529
      %v1575 = vpop.f32.mrf.mxu0
      %v1576 = vadd.f32 0.0, %v1575
      %v1577 = vpop.f32.mrf.mxu0
      %v1578 = vadd.f32 0.0, %v1577
      %1579 = vdwg.mxu0
      %1580 = vmax.xlane.f32.xlu0 %v1541
      %v1581 = vpop.xlane.xlu0 %1580
      %1582 = vmax.xlane.f32.xlu0 %v1543
      %v1583 = vpop.xlane.xlu0 %1582
      %1584 = vmax.xlane.f32.xlu0 %v1546
      %v1585 = vpop.xlane.xlu0 %1584
      %1586 = vmax.xlane.f32.xlu0 %v1548
      %v1587 = vpop.xlane.xlu0 %1586
      %1588 = vmax.xlane.f32.xlu0 %v1551
      %v1589 = vpop.xlane.xlu0 %1588
      %1590 = vmax.xlane.f32.xlu0 %v1553
      %v1591 = vpop.xlane.xlu0 %1590
      %1592 = vmax.xlane.f32.xlu0 %v1556
      %v1593 = vpop.xlane.xlu0 %1592
      %1594 = vmax.xlane.f32.xlu0 %v1558
      %v1595 = vpop.xlane.xlu0 %1594
      %1596 = vmax.xlane.f32.xlu0 %v1561
      %v1597 = vpop.xlane.xlu0 %1596
      %1598 = vmax.xlane.f32.xlu0 %v1563
      %v1599 = vpop.xlane.xlu0 %1598
      %1600 = vmax.xlane.f32.xlu0 %v1566
      %v1601 = vpop.xlane.xlu0 %1600
      %1602 = vmax.xlane.f32.xlu0 %v1568
      %v1603 = vpop.xlane.xlu0 %1602
      %1604 = vmax.xlane.f32.xlu0 %v1571
      %v1605 = vpop.xlane.xlu0 %1604
      %1606 = vmax.xlane.f32.xlu0 %v1573
      %v1607 = vpop.xlane.xlu0 %1606
      %1608 = vmax.xlane.f32.xlu0 %v1576
      %v1609 = vpop.xlane.xlu0 %1608
      %1610 = vmax.xlane.f32.xlu0 %v1578
      %v1611 = vpop.xlane.xlu0 %1610
      %v1612 = vsub.f32 %v1541, %v1581
      %v1613 = vsub.f32 %v1543, %v1583
      %v1614 = vsub.f32 %v1546, %v1585
      %v1615 = vsub.f32 %v1548, %v1587
      %v1616 = vsub.f32 %v1551, %v1589
      %v1617 = vsub.f32 %v1553, %v1591
      %v1618 = vsub.f32 %v1556, %v1593
      %v1619 = vsub.f32 %v1558, %v1595
      %v1620 = vsub.f32 %v1561, %v1597
      %v1621 = vsub.f32 %v1563, %v1599
      %v1622 = vsub.f32 %v1566, %v1601
      %v1623 = vsub.f32 %v1568, %v1603
      %v1624 = vsub.f32 %v1571, %v1605
      %v1625 = vsub.f32 %v1573, %v1607
      %v1626 = vsub.f32 %v1576, %v1609
      %v1627 = vsub.f32 %v1578, %v1611
      %v1628 = vmul.f32 %v1612, 1.442695
      %v1629 = vpow.pop %v1628
      %v1630 = vmul.f32 %v1613, 1.442695
      %v1631 = vpow.pop %v1630
      %v1632 = vmul.f32 %v1614, 1.442695
      %v1633 = vpow.pop %v1632
      %v1634 = vmul.f32 %v1615, 1.442695
      %v1635 = vpow.pop %v1634
      %v1636 = vmul.f32 %v1616, 1.442695
      %v1637 = vpow.pop %v1636
      %v1638 = vmul.f32 %v1617, 1.442695
      %v1639 = vpow.pop %v1638
      %v1640 = vmul.f32 %v1618, 1.442695
      %v1641 = vpow.pop %v1640
      %v1642 = vmul.f32 %v1619, 1.442695
      %v1643 = vpow.pop %v1642
      %v1644 = vmul.f32 %v1620, 1.442695
      %v1645 = vpow.pop %v1644
      %v1646 = vmul.f32 %v1621, 1.442695
      %v1647 = vpow.pop %v1646
      %v1648 = vmul.f32 %v1622, 1.442695
      %v1649 = vpow.pop %v1648
      %v1650 = vmul.f32 %v1623, 1.442695
      %v1651 = vpow.pop %v1650
      %v1652 = vmul.f32 %v1624, 1.442695
      %v1653 = vpow.pop %v1652
      %v1654 = vmul.f32 %v1625, 1.442695
      %v1655 = vpow.pop %v1654
      %v1656 = vmul.f32 %v1626, 1.442695
      %v1657 = vpow.pop %v1656
      %v1658 = vmul.f32 %v1627, 1.442695
      %v1659 = vpow.pop %v1658
      %1660 = vadd.xlane.f32.xlu0 %v1629
      %v1661 = vpop.xlane.xlu0 %1660
      %1662 = vadd.xlane.f32.xlu0 %v1631
      %v1663 = vpop.xlane.xlu0 %1662
      %1664 = vadd.xlane.f32.xlu0 %v1633
      %v1665 = vpop.xlane.xlu0 %1664
      %1666 = vadd.xlane.f32.xlu0 %v1635
      %v1667 = vpop.xlane.xlu0 %1666
      %1668 = vadd.xlane.f32.xlu0 %v1637
      %v1669 = vpop.xlane.xlu0 %1668
      %1670 = vadd.xlane.f32.xlu0 %v1639
      %v1671 = vpop.xlane.xlu0 %1670
      %1672 = vadd.xlane.f32.xlu0 %v1641
      %v1673 = vpop.xlane.xlu0 %1672
      %1674 = vadd.xlane.f32.xlu0 %v1643
      %v1675 = vpop.xlane.xlu0 %1674
      %1676 = vadd.xlane.f32.xlu0 %v1645
      %v1677 = vpop.xlane.xlu0 %1676
      %1678 = vadd.xlane.f32.xlu0 %v1647
      %v1679 = vpop.xlane.xlu0 %1678
      %1680 = vadd.xlane.f32.xlu0 %v1649
      %v1681 = vpop.xlane.xlu0 %1680
      %1682 = vadd.xlane.f32.xlu0 %v1651
      %v1683 = vpop.xlane.xlu0 %1682
      %1684 = vadd.xlane.f32.xlu0 %v1653
      %v1685 = vpop.xlane.xlu0 %1684
      %1686 = vadd.xlane.f32.xlu0 %v1655
      %v1687 = vpop.xlane.xlu0 %1686
      %1688 = vadd.xlane.f32.xlu0 %v1657
      %v1689 = vpop.xlane.xlu0 %1688
      %1690 = vadd.xlane.f32.xlu0 %v1659
      %v1691 = vpop.xlane.xlu0 %1690
      %v1692 = vrcp.pop %v1661
      %v1693 = vrcp.pop %v1663
      %v1694 = vrcp.pop %v1665
      %v1695 = vrcp.pop %v1667
      %v1696 = vrcp.pop %v1669
      %v1697 = vrcp.pop %v1671
      %v1698 = vrcp.pop %v1673
      %v1699 = vrcp.pop %v1675
      %v1700 = vrcp.pop %v1677
      %v1701 = vrcp.pop %v1679
      %v1702 = vrcp.pop %v1681
      %v1703 = vrcp.pop %v1683
      %v1704 = vrcp.pop %v1685
      %v1705 = vrcp.pop %v1687
      %v1706 = vrcp.pop %v1689
      %v1707 = vrcp.pop %v1691
      %v1708 = vmul.f32 %v1629, %v1692
      %v1709 = vmul.f32 %v1631, %v1693
      %v1710 = vmul.f32 %v1633, %v1694
      %v1711 = vmul.f32 %v1635, %v1695
      %v1712 = vmul.f32 %v1637, %v1696
      %v1713 = vmul.f32 %v1639, %v1697
      %v1714 = vmul.f32 %v1641, %v1698
      %v1715 = vmul.f32 %v1643, %v1699
      %v1716 = vmul.f32 %v1645, %v1700
      %v1717 = vmul.f32 %v1647, %v1701
      %v1718 = vmul.f32 %v1649, %v1702
      %v1719 = vmul.f32 %v1651, %v1703
      %v1720 = vmul.f32 %v1653, %v1704
      %v1721 = vmul.f32 %v1655, %v1705
      %v1722 = vmul.f32 %v1657, %v1706
      %v1723 = vmul.f32 %v1659, %v1707
      %v1724 = vpack.c.bf16 %v1709, %v1708
      %v1725 = vpack.c.bf16 %v1711, %v1710
      %v1726 = vpack.c.bf16 %v1713, %v1712
      %v1727 = vpack.c.bf16 %v1715, %v1714
      %v1728 = vpack.c.bf16 %v1717, %v1716
      %v1729 = vpack.c.bf16 %v1719, %v1718
      %v1730 = vpack.c.bf16 %v1721, %v1720
      %v1731 = vpack.c.bf16 %v1723, %v1722
      %1732 = vmatpush.bf16.msra.mxu0 %v1506
      %1733 = vmatpush.bf16.msra.mxu0 %v1505
      %1734 = vmatpush.bf16.msra.mxu0 %v1504
      %1735 = vmatpush.bf16.msra.mxu0 %v1503
      %1736 = vmatpush.bf16.msra.mxu0 %v1502
      %1737 = vmatpush.bf16.msra.mxu0 %v1501
      %1738 = vmatpush.bf16.msra.mxu0 %v1500
      %1739 = vmatpush.bf16.msra.mxu0 %v1499
      %1740 = vmatmul.bf16.gmra.mxu0 %v1724
      %v1741 = vpop.f32.mrf.mxu0
      %v1742 = vadd.f32 0.0, %v1741
      %v1743 = vpop.f32.mrf.mxu0
      %v1744 = vadd.f32 0.0, %v1743
      %1745 = vmatmul.bf16.gmra.mxu0 %v1725
      %v1746 = vpop.f32.mrf.mxu0
      %v1747 = vadd.f32 0.0, %v1746
      %v1748 = vpop.f32.mrf.mxu0
      %v1749 = vadd.f32 0.0, %v1748
      %1750 = vmatmul.bf16.gmra.mxu0 %v1726
      %v1751 = vpop.f32.mrf.mxu0
      %v1752 = vadd.f32 0.0, %v1751
      %v1753 = vpop.f32.mrf.mxu0
      %v1754 = vadd.f32 0.0, %v1753
      %1755 = vmatmul.bf16.gmra.mxu0 %v1727
      %v1756 = vpop.f32.mrf.mxu0
      %v1757 = vadd.f32 0.0, %v1756
      %v1758 = vpop.f32.mrf.mxu0
      %v1759 = vadd.f32 0.0, %v1758
      %1760 = vmatmul.bf16.gmra.mxu0 %v1728
      %v1761 = vpop.f32.mrf.mxu0
      %v1762 = vadd.f32 0.0, %v1761
      %v1763 = vpop.f32.mrf.mxu0
      %v1764 = vadd.f32 0.0, %v1763
      %1765 = vmatmul.bf16.gmra.mxu0 %v1729
      %v1766 = vpop.f32.mrf.mxu0
      %v1767 = vadd.f32 0.0, %v1766
      %v1768 = vpop.f32.mrf.mxu0
      %v1769 = vadd.f32 0.0, %v1768
      %1770 = vmatmul.bf16.gmra.mxu0 %v1730
      %v1771 = vpop.f32.mrf.mxu0
      %v1772 = vadd.f32 0.0, %v1771
      %v1773 = vpop.f32.mrf.mxu0
      %v1774 = vadd.f32 0.0, %v1773
      %1775 = vmatmul.bf16.gmra.mxu0 %v1731
      %v1776 = vpop.f32.mrf.mxu0
      %v1777 = vadd.f32 0.0, %v1776
      %v1778 = vpop.f32.mrf.mxu0
      %v1779 = vadd.f32 0.0, %v1778
      %1780 = vdwg.mxu0
      %v1781 = vadd.f32 %v1442, %v1742
      %v1782 = vadd.f32 %v1443, %v1744
      %v1783 = vadd.f32 %v1444, %v1747
      %v1784 = vadd.f32 %v1445, %v1749
      %v1785 = vadd.f32 %v1446, %v1752
      %v1786 = vadd.f32 %v1447, %v1754
      %v1787 = vadd.f32 %v1448, %v1757
      %v1788 = vadd.f32 %v1449, %v1759
      %v1789 = vadd.f32 %v1450, %v1762
      %v1790 = vadd.f32 %v1451, %v1764
      %v1791 = vadd.f32 %v1452, %v1767
      %v1792 = vadd.f32 %v1453, %v1769
      %v1793 = vadd.f32 %v1454, %v1772
      %v1794 = vadd.f32 %v1455, %v1774
      %v1795 = vadd.f32 %v1456, %v1777
      %v1796 = vadd.f32 %v1457, %v1779
    $region46: #{tpu_custom_call.1} parent=1 // loop_footer
      %s1441 = sadd.s32 1, %s1437
    $region47: #{tpu_custom_call.1} parent=1 // loop_footer_branch
      %1436 = sbr.rel target = $region43
    $region48: #{tpu_custom_call.1} parent=1 // loop_exit
      _
    %v1797 = vpack.c.bf16 %v1443, %v1442
    %v1798 = vpack.c.bf16 %v1445, %v1444
    %v1799 = vpack.c.bf16 %v1447, %v1446
    %v1800 = vpack.c.bf16 %v1449, %v1448
    %v1801 = vpack.c.bf16 %v1451, %v1450
    %v1802 = vpack.c.bf16 %v1453, %v1452
    %v1803 = vpack.c.bf16 %v1455, %v1454
    %v1804 = vpack.c.bf16 %v1457, %v1456
    %v1805 = vld [vmem:[%s5] sm:$0xf]
    %v1806 = vld [vmem:[%s5 + $0x4] sm:$0xf]
    %v1807 = vld [vmem:[%s5 + $0x8] sm:$0xf]
    %v1808 = vld [vmem:[%s5 + $0xc] sm:$0xf]
    %v1809 = vperm.slane %v869, 3
    %v1814 = vunpack.c.l.b16 %v1805
    %v1815 = vunpack.c.l.b16 %v1806
    %v1816 = vunpack.c.l.b16 %v1807
    %v1817 = vunpack.c.l.b16 %v1808
    %v1818 = vpack.c.b16 %v1815, %v1814
    %v1819 = vpack.c.b16 %v1817, %v1816
    %v1823 = vsel %vm1198, %v1797, 0
    %v1826 = vsel %vm1198, %v1798, 0
    %v1829 = vsel %vm1198, %v1799, 0
    %v1832 = vsel %vm1198, %v1800, 0
    %v1835 = vsel %vm1198, %v1801, 0
    %v1838 = vsel %vm1198, %v1802, 0
    %v1841 = vsel %vm1198, %v1803, 0
    %v1844 = vsel %vm1198, %v1804, 0
    %1846 = vmatpush.bf16.msra.mxu0 0
    %1847 = vmatpush.bf16.msra.mxu0 0
    %1848 = vmatpush.bf16.msra.mxu0 0
    %1849 = vmatpush.bf16.msra.mxu0 0
    %1850 = vmatpush.bf16.msra.mxu0 0
    %1851 = vmatpush.bf16.msra.mxu0 0
    %1852 = vmatpush.bf16.msra.mxu0 %v1819
    %1853 = vmatpush.bf16.msra.mxu0 %v1818
    %1854 = vmatmul.bf16.gmra.mxu0 %v1823
    %v1855 = vpop.f32.mrf.mxu0
    %v1856 = vadd.f32 %v1809, %v1855
    %v1857 = vpop.f32.mrf.mxu0
    %v1858 = vadd.f32 %v1809, %v1857
    %1859 = vmatmul.bf16.gmra.mxu0 %v1826
    %v1860 = vpop.f32.mrf.mxu0
    %v1861 = vadd.f32 %v1809, %v1860
    %v1862 = vpop.f32.mrf.mxu0
    %v1863 = vadd.f32 %v1809, %v1862
    %1864 = vmatmul.bf16.gmra.mxu0 %v1829
    %v1865 = vpop.f32.mrf.mxu0
    %v1866 = vadd.f32 %v1809, %v1865
    %v1867 = vpop.f32.mrf.mxu0
    %v1868 = vadd.f32 %v1809, %v1867
    %1869 = vmatmul.bf16.gmra.mxu0 %v1832
    %v1870 = vpop.f32.mrf.mxu0
    %v1871 = vadd.f32 %v1809, %v1870
    %v1872 = vpop.f32.mrf.mxu0
    %v1873 = vadd.f32 %v1809, %v1872
    %1874 = vmatmul.bf16.gmra.mxu0 %v1835
    %v1875 = vpop.f32.mrf.mxu0
    %v1876 = vadd.f32 %v1809, %v1875
    %v1877 = vpop.f32.mrf.mxu0
    %v1878 = vadd.f32 %v1809, %v1877
    %1879 = vmatmul.bf16.gmra.mxu0 %v1838
    %v1880 = vpop.f32.mrf.mxu0
    %v1881 = vadd.f32 %v1809, %v1880
    %v1882 = vpop.f32.mrf.mxu0
    %v1883 = vadd.f32 %v1809, %v1882
    %1884 = vmatmul.bf16.gmra.mxu0 %v1841
    %v1885 = vpop.f32.mrf.mxu0
    %v1886 = vadd.f32 %v1809, %v1885
    %v1887 = vpop.f32.mrf.mxu0
    %v1888 = vadd.f32 %v1809, %v1887
    %1889 = vmatmul.bf16.gmra.mxu0 %v1844
    %v1890 = vpop.f32.mrf.mxu0
    %v1891 = vadd.f32 %v1809, %v1890
    %v1892 = vpop.f32.mrf.mxu0
    %v1893 = vadd.f32 %v1809, %v1892
    %1894 = vdwg.mxu0
    %v1895 = vadd.f32 %v1161, %v1856
    %v1896 = vadd.f32 %v1162, %v1858
    %v1897 = vadd.f32 %v1163, %v1861
    %v1898 = vadd.f32 %v1164, %v1863
    %v1899 = vadd.f32 %v1165, %v1866
    %v1900 = vadd.f32 %v1166, %v1868
    %v1901 = vadd.f32 %v1167, %v1871
    %v1902 = vadd.f32 %v1168, %v1873
    %v1903 = vadd.f32 %v1169, %v1876
    %v1904 = vadd.f32 %v1170, %v1878
    %v1905 = vadd.f32 %v1171, %v1881
    %v1906 = vadd.f32 %v1172, %v1883
    %v1907 = vadd.f32 %v1173, %v1886
    %v1908 = vadd.f32 %v1174, %v1888
    %v1909 = vadd.f32 %v1175, %v1891
    %v1910 = vadd.f32 %v1176, %v1893
    %v1911 = vsel %vm1198, %v1895, 0.0
    %1912 = vadd.xlane.f32.xlu0 %v1911
    %v1913 = vpop.xlane.xlu0 %1912
    %v1914 = vsel %vm1198, %v1896, 0.0
    %1915 = vadd.xlane.f32.xlu0 %v1914
    %v1916 = vpop.xlane.xlu0 %1915
    %v1917 = vsel %vm1198, %v1897, 0.0
    %1918 = vadd.xlane.f32.xlu0 %v1917
    %v1919 = vpop.xlane.xlu0 %1918
    %v1920 = vsel %vm1198, %v1898, 0.0
    %1921 = vadd.xlane.f32.xlu0 %v1920
    %v1922 = vpop.xlane.xlu0 %1921
    %v1923 = vsel %vm1198, %v1899, 0.0
    %1924 = vadd.xlane.f32.xlu0 %v1923
    %v1925 = vpop.xlane.xlu0 %1924
    %v1926 = vsel %vm1198, %v1900, 0.0
    %1927 = vadd.xlane.f32.xlu0 %v1926
    %v1928 = vpop.xlane.xlu0 %1927
    %v1929 = vsel %vm1198, %v1901, 0.0
    %1930 = vadd.xlane.f32.xlu0 %v1929
    %v1931 = vpop.xlane.xlu0 %1930
    %v1932 = vsel %vm1198, %v1902, 0.0
    %1933 = vadd.xlane.f32.xlu0 %v1932
    %v1934 = vpop.xlane.xlu0 %1933
    %v1935 = vsel %vm1198, %v1903, 0.0
    %1936 = vadd.xlane.f32.xlu0 %v1935
    %v1937 = vpop.xlane.xlu0 %1936
    %v1938 = vsel %vm1198, %v1904, 0.0
    %1939 = vadd.xlane.f32.xlu0 %v1938
    %v1940 = vpop.xlane.xlu0 %1939
    %v1941 = vsel %vm1198, %v1905, 0.0
    %1942 = vadd.xlane.f32.xlu0 %v1941
    %v1943 = vpop.xlane.xlu0 %1942
    %v1944 = vsel %vm1198, %v1906, 0.0
    %1945 = vadd.xlane.f32.xlu0 %v1944
    %v1946 = vpop.xlane.xlu0 %1945
    %v1947 = vsel %vm1198, %v1907, 0.0
    %1948 = vadd.xlane.f32.xlu0 %v1947
    %v1949 = vpop.xlane.xlu0 %1948
    %v1950 = vsel %vm1198, %v1908, 0.0
    %1951 = vadd.xlane.f32.xlu0 %v1950
    %v1952 = vpop.xlane.xlu0 %1951
    %v1953 = vsel %vm1198, %v1909, 0.0
    %1954 = vadd.xlane.f32.xlu0 %v1953
    %v1955 = vpop.xlane.xlu0 %1954
    %v1956 = vsel %vm1198, %v1910, 0.0
    %1957 = vadd.xlane.f32.xlu0 %v1956
    %v1958 = vpop.xlane.xlu0 %1957
    %v1959 = vrcp.pop 32.0
    %v1960 = vmul.f32 32.0, %v1959
    %v1961 = vsub.f32 1.0, %v1960
    %v1962 = vmul.f32 %v1959, %v1961
    %v1963 = vadd.f32 %v1959, %v1962
    %vm1964 = vweird.f32 %v1959
    %v1965 = vsel %vm1964, %v1959, %v1963
    %v1966 = vmul.f32 %v1913, %v1965
    %v1967 = vmul.f32 %v1916, %v1965
    %v1968 = vmul.f32 %v1919, %v1965
    %v1969 = vmul.f32 %v1922, %v1965
    %v1970 = vmul.f32 %v1925, %v1965
    %v1971 = vmul.f32 %v1928, %v1965
    %v1972 = vmul.f32 %v1931, %v1965
    %v1973 = vmul.f32 %v1934, %v1965
    %v1974 = vmul.f32 %v1937, %v1965
    %v1975 = vmul.f32 %v1940, %v1965
    %v1976 = vmul.f32 %v1943, %v1965
    %v1977 = vmul.f32 %v1946, %v1965
    %v1978 = vmul.f32 %v1949, %v1965
    %v1979 = vmul.f32 %v1952, %v1965
    %v1980 = vmul.f32 %v1955, %v1965
    %v1981 = vmul.f32 %v1958, %v1965
    %v1982 = vmul.f32 %v1895, %v1895
    %v1983 = vmul.f32 %v1896, %v1896
    %v1984 = vmul.f32 %v1897, %v1897
    %v1985 = vmul.f32 %v1898, %v1898
    %v1986 = vmul.f32 %v1899, %v1899
    %v1987 = vmul.f32 %v1900, %v1900
    %v1988 = vmul.f32 %v1901, %v1901
    %v1989 = vmul.f32 %v1902, %v1902
    %v1990 = vmul.f32 %v1903, %v1903
    %v1991 = vmul.f32 %v1904, %v1904
    %v1992 = vmul.f32 %v1905, %v1905
    %v1993 = vmul.f32 %v1906, %v1906
    %v1994 = vmul.f32 %v1907, %v1907
    %v1995 = vmul.f32 %v1908, %v1908
    %v1996 = vmul.f32 %v1909, %v1909
    %v1997 = vmul.f32 %v1910, %v1910
    %v1998 = vsel %vm1198, %v1982, 0.0
    %1999 = vadd.xlane.f32.xlu0 %v1998
    %v2000 = vpop.xlane.xlu0 %1999
    %v2001 = vsel %vm1198, %v1983, 0.0
    %2002 = vadd.xlane.f32.xlu0 %v2001
    %v2003 = vpop.xlane.xlu0 %2002
    %v2004 = vsel %vm1198, %v1984, 0.0
    %2005 = vadd.xlane.f32.xlu0 %v2004
    %v2006 = vpop.xlane.xlu0 %2005
    %v2007 = vsel %vm1198, %v1985, 0.0
    %2008 = vadd.xlane.f32.xlu0 %v2007
    %v2009 = vpop.xlane.xlu0 %2008
    %v2010 = vsel %vm1198, %v1986, 0.0
    %2011 = vadd.xlane.f32.xlu0 %v2010
    %v2012 = vpop.xlane.xlu0 %2011
    %v2013 = vsel %vm1198, %v1987, 0.0
    %2014 = vadd.xlane.f32.xlu0 %v2013
    %v2015 = vpop.xlane.xlu0 %2014
    %v2016 = vsel %vm1198, %v1988, 0.0
    %2017 = vadd.xlane.f32.xlu0 %v2016
    %v2018 = vpop.xlane.xlu0 %2017
    %v2019 = vsel %vm1198, %v1989, 0.0
    %2020 = vadd.xlane.f32.xlu0 %v2019
    %v2021 = vpop.xlane.xlu0 %2020
    %v2022 = vsel %vm1198, %v1990, 0.0
    %2023 = vadd.xlane.f32.xlu0 %v2022
    %v2024 = vpop.xlane.xlu0 %2023
    %v2025 = vsel %vm1198, %v1991, 0.0
    %2026 = vadd.xlane.f32.xlu0 %v2025
    %v2027 = vpop.xlane.xlu0 %2026
    %v2028 = vsel %vm1198, %v1992, 0.0
    %2029 = vadd.xlane.f32.xlu0 %v2028
    %v2030 = vpop.xlane.xlu0 %2029
    %v2031 = vsel %vm1198, %v1993, 0.0
    %2032 = vadd.xlane.f32.xlu0 %v2031
    %v2033 = vpop.xlane.xlu0 %2032
    %v2034 = vsel %vm1198, %v1994, 0.0
    %2035 = vadd.xlane.f32.xlu0 %v2034
    %v2036 = vpop.xlane.xlu0 %2035
    %v2037 = vsel %vm1198, %v1995, 0.0
    %2038 = vadd.xlane.f32.xlu0 %v2037
    %v2039 = vpop.xlane.xlu0 %2038
    %v2040 = vsel %vm1198, %v1996, 0.0
    %2041 = vadd.xlane.f32.xlu0 %v2040
    %v2042 = vpop.xlane.xlu0 %2041
    %v2043 = vsel %vm1198, %v1997, 0.0
    %2044 = vadd.xlane.f32.xlu0 %v2043
    %v2045 = vpop.xlane.xlu0 %2044
    %v2046 = vmul.f32 %v2000, %v1965
    %v2047 = vmul.f32 %v2003, %v1965
    %v2048 = vmul.f32 %v2006, %v1965
    %v2049 = vmul.f32 %v2009, %v1965
    %v2050 = vmul.f32 %v2012, %v1965
    %v2051 = vmul.f32 %v2015, %v1965
    %v2052 = vmul.f32 %v2018, %v1965
    %v2053 = vmul.f32 %v2021, %v1965
    %v2054 = vmul.f32 %v2024, %v1965
    %v2055 = vmul.f32 %v2027, %v1965
    %v2056 = vmul.f32 %v2030, %v1965
    %v2057 = vmul.f32 %v2033, %v1965
    %v2058 = vmul.f32 %v2036, %v1965
    %v2059 = vmul.f32 %v2039, %v1965
    %v2060 = vmul.f32 %v2042, %v1965
    %v2061 = vmul.f32 %v2045, %v1965
    %v2062 = vsub.f32 %v1895, %v1966
    %v2063 = vsub.f32 %v1896, %v1967
    %v2064 = vsub.f32 %v1897, %v1968
    %v2065 = vsub.f32 %v1898, %v1969
    %v2066 = vsub.f32 %v1899, %v1970
    %v2067 = vsub.f32 %v1900, %v1971
    %v2068 = vsub.f32 %v1901, %v1972
    %v2069 = vsub.f32 %v1902, %v1973
    %v2070 = vsub.f32 %v1903, %v1974
    %v2071 = vsub.f32 %v1904, %v1975
    %v2072 = vsub.f32 %v1905, %v1976
    %v2073 = vsub.f32 %v1906, %v1977
    %v2074 = vsub.f32 %v1907, %v1978
    %v2075 = vsub.f32 %v1908, %v1979
    %v2076 = vsub.f32 %v1909, %v1980
    %v2077 = vsub.f32 %v1910, %v1981
    %v2078 = vmul.f32 %v1966, %v1966
    %v2079 = vmul.f32 %v1967, %v1967
    %v2080 = vmul.f32 %v1968, %v1968
    %v2081 = vmul.f32 %v1969, %v1969
    %v2082 = vmul.f32 %v1970, %v1970
    %v2083 = vmul.f32 %v1971, %v1971
    %v2084 = vmul.f32 %v1972, %v1972
    %v2085 = vmul.f32 %v1973, %v1973
    %v2086 = vmul.f32 %v1974, %v1974
    %v2087 = vmul.f32 %v1975, %v1975
    %v2088 = vmul.f32 %v1976, %v1976
    %v2089 = vmul.f32 %v1977, %v1977
    %v2090 = vmul.f32 %v1978, %v1978
    %v2091 = vmul.f32 %v1979, %v1979
    %v2092 = vmul.f32 %v1980, %v1980
    %v2093 = vmul.f32 %v1981, %v1981
    %v2094 = vsub.f32 %v2046, %v2078
    %v2095 = vsub.f32 %v2047, %v2079
    %v2096 = vsub.f32 %v2048, %v2080
    %v2097 = vsub.f32 %v2049, %v2081
    %v2098 = vsub.f32 %v2050, %v2082
    %v2099 = vsub.f32 %v2051, %v2083
    %v2100 = vsub.f32 %v2052, %v2084
    %v2101 = vsub.f32 %v2053, %v2085
    %v2102 = vsub.f32 %v2054, %v2086
    %v2103 = vsub.f32 %v2055, %v2087
    %v2104 = vsub.f32 %v2056, %v2088
    %v2105 = vsub.f32 %v2057, %v2089
    %v2106 = vsub.f32 %v2058, %v2090
    %v2107 = vsub.f32 %v2059, %v2091
    %v2108 = vsub.f32 %v2060, %v2092
    %v2109 = vsub.f32 %v2061, %v2093
    %v2110 = vadd.f32 %v2094, 1e-05
    %v2111 = vadd.f32 %v2095, 1e-05
    %v2112 = vadd.f32 %v2096, 1e-05
    %v2113 = vadd.f32 %v2097, 1e-05
    %v2114 = vadd.f32 %v2098, 1e-05
    %v2115 = vadd.f32 %v2099, 1e-05
    %v2116 = vadd.f32 %v2100, 1e-05
    %v2117 = vadd.f32 %v2101, 1e-05
    %v2118 = vadd.f32 %v2102, 1e-05
    %v2119 = vadd.f32 %v2103, 1e-05
    %v2120 = vadd.f32 %v2104, 1e-05
    %v2121 = vadd.f32 %v2105, 1e-05
    %v2122 = vadd.f32 %v2106, 1e-05
    %v2123 = vadd.f32 %v2107, 1e-05
    %v2124 = vadd.f32 %v2108, 1e-05
    %v2125 = vadd.f32 %v2109, 1e-05
    %v2126 = vrsqrt.pop %v2110
    %v2127 = vmul.f32 %v2126, %v2110
    %v2128 = vmul.f32 %v2127, %v2126
    %v2129 = vmul.f32 0.5, %v2128
    %v2130 = vsub.f32 1.5, %v2129
    %v2131 = vmul.f32 %v2126, %v2130
    %vm2132 = vweird.f32 %v2110
    %vm2133 = vweird.f32 %v2126
    %vm2134 = vmor %vm2132, %vm2133
    %v2135 = vsel %vm2134, %v2126, %v2131
    %v2136 = vrsqrt.pop %v2111
    %v2137 = vmul.f32 %v2136, %v2111
    %v2138 = vmul.f32 %v2137, %v2136
    %v2139 = vmul.f32 0.5, %v2138
    %v2140 = vsub.f32 1.5, %v2139
    %v2141 = vmul.f32 %v2136, %v2140
    %vm2142 = vweird.f32 %v2111
    %vm2143 = vweird.f32 %v2136
    %vm2144 = vmor %vm2142, %vm2143
    %v2145 = vsel %vm2144, %v2136, %v2141
    %v2146 = vrsqrt.pop %v2112
    %v2147 = vmul.f32 %v2146, %v2112
    %v2148 = vmul.f32 %v2147, %v2146
    %v2149 = vmul.f32 0.5, %v2148
    %v2150 = vsub.f32 1.5, %v2149
    %v2151 = vmul.f32 %v2146, %v2150
    %vm2152 = vweird.f32 %v2112
    %vm2153 = vweird.f32 %v2146
    %vm2154 = vmor %vm2152, %vm2153
    %v2155 = vsel %vm2154, %v2146, %v2151
    %v2156 = vrsqrt.pop %v2113
    %v2157 = vmul.f32 %v2156, %v2113
    %v2158 = vmul.f32 %v2157, %v2156
    %v2159 = vmul.f32 0.5, %v2158
    %v2160 = vsub.f32 1.5, %v2159
    %v2161 = vmul.f32 %v2156, %v2160
    %vm2162 = vweird.f32 %v2113
    %vm2163 = vweird.f32 %v2156
    %vm2164 = vmor %vm2162, %vm2163
    %v2165 = vsel %vm2164, %v2156, %v2161
    %v2166 = vrsqrt.pop %v2114
    %v2167 = vmul.f32 %v2166, %v2114
    %v2168 = vmul.f32 %v2167, %v2166
    %v2169 = vmul.f32 0.5, %v2168
    %v2170 = vsub.f32 1.5, %v2169
    %v2171 = vmul.f32 %v2166, %v2170
    %vm2172 = vweird.f32 %v2114
    %vm2173 = vweird.f32 %v2166
    %vm2174 = vmor %vm2172, %vm2173
    %v2175 = vsel %vm2174, %v2166, %v2171
    %v2176 = vrsqrt.pop %v2115
    %v2177 = vmul.f32 %v2176, %v2115
    %v2178 = vmul.f32 %v2177, %v2176
    %v2179 = vmul.f32 0.5, %v2178
    %v2180 = vsub.f32 1.5, %v2179
    %v2181 = vmul.f32 %v2176, %v2180
    %vm2182 = vweird.f32 %v2115
    %vm2183 = vweird.f32 %v2176
    %vm2184 = vmor %vm2182, %vm2183
    %v2185 = vsel %vm2184, %v2176, %v2181
    %v2186 = vrsqrt.pop %v2116
    %v2187 = vmul.f32 %v2186, %v2116
    %v2188 = vmul.f32 %v2187, %v2186
    %v2189 = vmul.f32 0.5, %v2188
    %v2190 = vsub.f32 1.5, %v2189
    %v2191 = vmul.f32 %v2186, %v2190
    %vm2192 = vweird.f32 %v2116
    %vm2193 = vweird.f32 %v2186
    %vm2194 = vmor %vm2192, %vm2193
    %v2195 = vsel %vm2194, %v2186, %v2191
    %v2196 = vrsqrt.pop %v2117
    %v2197 = vmul.f32 %v2196, %v2117
    %v2198 = vmul.f32 %v2197, %v2196
    %v2199 = vmul.f32 0.5, %v2198
    %v2200 = vsub.f32 1.5, %v2199
    %v2201 = vmul.f32 %v2196, %v2200
    %vm2202 = vweird.f32 %v2117
    %vm2203 = vweird.f32 %v2196
    %vm2204 = vmor %vm2202, %vm2203
    %v2205 = vsel %vm2204, %v2196, %v2201
    %v2206 = vrsqrt.pop %v2118
    %v2207 = vmul.f32 %v2206, %v2118
    %v2208 = vmul.f32 %v2207, %v2206
    %v2209 = vmul.f32 0.5, %v2208
    %v2210 = vsub.f32 1.5, %v2209
    %v2211 = vmul.f32 %v2206, %v2210
    %vm2212 = vweird.f32 %v2118
    %vm2213 = vweird.f32 %v2206
    %vm2214 = vmor %vm2212, %vm2213
    %v2215 = vsel %vm2214, %v2206, %v2211
    %v2216 = vrsqrt.pop %v2119
    %v2217 = vmul.f32 %v2216, %v2119
    %v2218 = vmul.f32 %v2217, %v2216
    %v2219 = vmul.f32 0.5, %v2218
    %v2220 = vsub.f32 1.5, %v2219
    %v2221 = vmul.f32 %v2216, %v2220
    %vm2222 = vweird.f32 %v2119
    %vm2223 = vweird.f32 %v2216
    %vm2224 = vmor %vm2222, %vm2223
    %v2225 = vsel %vm2224, %v2216, %v2221
    %v2226 = vrsqrt.pop %v2120
    %v2227 = vmul.f32 %v2226, %v2120
    %v2228 = vmul.f32 %v2227, %v2226
    %v2229 = vmul.f32 0.5, %v2228
    %v2230 = vsub.f32 1.5, %v2229
    %v2231 = vmul.f32 %v2226, %v2230
    %vm2232 = vweird.f32 %v2120
    %vm2233 = vweird.f32 %v2226
    %vm2234 = vmor %vm2232, %vm2233
    %v2235 = vsel %vm2234, %v2226, %v2231
    %v2236 = vrsqrt.pop %v2121
    %v2237 = vmul.f32 %v2236, %v2121
    %v2238 = vmul.f32 %v2237, %v2236
    %v2239 = vmul.f32 0.5, %v2238
    %v2240 = vsub.f32 1.5, %v2239
    %v2241 = vmul.f32 %v2236, %v2240
    %vm2242 = vweird.f32 %v2121
    %vm2243 = vweird.f32 %v2236
    %vm2244 = vmor %vm2242, %vm2243
    %v2245 = vsel %vm2244, %v2236, %v2241
    %v2246 = vrsqrt.pop %v2122
    %v2247 = vmul.f32 %v2246, %v2122
    %v2248 = vmul.f32 %v2247, %v2246
    %v2249 = vmul.f32 0.5, %v2248
    %v2250 = vsub.f32 1.5, %v2249
    %v2251 = vmul.f32 %v2246, %v2250
    %vm2252 = vweird.f32 %v2122
    %vm2253 = vweird.f32 %v2246
    %vm2254 = vmor %vm2252, %vm2253
    %v2255 = vsel %vm2254, %v2246, %v2251
    %v2256 = vrsqrt.pop %v2123
    %v2257 = vmul.f32 %v2256, %v2123
    %v2258 = vmul.f32 %v2257, %v2256
    %v2259 = vmul.f32 0.5, %v2258
    %v2260 = vsub.f32 1.5, %v2259
    %v2261 = vmul.f32 %v2256, %v2260
    %vm2262 = vweird.f32 %v2123
    %vm2263 = vweird.f32 %v2256
    %vm2264 = vmor %vm2262, %vm2263
    %v2265 = vsel %vm2264, %v2256, %v2261
    %v2266 = vrsqrt.pop %v2124
    %v2267 = vmul.f32 %v2266, %v2124
    %v2268 = vmul.f32 %v2267, %v2266
    %v2269 = vmul.f32 0.5, %v2268
    %v2270 = vsub.f32 1.5, %v2269
    %v2271 = vmul.f32 %v2266, %v2270
    %vm2272 = vweird.f32 %v2124
    %vm2273 = vweird.f32 %v2266
    %vm2274 = vmor %vm2272, %vm2273
    %v2275 = vsel %vm2274, %v2266, %v2271
    %v2276 = vrsqrt.pop %v2125
    %v2277 = vmul.f32 %v2276, %v2125
    %v2278 = vmul.f32 %v2277, %v2276
    %v2279 = vmul.f32 0.5, %v2278
    %v2280 = vsub.f32 1.5, %v2279
    %v2281 = vmul.f32 %v2276, %v2280
    %vm2282 = vweird.f32 %v2125
    %vm2283 = vweird.f32 %v2276
    %vm2284 = vmor %vm2282, %vm2283
    %v2285 = vsel %vm2284, %v2276, %v2281
    %v2286 = vmul.f32 %v2062, %v2135
    %v2287 = vmul.f32 %v2063, %v2145
    %v2288 = vmul.f32 %v2064, %v2155
    %v2289 = vmul.f32 %v2065, %v2165
    %v2290 = vmul.f32 %v2066, %v2175
    %v2291 = vmul.f32 %v2067, %v2185
    %v2292 = vmul.f32 %v2068, %v2195
    %v2293 = vmul.f32 %v2069, %v2205
    %v2294 = vmul.f32 %v2070, %v2215
    %v2295 = vmul.f32 %v2071, %v2225
    %v2296 = vmul.f32 %v2072, %v2235
    %v2297 = vmul.f32 %v2073, %v2245
    %v2298 = vmul.f32 %v2074, %v2255
    %v2299 = vmul.f32 %v2075, %v2265
    %v2300 = vmul.f32 %v2076, %v2275
    %v2301 = vmul.f32 %v2077, %v2285
    %v2302 = vperm.slane %v869, 6
    %v2303 = vmul.f32 %v2286, %v2302
    %v2304 = vmul.f32 %v2287, %v2302
    %v2305 = vmul.f32 %v2288, %v2302
    %v2306 = vmul.f32 %v2289, %v2302
    %v2307 = vmul.f32 %v2290, %v2302
    %v2308 = vmul.f32 %v2291, %v2302
    %v2309 = vmul.f32 %v2292, %v2302
    %v2310 = vmul.f32 %v2293, %v2302
    %v2311 = vmul.f32 %v2294, %v2302
    %v2312 = vmul.f32 %v2295, %v2302
    %v2313 = vmul.f32 %v2296, %v2302
    %v2314 = vmul.f32 %v2297, %v2302
    %v2315 = vmul.f32 %v2298, %v2302
    %v2316 = vmul.f32 %v2299, %v2302
    %v2317 = vmul.f32 %v2300, %v2302
    %v2318 = vmul.f32 %v2301, %v2302
    %v2319 = vperm.slane %v869, 7
    %v2320 = vadd.f32 %v2303, %v2319
    %v2321 = vadd.f32 %v2304, %v2319
    %v2322 = vadd.f32 %v2305, %v2319
    %v2323 = vadd.f32 %v2306, %v2319
    %v2324 = vadd.f32 %v2307, %v2319
    %v2325 = vadd.f32 %v2308, %v2319
    %v2326 = vadd.f32 %v2309, %v2319
    %v2327 = vadd.f32 %v2310, %v2319
    %v2328 = vadd.f32 %v2311, %v2319
    %v2329 = vadd.f32 %v2312, %v2319
    %v2330 = vadd.f32 %v2313, %v2319
    %v2331 = vadd.f32 %v2314, %v2319
    %v2332 = vadd.f32 %v2315, %v2319
    %v2333 = vadd.f32 %v2316, %v2319
    %v2334 = vadd.f32 %v2317, %v2319
    %v2335 = vadd.f32 %v2318, %v2319
    %v2336 = vpack.c.bf16 %v2321, %v2320
    %v2337 = vpack.c.bf16 %v2323, %v2322
    %v2338 = vpack.c.bf16 %v2325, %v2324
    %v2339 = vpack.c.bf16 %v2327, %v2326
    %v2340 = vpack.c.bf16 %v2329, %v2328
    %v2341 = vpack.c.bf16 %v2331, %v2330
    %v2342 = vpack.c.bf16 %v2333, %v2332
    %v2343 = vpack.c.bf16 %v2335, %v2334
    %v2344 = vld [vmem:[%s6] sm:$0xf]
    %v2345 = vld [vmem:[%s6 + $0x4] sm:$0xf]
    %v2346 = vld [vmem:[%s6 + $0x8] sm:$0xf]
    %v2347 = vld [vmem:[%s6 + $0xc] sm:$0xf]
    %v2348 = vperm.slane %v869, 4
    %v2353 = vunpack.c.l.b16 %v2344
    %v2354 = vunpack.c.l.b16 %v2345
    %v2355 = vunpack.c.l.b16 %v2346
    %v2356 = vunpack.c.l.b16 %v2347
    %v2357 = vpack.c.b16 %v2354, %v2353
    %v2358 = vpack.c.b16 %v2356, %v2355
    %v2362 = vsel %vm1198, %v2336, 0
    %v2365 = vsel %vm1198, %v2337, 0
    %v2368 = vsel %vm1198, %v2338, 0
    %v2371 = vsel %vm1198, %v2339, 0
    %v2374 = vsel %vm1198, %v2340, 0
    %v2377 = vsel %vm1198, %v2341, 0
    %v2380 = vsel %vm1198, %v2342, 0
    %v2383 = vsel %vm1198, %v2343, 0
    %2385 = vmatpush.bf16.msra.mxu0 0
    %2386 = vmatpush.bf16.msra.mxu0 0
    %2387 = vmatpush.bf16.msra.mxu0 0
    %2388 = vmatpush.bf16.msra.mxu0 0
    %2389 = vmatpush.bf16.msra.mxu0 0
    %2390 = vmatpush.bf16.msra.mxu0 0
    %2391 = vmatpush.bf16.msra.mxu0 %v2358
    %2392 = vmatpush.bf16.msra.mxu0 %v2357
    %2393 = vmatmul.bf16.gmra.mxu0 %v2362
    %v2394 = vpop.f32.mrf.mxu0
    %v2395 = vadd.f32 %v2348, %v2394
    %v2396 = vpop.f32.mrf.mxu0
    %v2397 = vadd.f32 %v2348, %v2396
    %2398 = vmatmul.bf16.gmra.mxu0 %v2365
    %v2399 = vpop.f32.mrf.mxu0
    %v2400 = vadd.f32 %v2348, %v2399
    %v2401 = vpop.f32.mrf.mxu0
    %v2402 = vadd.f32 %v2348, %v2401
    %2403 = vmatmul.bf16.gmra.mxu0 %v2368
    %v2404 = vpop.f32.mrf.mxu0
    %v2405 = vadd.f32 %v2348, %v2404
    %v2406 = vpop.f32.mrf.mxu0
    %v2407 = vadd.f32 %v2348, %v2406
    %2408 = vmatmul.bf16.gmra.mxu0 %v2371
    %v2409 = vpop.f32.mrf.mxu0
    %v2410 = vadd.f32 %v2348, %v2409
    %v2411 = vpop.f32.mrf.mxu0
    %v2412 = vadd.f32 %v2348, %v2411
    %2413 = vmatmul.bf16.gmra.mxu0 %v2374
    %v2414 = vpop.f32.mrf.mxu0
    %v2415 = vadd.f32 %v2348, %v2414
    %v2416 = vpop.f32.mrf.mxu0
    %v2417 = vadd.f32 %v2348, %v2416
    %2418 = vmatmul.bf16.gmra.mxu0 %v2377
    %v2419 = vpop.f32.mrf.mxu0
    %v2420 = vadd.f32 %v2348, %v2419
    %v2421 = vpop.f32.mrf.mxu0
    %v2422 = vadd.f32 %v2348, %v2421
    %2423 = vmatmul.bf16.gmra.mxu0 %v2380
    %v2424 = vpop.f32.mrf.mxu0
    %v2425 = vadd.f32 %v2348, %v2424
    %v2426 = vpop.f32.mrf.mxu0
    %v2427 = vadd.f32 %v2348, %v2426
    %2428 = vmatmul.bf16.gmra.mxu0 %v2383
    %v2429 = vpop.f32.mrf.mxu0
    %v2430 = vadd.f32 %v2348, %v2429
    %v2431 = vpop.f32.mrf.mxu0
    %v2432 = vadd.f32 %v2348, %v2431
    %2433 = vdwg.mxu0
    %v2434 = vmax.f32 %v2395, 0.0
    %v2435 = vmax.f32 %v2397, 0.0
    %v2436 = vmax.f32 %v2400, 0.0
    %v2437 = vmax.f32 %v2402, 0.0
    %v2438 = vmax.f32 %v2405, 0.0
    %v2439 = vmax.f32 %v2407, 0.0
    %v2440 = vmax.f32 %v2410, 0.0
    %v2441 = vmax.f32 %v2412, 0.0
    %v2442 = vmax.f32 %v2415, 0.0
    %v2443 = vmax.f32 %v2417, 0.0
    %v2444 = vmax.f32 %v2420, 0.0
    %v2445 = vmax.f32 %v2422, 0.0
    %v2446 = vmax.f32 %v2425, 0.0
    %v2447 = vmax.f32 %v2427, 0.0
    %v2448 = vmax.f32 %v2430, 0.0
    %v2449 = vmax.f32 %v2432, 0.0
    %v2450 = vpack.c.bf16 %v2435, %v2434
    %v2451 = vpack.c.bf16 %v2437, %v2436
    %v2452 = vpack.c.bf16 %v2439, %v2438
    %v2453 = vpack.c.bf16 %v2441, %v2440
    %v2454 = vpack.c.bf16 %v2443, %v2442
    %v2455 = vpack.c.bf16 %v2445, %v2444
    %v2456 = vpack.c.bf16 %v2447, %v2446
    %v2457 = vpack.c.bf16 %v2449, %v2448
    %v2458 = vld [vmem:[%s7] sm:$0xf]
    %v2459 = vld [vmem:[%s7 + $0x4] sm:$0xf]
    %v2460 = vld [vmem:[%s7 + $0x8] sm:$0xf]
    %v2461 = vld [vmem:[%s7 + $0xc] sm:$0xf]
    %v2462 = vld [vmem:[%s7 + $0x10] sm:$0xf]
    %v2463 = vld [vmem:[%s7 + $0x14] sm:$0xf]
    %v2464 = vld [vmem:[%s7 + $0x18] sm:$0xf]
    %v2465 = vld [vmem:[%s7 + $0x1c] sm:$0xf]
    %v2466 = vperm.slane %v869, 5
    %v2475 = vunpack.c.l.b16 %v2458
    %v2476 = vunpack.c.l.b16 %v2459
    %v2477 = vunpack.c.l.b16 %v2460
    %v2478 = vunpack.c.l.b16 %v2461
    %v2479 = vunpack.c.l.b16 %v2462
    %v2480 = vunpack.c.l.b16 %v2463
    %v2481 = vunpack.c.l.b16 %v2464
    %v2482 = vunpack.c.l.b16 %v2465
    %v2483 = vpack.c.b16 %v2476, %v2475
    %v2484 = vpack.c.b16 %v2478, %v2477
    %v2485 = vpack.c.b16 %v2480, %v2479
    %v2486 = vpack.c.b16 %v2482, %v2481
    %vm2491 = vcmask 523264
    %v2493 = vsel %vm2491, %v2450, 0
    %v2496 = vsel %vm2491, %v2451, 0
    %v2499 = vsel %vm2491, %v2452, 0
    %v2502 = vsel %vm2491, %v2453, 0
    %v2505 = vsel %vm2491, %v2454, 0
    %v2508 = vsel %vm2491, %v2455, 0
    %v2511 = vsel %vm2491, %v2456, 0
    %v2514 = vsel %vm2491, %v2457, 0
    %2516 = vmatpush.bf16.msra.mxu0 0
    %2517 = vmatpush.bf16.msra.mxu0 0
    %2518 = vmatpush.bf16.msra.mxu0 0
    %2519 = vmatpush.bf16.msra.mxu0 0
    %2520 = vmatpush.bf16.msra.mxu0 %v2486
    %2521 = vmatpush.bf16.msra.mxu0 %v2485
    %2522 = vmatpush.bf16.msra.mxu0 %v2484
    %2523 = vmatpush.bf16.msra.mxu0 %v2483
    %2524 = vmatmul.bf16.gmra.mxu0 %v2493
    %v2525 = vpop.f32.mrf.mxu0
    %v2526 = vadd.f32 %v2466, %v2525
    %v2527 = vpop.f32.mrf.mxu0
    %v2528 = vadd.f32 %v2466, %v2527
    %2529 = vmatmul.bf16.gmra.mxu0 %v2496
    %v2530 = vpop.f32.mrf.mxu0
    %v2531 = vadd.f32 %v2466, %v2530
    %v2532 = vpop.f32.mrf.mxu0
    %v2533 = vadd.f32 %v2466, %v2532
    %2534 = vmatmul.bf16.gmra.mxu0 %v2499
    %v2535 = vpop.f32.mrf.mxu0
    %v2536 = vadd.f32 %v2466, %v2535
    %v2537 = vpop.f32.mrf.mxu0
    %v2538 = vadd.f32 %v2466, %v2537
    %2539 = vmatmul.bf16.gmra.mxu0 %v2502
    %v2540 = vpop.f32.mrf.mxu0
    %v2541 = vadd.f32 %v2466, %v2540
    %v2542 = vpop.f32.mrf.mxu0
    %v2543 = vadd.f32 %v2466, %v2542
    %2544 = vmatmul.bf16.gmra.mxu0 %v2505
    %v2545 = vpop.f32.mrf.mxu0
    %v2546 = vadd.f32 %v2466, %v2545
    %v2547 = vpop.f32.mrf.mxu0
    %v2548 = vadd.f32 %v2466, %v2547
    %2549 = vmatmul.bf16.gmra.mxu0 %v2508
    %v2550 = vpop.f32.mrf.mxu0
    %v2551 = vadd.f32 %v2466, %v2550
    %v2552 = vpop.f32.mrf.mxu0
    %v2553 = vadd.f32 %v2466, %v2552
    %2554 = vmatmul.bf16.gmra.mxu0 %v2511
    %v2555 = vpop.f32.mrf.mxu0
    %v2556 = vadd.f32 %v2466, %v2555
    %v2557 = vpop.f32.mrf.mxu0
    %v2558 = vadd.f32 %v2466, %v2557
    %2559 = vmatmul.bf16.gmra.mxu0 %v2514
    %v2560 = vpop.f32.mrf.mxu0
    %v2561 = vadd.f32 %v2466, %v2560
    %v2562 = vpop.f32.mrf.mxu0
    %v2563 = vadd.f32 %v2466, %v2562
    %2564 = vdwg.mxu0
    %v2565 = vadd.f32 %v2320, %v2526
    %v2566 = vadd.f32 %v2321, %v2528
    %v2567 = vadd.f32 %v2322, %v2531
    %v2568 = vadd.f32 %v2323, %v2533
    %v2569 = vadd.f32 %v2324, %v2536
    %v2570 = vadd.f32 %v2325, %v2538
    %v2571 = vadd.f32 %v2326, %v2541
    %v2572 = vadd.f32 %v2327, %v2543
    %v2573 = vadd.f32 %v2328, %v2546
    %v2574 = vadd.f32 %v2329, %v2548
    %v2575 = vadd.f32 %v2330, %v2551
    %v2576 = vadd.f32 %v2331, %v2553
    %v2577 = vadd.f32 %v2332, %v2556
    %v2578 = vadd.f32 %v2333, %v2558
    %v2579 = vadd.f32 %v2334, %v2561
    %v2580 = vadd.f32 %v2335, %v2563
    %v2581 = vsel %vm1198, %v2565, 0.0
    %2582 = vadd.xlane.f32.xlu0 %v2581
    %v2583 = vpop.xlane.xlu0 %2582
    %v2584 = vsel %vm1198, %v2566, 0.0
    %2585 = vadd.xlane.f32.xlu0 %v2584
    %v2586 = vpop.xlane.xlu0 %2585
    %v2587 = vsel %vm1198, %v2567, 0.0
    %2588 = vadd.xlane.f32.xlu0 %v2587
    %v2589 = vpop.xlane.xlu0 %2588
    %v2590 = vsel %vm1198, %v2568, 0.0
    %2591 = vadd.xlane.f32.xlu0 %v2590
    %v2592 = vpop.xlane.xlu0 %2591
    %v2593 = vsel %vm1198, %v2569, 0.0
    %2594 = vadd.xlane.f32.xlu0 %v2593
    %v2595 = vpop.xlane.xlu0 %2594
    %v2596 = vsel %vm1198, %v2570, 0.0
    %2597 = vadd.xlane.f32.xlu0 %v2596
    %v2598 = vpop.xlane.xlu0 %2597
    %v2599 = vsel %vm1198, %v2571, 0.0
    %2600 = vadd.xlane.f32.xlu0 %v2599
    %v2601 = vpop.xlane.xlu0 %2600
    %v2602 = vsel %vm1198, %v2572, 0.0
    %2603 = vadd.xlane.f32.xlu0 %v2602
    %v2604 = vpop.xlane.xlu0 %2603
    %v2605 = vsel %vm1198, %v2573, 0.0
    %2606 = vadd.xlane.f32.xlu0 %v2605
    %v2607 = vpop.xlane.xlu0 %2606
    %v2608 = vsel %vm1198, %v2574, 0.0
    %2609 = vadd.xlane.f32.xlu0 %v2608
    %v2610 = vpop.xlane.xlu0 %2609
    %v2611 = vsel %vm1198, %v2575, 0.0
    %2612 = vadd.xlane.f32.xlu0 %v2611
    %v2613 = vpop.xlane.xlu0 %2612
    %v2614 = vsel %vm1198, %v2576, 0.0
    %2615 = vadd.xlane.f32.xlu0 %v2614
    %v2616 = vpop.xlane.xlu0 %2615
    %v2617 = vsel %vm1198, %v2577, 0.0
    %2618 = vadd.xlane.f32.xlu0 %v2617
    %v2619 = vpop.xlane.xlu0 %2618
    %v2620 = vsel %vm1198, %v2578, 0.0
    %2621 = vadd.xlane.f32.xlu0 %v2620
    %v2622 = vpop.xlane.xlu0 %2621
    %v2623 = vsel %vm1198, %v2579, 0.0
    %2624 = vadd.xlane.f32.xlu0 %v2623
    %v2625 = vpop.xlane.xlu0 %2624
    %v2626 = vsel %vm1198, %v2580, 0.0
    %2627 = vadd.xlane.f32.xlu0 %v2626
    %v2628 = vpop.xlane.xlu0 %2627
    %v2629 = vmul.f32 %v2583, %v1965
    %v2630 = vmul.f32 %v2586, %v1965
    %v2631 = vmul.f32 %v2589, %v1965
    %v2632 = vmul.f32 %v2592, %v1965
    %v2633 = vmul.f32 %v2595, %v1965
    %v2634 = vmul.f32 %v2598, %v1965
    %v2635 = vmul.f32 %v2601, %v1965
    %v2636 = vmul.f32 %v2604, %v1965
    %v2637 = vmul.f32 %v2607, %v1965
    %v2638 = vmul.f32 %v2610, %v1965
    %v2639 = vmul.f32 %v2613, %v1965
    %v2640 = vmul.f32 %v2616, %v1965
    %v2641 = vmul.f32 %v2619, %v1965
    %v2642 = vmul.f32 %v2622, %v1965
    %v2643 = vmul.f32 %v2625, %v1965
    %v2644 = vmul.f32 %v2628, %v1965
    %v2645 = vmul.f32 %v2565, %v2565
    %v2646 = vmul.f32 %v2566, %v2566
    %v2647 = vmul.f32 %v2567, %v2567
    %v2648 = vmul.f32 %v2568, %v2568
    %v2649 = vmul.f32 %v2569, %v2569
    %v2650 = vmul.f32 %v2570, %v2570
    %v2651 = vmul.f32 %v2571, %v2571
    %v2652 = vmul.f32 %v2572, %v2572
    %v2653 = vmul.f32 %v2573, %v2573
    %v2654 = vmul.f32 %v2574, %v2574
    %v2655 = vmul.f32 %v2575, %v2575
    %v2656 = vmul.f32 %v2576, %v2576
    %v2657 = vmul.f32 %v2577, %v2577
    %v2658 = vmul.f32 %v2578, %v2578
    %v2659 = vmul.f32 %v2579, %v2579
    %v2660 = vmul.f32 %v2580, %v2580
    %v2661 = vsel %vm1198, %v2645, 0.0
    %2662 = vadd.xlane.f32.xlu0 %v2661
    %v2663 = vpop.xlane.xlu0 %2662
    %v2664 = vsel %vm1198, %v2646, 0.0
    %2665 = vadd.xlane.f32.xlu0 %v2664
    %v2666 = vpop.xlane.xlu0 %2665
    %v2667 = vsel %vm1198, %v2647, 0.0
    %2668 = vadd.xlane.f32.xlu0 %v2667
    %v2669 = vpop.xlane.xlu0 %2668
    %v2670 = vsel %vm1198, %v2648, 0.0
    %2671 = vadd.xlane.f32.xlu0 %v2670
    %v2672 = vpop.xlane.xlu0 %2671
    %v2673 = vsel %vm1198, %v2649, 0.0
    %2674 = vadd.xlane.f32.xlu0 %v2673
    %v2675 = vpop.xlane.xlu0 %2674
    %v2676 = vsel %vm1198, %v2650, 0.0
    %2677 = vadd.xlane.f32.xlu0 %v2676
    %v2678 = vpop.xlane.xlu0 %2677
    %v2679 = vsel %vm1198, %v2651, 0.0
    %2680 = vadd.xlane.f32.xlu0 %v2679
    %v2681 = vpop.xlane.xlu0 %2680
    %v2682 = vsel %vm1198, %v2652, 0.0
    %2683 = vadd.xlane.f32.xlu0 %v2682
    %v2684 = vpop.xlane.xlu0 %2683
    %v2685 = vsel %vm1198, %v2653, 0.0
    %2686 = vadd.xlane.f32.xlu0 %v2685
    %v2687 = vpop.xlane.xlu0 %2686
    %v2688 = vsel %vm1198, %v2654, 0.0
    %2689 = vadd.xlane.f32.xlu0 %v2688
    %v2690 = vpop.xlane.xlu0 %2689
    %v2691 = vsel %vm1198, %v2655, 0.0
    %2692 = vadd.xlane.f32.xlu0 %v2691
    %v2693 = vpop.xlane.xlu0 %2692
    %v2694 = vsel %vm1198, %v2656, 0.0
    %2695 = vadd.xlane.f32.xlu0 %v2694
    %v2696 = vpop.xlane.xlu0 %2695
    %v2697 = vsel %vm1198, %v2657, 0.0
    %2698 = vadd.xlane.f32.xlu0 %v2697
    %v2699 = vpop.xlane.xlu0 %2698
    %v2700 = vsel %vm1198, %v2658, 0.0
    %2701 = vadd.xlane.f32.xlu0 %v2700
    %v2702 = vpop.xlane.xlu0 %2701
    %v2703 = vsel %vm1198, %v2659, 0.0
    %2704 = vadd.xlane.f32.xlu0 %v2703
    %v2705 = vpop.xlane.xlu0 %2704
    %v2706 = vsel %vm1198, %v2660, 0.0
    %2707 = vadd.xlane.f32.xlu0 %v2706
    %v2708 = vpop.xlane.xlu0 %2707
    %v2709 = vmul.f32 %v2663, %v1965
    %v2710 = vmul.f32 %v2666, %v1965
    %v2711 = vmul.f32 %v2669, %v1965
    %v2712 = vmul.f32 %v2672, %v1965
    %v2713 = vmul.f32 %v2675, %v1965
    %v2714 = vmul.f32 %v2678, %v1965
    %v2715 = vmul.f32 %v2681, %v1965
    %v2716 = vmul.f32 %v2684, %v1965
    %v2717 = vmul.f32 %v2687, %v1965
    %v2718 = vmul.f32 %v2690, %v1965
    %v2719 = vmul.f32 %v2693, %v1965
    %v2720 = vmul.f32 %v2696, %v1965
    %v2721 = vmul.f32 %v2699, %v1965
    %v2722 = vmul.f32 %v2702, %v1965
    %v2723 = vmul.f32 %v2705, %v1965
    %v2724 = vmul.f32 %v2708, %v1965
    %v2725 = vsub.f32 %v2565, %v2629
    %v2726 = vsub.f32 %v2566, %v2630
    %v2727 = vsub.f32 %v2567, %v2631
    %v2728 = vsub.f32 %v2568, %v2632
    %v2729 = vsub.f32 %v2569, %v2633
    %v2730 = vsub.f32 %v2570, %v2634
    %v2731 = vsub.f32 %v2571, %v2635
    %v2732 = vsub.f32 %v2572, %v2636
    %v2733 = vsub.f32 %v2573, %v2637
    %v2734 = vsub.f32 %v2574, %v2638
    %v2735 = vsub.f32 %v2575, %v2639
    %v2736 = vsub.f32 %v2576, %v2640
    %v2737 = vsub.f32 %v2577, %v2641
    %v2738 = vsub.f32 %v2578, %v2642
    %v2739 = vsub.f32 %v2579, %v2643
    %v2740 = vsub.f32 %v2580, %v2644
    %v2741 = vmul.f32 %v2629, %v2629
    %v2742 = vmul.f32 %v2630, %v2630
    %v2743 = vmul.f32 %v2631, %v2631
    %v2744 = vmul.f32 %v2632, %v2632
    %v2745 = vmul.f32 %v2633, %v2633
    %v2746 = vmul.f32 %v2634, %v2634
    %v2747 = vmul.f32 %v2635, %v2635
    %v2748 = vmul.f32 %v2636, %v2636
    %v2749 = vmul.f32 %v2637, %v2637
    %v2750 = vmul.f32 %v2638, %v2638
    %v2751 = vmul.f32 %v2639, %v2639
    %v2752 = vmul.f32 %v2640, %v2640
    %v2753 = vmul.f32 %v2641, %v2641
    %v2754 = vmul.f32 %v2642, %v2642
    %v2755 = vmul.f32 %v2643, %v2643
    %v2756 = vmul.f32 %v2644, %v2644
    %v2757 = vsub.f32 %v2709, %v2741
    %v2758 = vsub.f32 %v2710, %v2742
    %v2759 = vsub.f32 %v2711, %v2743
    %v2760 = vsub.f32 %v2712, %v2744
    %v2761 = vsub.f32 %v2713, %v2745
    %v2762 = vsub.f32 %v2714, %v2746
    %v2763 = vsub.f32 %v2715, %v2747
    %v2764 = vsub.f32 %v2716, %v2748
    %v2765 = vsub.f32 %v2717, %v2749
    %v2766 = vsub.f32 %v2718, %v2750
    %v2767 = vsub.f32 %v2719, %v2751
    %v2768 = vsub.f32 %v2720, %v2752
    %v2769 = vsub.f32 %v2721, %v2753
    %v2770 = vsub.f32 %v2722, %v2754
    %v2771 = vsub.f32 %v2723, %v2755
    %v2772 = vsub.f32 %v2724, %v2756
    %v2773 = vadd.f32 %v2757, 1e-05
    %v2774 = vadd.f32 %v2758, 1e-05
    %v2775 = vadd.f32 %v2759, 1e-05
    %v2776 = vadd.f32 %v2760, 1e-05
    %v2777 = vadd.f32 %v2761, 1e-05
    %v2778 = vadd.f32 %v2762, 1e-05
    %v2779 = vadd.f32 %v2763, 1e-05
    %v2780 = vadd.f32 %v2764, 1e-05
    %v2781 = vadd.f32 %v2765, 1e-05
    %v2782 = vadd.f32 %v2766, 1e-05
    %v2783 = vadd.f32 %v2767, 1e-05
    %v2784 = vadd.f32 %v2768, 1e-05
    %v2785 = vadd.f32 %v2769, 1e-05
    %v2786 = vadd.f32 %v2770, 1e-05
    %v2787 = vadd.f32 %v2771, 1e-05
    %v2788 = vadd.f32 %v2772, 1e-05
    %v2789 = vrsqrt.pop %v2773
    %v2790 = vmul.f32 %v2789, %v2773
    %v2791 = vmul.f32 %v2790, %v2789
    %v2792 = vmul.f32 0.5, %v2791
    %v2793 = vsub.f32 1.5, %v2792
    %v2794 = vmul.f32 %v2789, %v2793
    %vm2795 = vweird.f32 %v2773
    %vm2796 = vweird.f32 %v2789
    %vm2797 = vmor %vm2795, %vm2796
    %v2798 = vsel %vm2797, %v2789, %v2794
    %v2799 = vrsqrt.pop %v2774
    %v2800 = vmul.f32 %v2799, %v2774
    %v2801 = vmul.f32 %v2800, %v2799
    %v2802 = vmul.f32 0.5, %v2801
    %v2803 = vsub.f32 1.5, %v2802
    %v2804 = vmul.f32 %v2799, %v2803
    %vm2805 = vweird.f32 %v2774
    %vm2806 = vweird.f32 %v2799
    %vm2807 = vmor %vm2805, %vm2806
    %v2808 = vsel %vm2807, %v2799, %v2804
    %v2809 = vrsqrt.pop %v2775
    %v2810 = vmul.f32 %v2809, %v2775
    %v2811 = vmul.f32 %v2810, %v2809
    %v2812 = vmul.f32 0.5, %v2811
    %v2813 = vsub.f32 1.5, %v2812
    %v2814 = vmul.f32 %v2809, %v2813
    %vm2815 = vweird.f32 %v2775
    %vm2816 = vweird.f32 %v2809
    %vm2817 = vmor %vm2815, %vm2816
    %v2818 = vsel %vm2817, %v2809, %v2814
    %v2819 = vrsqrt.pop %v2776
    %v2820 = vmul.f32 %v2819, %v2776
    %v2821 = vmul.f32 %v2820, %v2819
    %v2822 = vmul.f32 0.5, %v2821
    %v2823 = vsub.f32 1.5, %v2822
    %v2824 = vmul.f32 %v2819, %v2823
    %vm2825 = vweird.f32 %v2776
    %vm2826 = vweird.f32 %v2819
    %vm2827 = vmor %vm2825, %vm2826
    %v2828 = vsel %vm2827, %v2819, %v2824
    %v2829 = vrsqrt.pop %v2777
    %v2830 = vmul.f32 %v2829, %v2777
    %v2831 = vmul.f32 %v2830, %v2829
    %v2832 = vmul.f32 0.5, %v2831
    %v2833 = vsub.f32 1.5, %v2832
    %v2834 = vmul.f32 %v2829, %v2833
    %vm2835 = vweird.f32 %v2777
    %vm2836 = vweird.f32 %v2829
    %vm2837 = vmor %vm2835, %vm2836
    %v2838 = vsel %vm2837, %v2829, %v2834
    %v2839 = vrsqrt.pop %v2778
    %v2840 = vmul.f32 %v2839, %v2778
    %v2841 = vmul.f32 %v2840, %v2839
    %v2842 = vmul.f32 0.5, %v2841
    %v2843 = vsub.f32 1.5, %v2842
    %v2844 = vmul.f32 %v2839, %v2843
    %vm2845 = vweird.f32 %v2778
    %vm2846 = vweird.f32 %v2839
    %vm2847 = vmor %vm2845, %vm2846
    %v2848 = vsel %vm2847, %v2839, %v2844
    %v2849 = vrsqrt.pop %v2779
    %v2850 = vmul.f32 %v2849, %v2779
    %v2851 = vmul.f32 %v2850, %v2849
    %v2852 = vmul.f32 0.5, %v2851
    %v2853 = vsub.f32 1.5, %v2852
    %v2854 = vmul.f32 %v2849, %v2853
    %vm2855 = vweird.f32 %v2779
    %vm2856 = vweird.f32 %v2849
    %vm2857 = vmor %vm2855, %vm2856
    %v2858 = vsel %vm2857, %v2849, %v2854
    %v2859 = vrsqrt.pop %v2780
    %v2860 = vmul.f32 %v2859, %v2780
    %v2861 = vmul.f32 %v2860, %v2859
    %v2862 = vmul.f32 0.5, %v2861
    %v2863 = vsub.f32 1.5, %v2862
    %v2864 = vmul.f32 %v2859, %v2863
    %vm2865 = vweird.f32 %v2780
    %vm2866 = vweird.f32 %v2859
    %vm2867 = vmor %vm2865, %vm2866
    %v2868 = vsel %vm2867, %v2859, %v2864
    %v2869 = vrsqrt.pop %v2781
    %v2870 = vmul.f32 %v2869, %v2781
    %v2871 = vmul.f32 %v2870, %v2869
    %v2872 = vmul.f32 0.5, %v2871
    %v2873 = vsub.f32 1.5, %v2872
    %v2874 = vmul.f32 %v2869, %v2873
    %vm2875 = vweird.f32 %v2781
    %vm2876 = vweird.f32 %v2869
    %vm2877 = vmor %vm2875, %vm2876
    %v2878 = vsel %vm2877, %v2869, %v2874
    %v2879 = vrsqrt.pop %v2782
    %v2880 = vmul.f32 %v2879, %v2782
    %v2881 = vmul.f32 %v2880, %v2879
    %v2882 = vmul.f32 0.5, %v2881
    %v2883 = vsub.f32 1.5, %v2882
    %v2884 = vmul.f32 %v2879, %v2883
    %vm2885 = vweird.f32 %v2782
    %vm2886 = vweird.f32 %v2879
    %vm2887 = vmor %vm2885, %vm2886
    %v2888 = vsel %vm2887, %v2879, %v2884
    %v2889 = vrsqrt.pop %v2783
    %v2890 = vmul.f32 %v2889, %v2783
    %v2891 = vmul.f32 %v2890, %v2889
    %v2892 = vmul.f32 0.5, %v2891
    %v2893 = vsub.f32 1.5, %v2892
    %v2894 = vmul.f32 %v2889, %v2893
    %vm2895 = vweird.f32 %v2783
    %vm2896 = vweird.f32 %v2889
    %vm2897 = vmor %vm2895, %vm2896
    %v2898 = vsel %vm2897, %v2889, %v2894
    %v2899 = vrsqrt.pop %v2784
    %v2900 = vmul.f32 %v2899, %v2784
    %v2901 = vmul.f32 %v2900, %v2899
    %v2902 = vmul.f32 0.5, %v2901
    %v2903 = vsub.f32 1.5, %v2902
    %v2904 = vmul.f32 %v2899, %v2903
    %vm2905 = vweird.f32 %v2784
    %vm2906 = vweird.f32 %v2899
    %vm2907 = vmor %vm2905, %vm2906
    %v2908 = vsel %vm2907, %v2899, %v2904
    %v2909 = vrsqrt.pop %v2785
    %v2910 = vmul.f32 %v2909, %v2785
    %v2911 = vmul.f32 %v2910, %v2909
    %v2912 = vmul.f32 0.5, %v2911
    %v2913 = vsub.f32 1.5, %v2912
    %v2914 = vmul.f32 %v2909, %v2913
    %vm2915 = vweird.f32 %v2785
    %vm2916 = vweird.f32 %v2909
    %vm2917 = vmor %vm2915, %vm2916
    %v2918 = vsel %vm2917, %v2909, %v2914
    %v2919 = vrsqrt.pop %v2786
    %v2920 = vmul.f32 %v2919, %v2786
    %v2921 = vmul.f32 %v2920, %v2919
    %v2922 = vmul.f32 0.5, %v2921
    %v2923 = vsub.f32 1.5, %v2922
    %v2924 = vmul.f32 %v2919, %v2923
    %vm2925 = vweird.f32 %v2786
    %vm2926 = vweird.f32 %v2919
    %vm2927 = vmor %vm2925, %vm2926
    %v2928 = vsel %vm2927, %v2919, %v2924
    %v2929 = vrsqrt.pop %v2787
    %v2930 = vmul.f32 %v2929, %v2787
    %v2931 = vmul.f32 %v2930, %v2929
    %v2932 = vmul.f32 0.5, %v2931
    %v2933 = vsub.f32 1.5, %v2932
    %v2934 = vmul.f32 %v2929, %v2933
    %vm2935 = vweird.f32 %v2787
    %vm2936 = vweird.f32 %v2929
    %vm2937 = vmor %vm2935, %vm2936
    %v2938 = vsel %vm2937, %v2929, %v2934
    %v2939 = vrsqrt.pop %v2788
    %v2940 = vmul.f32 %v2939, %v2788
    %v2941 = vmul.f32 %v2940, %v2939
    %v2942 = vmul.f32 0.5, %v2941
    %v2943 = vsub.f32 1.5, %v2942
    %v2944 = vmul.f32 %v2939, %v2943
    %vm2945 = vweird.f32 %v2788
    %vm2946 = vweird.f32 %v2939
    %vm2947 = vmor %vm2945, %vm2946
    %v2948 = vsel %vm2947, %v2939, %v2944
    %v2949 = vmul.f32 %v2725, %v2798
    %v2950 = vmul.f32 %v2726, %v2808
    %v2951 = vmul.f32 %v2727, %v2818
    %v2952 = vmul.f32 %v2728, %v2828
    %v2953 = vmul.f32 %v2729, %v2838
    %v2954 = vmul.f32 %v2730, %v2848
    %v2955 = vmul.f32 %v2731, %v2858
    %v2956 = vmul.f32 %v2732, %v2868
    %v2957 = vmul.f32 %v2733, %v2878
    %v2958 = vmul.f32 %v2734, %v2888
    %v2959 = vmul.f32 %v2735, %v2898
    %v2960 = vmul.f32 %v2736, %v2908
    %v2961 = vmul.f32 %v2737, %v2918
    %v2962 = vmul.f32 %v2738, %v2928
    %v2963 = vmul.f32 %v2739, %v2938
    %v2964 = vmul.f32 %v2740, %v2948
    %v2965 = vperm.slane %v870, 0
    %v2966 = vmul.f32 %v2949, %v2965
    %v2967 = vmul.f32 %v2950, %v2965
    %v2968 = vmul.f32 %v2951, %v2965
    %v2969 = vmul.f32 %v2952, %v2965
    %v2970 = vmul.f32 %v2953, %v2965
    %v2971 = vmul.f32 %v2954, %v2965
    %v2972 = vmul.f32 %v2955, %v2965
    %v2973 = vmul.f32 %v2956, %v2965
    %v2974 = vmul.f32 %v2957, %v2965
    %v2975 = vmul.f32 %v2958, %v2965
    %v2976 = vmul.f32 %v2959, %v2965
    %v2977 = vmul.f32 %v2960, %v2965
    %v2978 = vmul.f32 %v2961, %v2965
    %v2979 = vmul.f32 %v2962, %v2965
    %v2980 = vmul.f32 %v2963, %v2965
    %v2981 = vmul.f32 %v2964, %v2965
    %v2982 = vperm.slane %v870, 1
    %v2983 = vadd.f32 %v2966, %v2982
    %v2984 = vadd.f32 %v2967, %v2982
    %v2985 = vadd.f32 %v2968, %v2982
    %v2986 = vadd.f32 %v2969, %v2982
    %v2987 = vadd.f32 %v2970, %v2982
    %v2988 = vadd.f32 %v2971, %v2982
    %v2989 = vadd.f32 %v2972, %v2982
    %v2990 = vadd.f32 %v2973, %v2982
    %v2991 = vadd.f32 %v2974, %v2982
    %v2992 = vadd.f32 %v2975, %v2982
    %v2993 = vadd.f32 %v2976, %v2982
    %v2994 = vadd.f32 %v2977, %v2982
    %v2995 = vadd.f32 %v2978, %v2982
    %v2996 = vadd.f32 %v2979, %v2982
    %v2997 = vadd.f32 %v2980, %v2982
    %v2998 = vadd.f32 %v2981, %v2982
    %v2999 = vsub.f32 %v2983, %v1145
    %v3000 = vsub.f32 %v2984, %v1146
    %v3001 = vsub.f32 %v2985, %v1147
    %v3002 = vsub.f32 %v2986, %v1148
    %v3003 = vsub.f32 %v2987, %v1149
    %v3004 = vsub.f32 %v2988, %v1150
    %v3005 = vsub.f32 %v2989, %v1151
    %v3006 = vsub.f32 %v2990, %v1152
    %v3007 = vsub.f32 %v2991, %v1153
    %v3008 = vsub.f32 %v2992, %v1154
    %v3009 = vsub.f32 %v2993, %v1155
    %v3010 = vsub.f32 %v2994, %v1156
    %v3011 = vsub.f32 %v2995, %v1157
    %v3012 = vsub.f32 %v2996, %v1158
    %v3013 = vsub.f32 %v2997, %v1159
    %v3014 = vsub.f32 %v2998, %v1160
    %3015 = vxpose.xlu0.b32.start [1/16] %v2999, 128
    %3016 = vxpose.xlu0.b32.cont [2/16] %v3000, 128
    %3017 = vxpose.xlu0.b32.cont [3/16] %v3001, 128
    %3018 = vxpose.xlu0.b32.cont [4/16] %v3002, 128
    %3019 = vxpose.xlu0.b32.cont [5/16] %v3003, 128
    %3020 = vxpose.xlu0.b32.cont [6/16] %v3004, 128
    %3021 = vxpose.xlu0.b32.cont [7/16] %v3005, 128
    %3022 = vxpose.xlu0.b32.cont [8/16] %v3006, 128
    %3023 = vxpose.xlu0.b32.cont [9/16] %v3007, 128
    %3024 = vxpose.xlu0.b32.cont [10/16] %v3008, 128
    %3025 = vxpose.xlu0.b32.cont [11/16] %v3009, 128
    %3026 = vxpose.xlu0.b32.cont [12/16] %v3010, 128
    %3027 = vxpose.xlu0.b32.cont [13/16] %v3011, 128
    %3028 = vxpose.xlu0.b32.cont [14/16] %v3012, 128
    %3029 = vxpose.xlu0.b32.cont [15/16] %v3013, 128
    %3030 = vxpose.xlu0.b32.end [16/16] %v3014, 128
    %v3031 = vpop.trf.xlu0
    %v3032 = vpop.trf.xlu0
    %v3033 = vpop.trf.xlu0
    %v3034 = vpop.trf.xlu0
    %v3035 = vpop.trf.xlu0
    %v3036 = vpop.trf.xlu0
    %v3037 = vpop.trf.xlu0
    %v3038 = vpop.trf.xlu0
    %v3039 = vpop.trf.xlu0
    %v3040 = vpop.trf.xlu0
    %v3041 = vpop.trf.xlu0
    %v3042 = vpop.trf.xlu0
    %v3043 = vpop.trf.xlu0
    %v3044 = vpop.trf.xlu0
    %v3045 = vpop.trf.xlu0
    %v3046 = vpop.trf.xlu0
    %3047 = vmatpush.msra.mxu0 %v846
    %3048 = vmatpush.msra.mxu0 %v839
    %3049 = vmatpush.msra.mxu0 %v832
    %3050 = vmatpush.msra.mxu0 %v825
    %3051 = vmatpush.msra.mxu0 %v818
    %3052 = vmatpush.msra.mxu0 %v811
    %3053 = vmatpush.msra.mxu0 %v804
    %3054 = vmatpush.msra.mxu0 %v797
    %3055 = vmatpush.msra.mxu0 %v790
    %3056 = vmatpush.msra.mxu0 %v783
    %3057 = vmatpush.msra.mxu0 %v776
    %3058 = vmatpush.msra.mxu0 %v769
    %3059 = vmatpush.msra.mxu0 %v762
    %3060 = vmatpush.msra.mxu0 %v755
    %3061 = vmatpush.msra.mxu0 %v748
    %3062 = vmatpush.msra.mxu0 %v741
    %3063 = vmatmul.f32.gmra.mxu0 %v3031
    %v3064 = vpop.f32.mrf.mxu0
    %v3065 = vadd.f32 0.0, %v3064
    %3066 = vmatmul.f32.gmra.mxu0 %v3032
    %v3067 = vpop.f32.mrf.mxu0
    %v3068 = vadd.f32 0.0, %v3067
    %3069 = vmatmul.f32.gmra.mxu0 %v3033
    %v3070 = vpop.f32.mrf.mxu0
    %v3071 = vadd.f32 0.0, %v3070
    %3072 = vmatmul.f32.gmra.mxu0 %v3034
    %v3073 = vpop.f32.mrf.mxu0
    %v3074 = vadd.f32 0.0, %v3073
    %3075 = vdwg.mxu0
    %3076 = vmatpush.msra.mxu0 %v847
    %3077 = vmatpush.msra.mxu0 %v840
    %3078 = vmatpush.msra.mxu0 %v833
    %3079 = vmatpush.msra.mxu0 %v826
    %3080 = vmatpush.msra.mxu0 %v819
    %3081 = vmatpush.msra.mxu0 %v812
    %3082 = vmatpush.msra.mxu0 %v805
    %3083 = vmatpush.msra.mxu0 %v798
    %3084 = vmatpush.msra.mxu0 %v791
    %3085 = vmatpush.msra.mxu0 %v784
    %3086 = vmatpush.msra.mxu0 %v777
    %3087 = vmatpush.msra.mxu0 %v770
    %3088 = vmatpush.msra.mxu0 %v763
    %3089 = vmatpush.msra.mxu0 %v756
    %3090 = vmatpush.msra.mxu0 %v749
    %3091 = vmatpush.msra.mxu0 %v742
    %3092 = vmatmul.f32.gmra.mxu0 %v3031
    %v3093 = vpop.f32.mrf.mxu0
    %v3094 = vadd.f32 0.0, %v3093
    %3095 = vmatmul.f32.gmra.mxu0 %v3032
    %v3096 = vpop.f32.mrf.mxu0
    %v3097 = vadd.f32 0.0, %v3096
    %3098 = vmatmul.f32.gmra.mxu0 %v3033
    %v3099 = vpop.f32.mrf.mxu0
    %v3100 = vadd.f32 0.0, %v3099
    %3101 = vmatmul.f32.gmra.mxu0 %v3034
    %v3102 = vpop.f32.mrf.mxu0
    %v3103 = vadd.f32 0.0, %v3102
    %3104 = vdwg.mxu0
    %3105 = vmatpush.msra.mxu0 %v848
    %3106 = vmatpush.msra.mxu0 %v841
    %3107 = vmatpush.msra.mxu0 %v834
    %3108 = vmatpush.msra.mxu0 %v827
    %3109 = vmatpush.msra.mxu0 %v820
    %3110 = vmatpush.msra.mxu0 %v813
    %3111 = vmatpush.msra.mxu0 %v806
    %3112 = vmatpush.msra.mxu0 %v799
    %3113 = vmatpush.msra.mxu0 %v792
    %3114 = vmatpush.msra.mxu0 %v785
    %3115 = vmatpush.msra.mxu0 %v778
    %3116 = vmatpush.msra.mxu0 %v771
    %3117 = vmatpush.msra.mxu0 %v764
    %3118 = vmatpush.msra.mxu0 %v757
    %3119 = vmatpush.msra.mxu0 %v750
    %3120 = vmatpush.msra.mxu0 %v743
    %3121 = vmatmul.f32.gmra.mxu0 %v3031
    %v3122 = vpop.f32.mrf.mxu0
    %v3123 = vadd.f32 0.0, %v3122
    %3124 = vmatmul.f32.gmra.mxu0 %v3032
    %v3125 = vpop.f32.mrf.mxu0
    %v3126 = vadd.f32 0.0, %v3125
    %3127 = vmatmul.f32.gmra.mxu0 %v3033
    %v3128 = vpop.f32.mrf.mxu0
    %v3129 = vadd.f32 0.0, %v3128
    %3130 = vmatmul.f32.gmra.mxu0 %v3034
    %v3131 = vpop.f32.mrf.mxu0
    %v3132 = vadd.f32 0.0, %v3131
    %3133 = vdwg.mxu0
    %3134 = vmatpush.msra.mxu0 %v849
    %3135 = vmatpush.msra.mxu0 %v842
    %3136 = vmatpush.msra.mxu0 %v835
    %3137 = vmatpush.msra.mxu0 %v828
    %3138 = vmatpush.msra.mxu0 %v821
    %3139 = vmatpush.msra.mxu0 %v814
    %3140 = vmatpush.msra.mxu0 %v807
    %3141 = vmatpush.msra.mxu0 %v800
    %3142 = vmatpush.msra.mxu0 %v793
    %3143 = vmatpush.msra.mxu0 %v786
    %3144 = vmatpush.msra.mxu0 %v779
    %3145 = vmatpush.msra.mxu0 %v772
    %3146 = vmatpush.msra.mxu0 %v765
    %3147 = vmatpush.msra.mxu0 %v758
    %3148 = vmatpush.msra.mxu0 %v751
    %3149 = vmatpush.msra.mxu0 %v744
    %3150 = vmatmul.f32.gmra.mxu0 %v3031
    %v3151 = vpop.f32.mrf.mxu0
    %v3152 = vadd.f32 0.0, %v3151
    %3153 = vmatmul.f32.gmra.mxu0 %v3032
    %v3154 = vpop.f32.mrf.mxu0
    %v3155 = vadd.f32 0.0, %v3154
    %3156 = vmatmul.f32.gmra.mxu0 %v3033
    %v3157 = vpop.f32.mrf.mxu0
    %v3158 = vadd.f32 0.0, %v3157
    %3159 = vmatmul.f32.gmra.mxu0 %v3034
    %v3160 = vpop.f32.mrf.mxu0
    %v3161 = vadd.f32 0.0, %v3160
    %3162 = vdwg.mxu0
    %3163 = vmatpush.msra.mxu0 %v850
    %3164 = vmatpush.msra.mxu0 %v843
    %3165 = vmatpush.msra.mxu0 %v836
    %3166 = vmatpush.msra.mxu0 %v829
    %3167 = vmatpush.msra.mxu0 %v822
    %3168 = vmatpush.msra.mxu0 %v815
    %3169 = vmatpush.msra.mxu0 %v808
    %3170 = vmatpush.msra.mxu0 %v801
    %3171 = vmatpush.msra.mxu0 %v794
    %3172 = vmatpush.msra.mxu0 %v787
    %3173 = vmatpush.msra.mxu0 %v780
    %3174 = vmatpush.msra.mxu0 %v773
    %3175 = vmatpush.msra.mxu0 %v766
    %3176 = vmatpush.msra.mxu0 %v759
    %3177 = vmatpush.msra.mxu0 %v752
    %3178 = vmatpush.msra.mxu0 %v745
    %3179 = vmatmul.f32.gmra.mxu0 %v3031
    %v3180 = vpop.f32.mrf.mxu0
    %v3181 = vadd.f32 0.0, %v3180
    %3182 = vmatmul.f32.gmra.mxu0 %v3032
    %v3183 = vpop.f32.mrf.mxu0
    %v3184 = vadd.f32 0.0, %v3183
    %3185 = vmatmul.f32.gmra.mxu0 %v3033
    %v3186 = vpop.f32.mrf.mxu0
    %v3187 = vadd.f32 0.0, %v3186
    %3188 = vmatmul.f32.gmra.mxu0 %v3034
    %v3189 = vpop.f32.mrf.mxu0
    %v3190 = vadd.f32 0.0, %v3189
    %3191 = vdwg.mxu0
    %3192 = vmatpush.msra.mxu0 %v851
    %3193 = vmatpush.msra.mxu0 %v844
    %3194 = vmatpush.msra.mxu0 %v837
    %3195 = vmatpush.msra.mxu0 %v830
    %3196 = vmatpush.msra.mxu0 %v823
    %3197 = vmatpush.msra.mxu0 %v816
    %3198 = vmatpush.msra.mxu0 %v809
    %3199 = vmatpush.msra.mxu0 %v802
    %3200 = vmatpush.msra.mxu0 %v795
    %3201 = vmatpush.msra.mxu0 %v788
    %3202 = vmatpush.msra.mxu0 %v781
    %3203 = vmatpush.msra.mxu0 %v774
    %3204 = vmatpush.msra.mxu0 %v767
    %3205 = vmatpush.msra.mxu0 %v760
    %3206 = vmatpush.msra.mxu0 %v753
    %3207 = vmatpush.msra.mxu0 %v746
    %3208 = vmatmul.f32.gmra.mxu0 %v3031
    %v3209 = vpop.f32.mrf.mxu0
    %v3210 = vadd.f32 0.0, %v3209
    %3211 = vmatmul.f32.gmra.mxu0 %v3032
    %v3212 = vpop.f32.mrf.mxu0
    %v3213 = vadd.f32 0.0, %v3212
    %3214 = vmatmul.f32.gmra.mxu0 %v3033
    %v3215 = vpop.f32.mrf.mxu0
    %v3216 = vadd.f32 0.0, %v3215
    %3217 = vmatmul.f32.gmra.mxu0 %v3034
    %v3218 = vpop.f32.mrf.mxu0
    %v3219 = vadd.f32 0.0, %v3218
    %3220 = vdwg.mxu0
    %3221 = vmatpush.msra.mxu0 %v852
    %3222 = vmatpush.msra.mxu0 %v845
    %3223 = vmatpush.msra.mxu0 %v838
    %3224 = vmatpush.msra.mxu0 %v831
    %3225 = vmatpush.msra.mxu0 %v824
    %3226 = vmatpush.msra.mxu0 %v817
    %3227 = vmatpush.msra.mxu0 %v810
    %3228 = vmatpush.msra.mxu0 %v803
    %3229 = vmatpush.msra.mxu0 %v796
    %3230 = vmatpush.msra.mxu0 %v789
    %3231 = vmatpush.msra.mxu0 %v782
    %3232 = vmatpush.msra.mxu0 %v775
    %3233 = vmatpush.msra.mxu0 %v768
    %3234 = vmatpush.msra.mxu0 %v761
    %3235 = vmatpush.msra.mxu0 %v754
    %3236 = vmatpush.msra.mxu0 %v747
    %3237 = vmatmul.f32.gmra.mxu0 %v3031
    %v3238 = vpop.f32.mrf.mxu0
    %v3239 = vadd.f32 0.0, %v3238
    %3240 = vmatmul.f32.gmra.mxu0 %v3032
    %v3241 = vpop.f32.mrf.mxu0
    %v3242 = vadd.f32 0.0, %v3241
    %3243 = vmatmul.f32.gmra.mxu0 %v3033
    %v3244 = vpop.f32.mrf.mxu0
    %v3245 = vadd.f32 0.0, %v3244
    %3246 = vmatmul.f32.gmra.mxu0 %v3034
    %v3247 = vpop.f32.mrf.mxu0
    %v3248 = vadd.f32 0.0, %v3247
    %3249 = vdwg.mxu0
    %v3250 = vadd.f32 %v885, %v3065
    %v3251 = vadd.f32 %v886, %v3094
    %v3252 = vadd.f32 %v887, %v3123
    %v3253 = vadd.f32 %v888, %v3152
    %v3254 = vadd.f32 %v889, %v3181
    %v3255 = vadd.f32 %v890, %v3210
    %v3256 = vadd.f32 %v891, %v3239
    %v3257 = vadd.f32 %v892, %v3068
    %v3258 = vadd.f32 %v893, %v3097
    %v3259 = vadd.f32 %v894, %v3126
    %v3260 = vadd.f32 %v895, %v3155
    %v3261 = vadd.f32 %v896, %v3184
    %v3262 = vadd.f32 %v897, %v3213
    %v3263 = vadd.f32 %v898, %v3242
    %v3264 = vadd.f32 %v899, %v3071
    %v3265 = vadd.f32 %v900, %v3100
    %v3266 = vadd.f32 %v901, %v3129
    %v3267 = vadd.f32 %v902, %v3158
    %v3268 = vadd.f32 %v903, %v3187
    %v3269 = vadd.f32 %v904, %v3216
    %v3270 = vadd.f32 %v905, %v3245
    %v3271 = vadd.f32 %v906, %v3074
    %v3272 = vadd.f32 %v907, %v3103
    %v3273 = vadd.f32 %v908, %v3132
    %v3274 = vadd.f32 %v909, %v3161
    %v3275 = vadd.f32 %v910, %v3190
    %v3276 = vadd.f32 %v911, %v3219
    %v3277 = vadd.f32 %v912, %v3248
    %3278 = vst [vmem:[#allocation5] sm:$0xff] %v3250
    %3279 = vst [vmem:[#allocation5 + $0x8] sm:$0xff] %v3251
    %3280 = vst [vmem:[#allocation5 + $0x10] sm:$0xff] %v3252
    %3281 = vst [vmem:[#allocation5 + $0x18] sm:$0xff] %v3253
    %3282 = vst [vmem:[#allocation5 + $0x20] sm:$0xff] %v3254
    %3283 = vst [vmem:[#allocation5 + $0x28] sm:$0xff] %v3255
    %3284 = vst.msk [vmem:[#allocation5 + $0x30] sm:$0xff] %vm913, %v3256
    %3285 = vst [vmem:[#allocation5 + $0x38] sm:$0xff] %v3257
    %3286 = vst [vmem:[#allocation5 + $0x40] sm:$0xff] %v3258
    %3287 = vst [vmem:[#allocation5 + $0x48] sm:$0xff] %v3259
    %3288 = vst [vmem:[#allocation5 + $0x50] sm:$0xff] %v3260
    %3289 = vst [vmem:[#allocation5 + $0x58] sm:$0xff] %v3261
    %3290 = vst [vmem:[#allocation5 + $0x60] sm:$0xff] %v3262
    %3291 = vst.msk [vmem:[#allocation5 + $0x68] sm:$0xff] %vm913, %v3263
    %3292 = vst [vmem:[#allocation5 + $0x70] sm:$0xff] %v3264
    %3293 = vst [vmem:[#allocation5 + $0x78] sm:$0xff] %v3265
    %3294 = vst [vmem:[#allocation5 + $0x80] sm:$0xff] %v3266
    %3295 = vst [vmem:[#allocation5 + $0x88] sm:$0xff] %v3267
    %3296 = vst [vmem:[#allocation5 + $0x90] sm:$0xff] %v3268
    %3297 = vst [vmem:[#allocation5 + $0x98] sm:$0xff] %v3269
    %3298 = vst.msk [vmem:[#allocation5 + $0xa0] sm:$0xff] %vm913, %v3270
    %3299 = vst [vmem:[#allocation5 + $0xa8] sm:$0xff] %v3271
    %3300 = vst [vmem:[#allocation5 + $0xb0] sm:$0xff] %v3272
    %3301 = vst [vmem:[#allocation5 + $0xb8] sm:$0xff] %v3273
    %3302 = vst [vmem:[#allocation5 + $0xc0] sm:$0xff] %v3274
    %3303 = vst [vmem:[#allocation5 + $0xc8] sm:$0xff] %v3275
    %3304 = vst [vmem:[#allocation5 + $0xd0] sm:$0xff] %v3276
    %3305 = vst.msk [vmem:[#allocation5 + $0xd8] sm:$0xff] %vm913, %v3277
    %s3306 = scalar_lea.vmem [#allocation2], 224
    %v3307 = vld [vmem:[%s3306] sm:$0xff]
    %v3308 = vld [vmem:[%s3306 + $0x8] sm:$0xff]
    %v3309 = vld [vmem:[%s3306 + $0x10] sm:$0xff]
    %v3310 = vld [vmem:[%s3306 + $0x18] sm:$0xff]
    %v3311 = vld [vmem:[%s3306 + $0x20] sm:$0xff]
    %v3312 = vld [vmem:[%s3306 + $0x28] sm:$0xff]
    %v3313 = vld [vmem:[%s3306 + $0x30] sm:$0xff]
    %v3314 = vld [vmem:[%s3306 + $0x38] sm:$0xff]
    %v3315 = vld [vmem:[%s3306 + $0x40] sm:$0xff]
    %v3316 = vld [vmem:[%s3306 + $0x48] sm:$0xff]
    %v3317 = vld [vmem:[%s3306 + $0x50] sm:$0xff]
    %v3318 = vld [vmem:[%s3306 + $0x58] sm:$0xff]
    %v3319 = vld [vmem:[%s3306 + $0x60] sm:$0xff]
    %v3320 = vld [vmem:[%s3306 + $0x68] sm:$0xff]
    %v3321 = vld [vmem:[%s3306 + $0x70] sm:$0xff]
    %v3322 = vld [vmem:[%s3306 + $0x78] sm:$0xff]
    %v3323 = vld [vmem:[%s3306 + $0x80] sm:$0xff]
    %v3324 = vld [vmem:[%s3306 + $0x88] sm:$0xff]
    %v3325 = vld [vmem:[%s3306 + $0x90] sm:$0xff]
    %v3326 = vld [vmem:[%s3306 + $0x98] sm:$0xff]
    %v3327 = vld [vmem:[%s3306 + $0xa0] sm:$0xff]
    %v3328 = vld [vmem:[%s3306 + $0xa8] sm:$0xff]
    %v3329 = vld [vmem:[%s3306 + $0xb0] sm:$0xff]
    %v3330 = vld [vmem:[%s3306 + $0xb8] sm:$0xff]
    %v3331 = vld [vmem:[%s3306 + $0xc0] sm:$0xff]
    %v3332 = vld [vmem:[%s3306 + $0xc8] sm:$0xff]
    %v3333 = vld [vmem:[%s3306 + $0xd0] sm:$0xff]
    %v3334 = vld [vmem:[%s3306 + $0xd8] sm:$0xff]
    %v3336 = vsel %vm913, %v3313, 0
    %v3339 = vsel %vm913, %v3320, 0
    %v3342 = vsel %vm913, %v3327, 0
    %v3345 = vsel %vm913, %v3334, 0
    %3347 = vmatpush.msra.mxu0 %v362
    %3348 = vmatpush.msra.mxu0 %v361
    %3349 = vmatpush.msra.mxu0 %v360
    %3350 = vmatpush.msra.mxu0 %v359
    %3351 = vmatpush.msra.mxu0 %v358
    %3352 = vmatpush.msra.mxu0 %v357
    %3353 = vmatpush.msra.mxu0 %v356
    %3354 = vmatpush.msra.mxu0 %v355
    %3355 = vmatpush.msra.mxu0 %v354
    %3356 = vmatpush.msra.mxu0 %v353
    %3357 = vmatpush.msra.mxu0 %v352
    %3358 = vmatpush.msra.mxu0 %v351
    %3359 = vmatpush.msra.mxu0 %v350
    %3360 = vmatpush.msra.mxu0 %v349
    %3361 = vmatpush.msra.mxu0 %v348
    %3362 = vmatpush.msra.mxu0 %v347
    %3363 = vmatmul.f32.gmra.mxu0 %v3307
    %v3364 = vpop.f32.mrf.mxu0
    %v3365 = vadd.f32 0.0, %v3364
    %3366 = vmatmul.f32.gmra.mxu0 %v3314
    %v3367 = vpop.f32.mrf.mxu0
    %v3368 = vadd.f32 0.0, %v3367
    %3369 = vmatmul.f32.gmra.mxu0 %v3321
    %v3370 = vpop.f32.mrf.mxu0
    %v3371 = vadd.f32 0.0, %v3370
    %3372 = vmatmul.f32.gmra.mxu0 %v3328
    %v3373 = vpop.f32.mrf.mxu0
    %v3374 = vadd.f32 0.0, %v3373
    %3375 = vdwg.mxu0
    %3376 = vmatpush.msra.mxu0 %v378
    %3377 = vmatpush.msra.mxu0 %v377
    %3378 = vmatpush.msra.mxu0 %v376
    %3379 = vmatpush.msra.mxu0 %v375
    %3380 = vmatpush.msra.mxu0 %v374
    %3381 = vmatpush.msra.mxu0 %v373
    %3382 = vmatpush.msra.mxu0 %v372
    %3383 = vmatpush.msra.mxu0 %v371
    %3384 = vmatpush.msra.mxu0 %v370
    %3385 = vmatpush.msra.mxu0 %v369
    %3386 = vmatpush.msra.mxu0 %v368
    %3387 = vmatpush.msra.mxu0 %v367
    %3388 = vmatpush.msra.mxu0 %v366
    %3389 = vmatpush.msra.mxu0 %v365
    %3390 = vmatpush.msra.mxu0 %v364
    %3391 = vmatpush.msra.mxu0 %v363
    %3392 = vmatmul.f32.gmra.mxu0 %v3308
    %v3393 = vpop.f32.mrf.mxu0
    %v3394 = vadd.f32 %v3365, %v3393
    %3395 = vmatmul.f32.gmra.mxu0 %v3315
    %v3396 = vpop.f32.mrf.mxu0
    %v3397 = vadd.f32 %v3368, %v3396
    %3398 = vmatmul.f32.gmra.mxu0 %v3322
    %v3399 = vpop.f32.mrf.mxu0
    %v3400 = vadd.f32 %v3371, %v3399
    %3401 = vmatmul.f32.gmra.mxu0 %v3329
    %v3402 = vpop.f32.mrf.mxu0
    %v3403 = vadd.f32 %v3374, %v3402
    %3404 = vdwg.mxu0
    %3405 = vmatpush.msra.mxu0 %v394
    %3406 = vmatpush.msra.mxu0 %v393
    %3407 = vmatpush.msra.mxu0 %v392
    %3408 = vmatpush.msra.mxu0 %v391
    %3409 = vmatpush.msra.mxu0 %v390
    %3410 = vmatpush.msra.mxu0 %v389
    %3411 = vmatpush.msra.mxu0 %v388
    %3412 = vmatpush.msra.mxu0 %v387
    %3413 = vmatpush.msra.mxu0 %v386
    %3414 = vmatpush.msra.mxu0 %v385
    %3415 = vmatpush.msra.mxu0 %v384
    %3416 = vmatpush.msra.mxu0 %v383
    %3417 = vmatpush.msra.mxu0 %v382
    %3418 = vmatpush.msra.mxu0 %v381
    %3419 = vmatpush.msra.mxu0 %v380
    %3420 = vmatpush.msra.mxu0 %v379
    %3421 = vmatmul.f32.gmra.mxu0 %v3309
    %v3422 = vpop.f32.mrf.mxu0
    %v3423 = vadd.f32 %v3394, %v3422
    %3424 = vmatmul.f32.gmra.mxu0 %v3316
    %v3425 = vpop.f32.mrf.mxu0
    %v3426 = vadd.f32 %v3397, %v3425
    %3427 = vmatmul.f32.gmra.mxu0 %v3323
    %v3428 = vpop.f32.mrf.mxu0
    %v3429 = vadd.f32 %v3400, %v3428
    %3430 = vmatmul.f32.gmra.mxu0 %v3330
    %v3431 = vpop.f32.mrf.mxu0
    %v3432 = vadd.f32 %v3403, %v3431
    %3433 = vdwg.mxu0
    %3434 = vmatpush.msra.mxu0 %v410
    %3435 = vmatpush.msra.mxu0 %v409
    %3436 = vmatpush.msra.mxu0 %v408
    %3437 = vmatpush.msra.mxu0 %v407
    %3438 = vmatpush.msra.mxu0 %v406
    %3439 = vmatpush.msra.mxu0 %v405
    %3440 = vmatpush.msra.mxu0 %v404
    %3441 = vmatpush.msra.mxu0 %v403
    %3442 = vmatpush.msra.mxu0 %v402
    %3443 = vmatpush.msra.mxu0 %v401
    %3444 = vmatpush.msra.mxu0 %v400
    %3445 = vmatpush.msra.mxu0 %v399
    %3446 = vmatpush.msra.mxu0 %v398
    %3447 = vmatpush.msra.mxu0 %v397
    %3448 = vmatpush.msra.mxu0 %v396
    %3449 = vmatpush.msra.mxu0 %v395
    %3450 = vmatmul.f32.gmra.mxu0 %v3310
    %v3451 = vpop.f32.mrf.mxu0
    %v3452 = vadd.f32 %v3423, %v3451
    %3453 = vmatmul.f32.gmra.mxu0 %v3317
    %v3454 = vpop.f32.mrf.mxu0
    %v3455 = vadd.f32 %v3426, %v3454
    %3456 = vmatmul.f32.gmra.mxu0 %v3324
    %v3457 = vpop.f32.mrf.mxu0
    %v3458 = vadd.f32 %v3429, %v3457
    %3459 = vmatmul.f32.gmra.mxu0 %v3331
    %v3460 = vpop.f32.mrf.mxu0
    %v3461 = vadd.f32 %v3432, %v3460
    %3462 = vdwg.mxu0
    %3463 = vmatpush.msra.mxu0 %v426
    %3464 = vmatpush.msra.mxu0 %v425
    %3465 = vmatpush.msra.mxu0 %v424
    %3466 = vmatpush.msra.mxu0 %v423
    %3467 = vmatpush.msra.mxu0 %v422
    %3468 = vmatpush.msra.mxu0 %v421
    %3469 = vmatpush.msra.mxu0 %v420
    %3470 = vmatpush.msra.mxu0 %v419
    %3471 = vmatpush.msra.mxu0 %v418
    %3472 = vmatpush.msra.mxu0 %v417
    %3473 = vmatpush.msra.mxu0 %v416
    %3474 = vmatpush.msra.mxu0 %v415
    %3475 = vmatpush.msra.mxu0 %v414
    %3476 = vmatpush.msra.mxu0 %v413
    %3477 = vmatpush.msra.mxu0 %v412
    %3478 = vmatpush.msra.mxu0 %v411
    %3479 = vmatmul.f32.gmra.mxu0 %v3311
    %v3480 = vpop.f32.mrf.mxu0
    %v3481 = vadd.f32 %v3452, %v3480
    %3482 = vmatmul.f32.gmra.mxu0 %v3318
    %v3483 = vpop.f32.mrf.mxu0
    %v3484 = vadd.f32 %v3455, %v3483
    %3485 = vmatmul.f32.gmra.mxu0 %v3325
    %v3486 = vpop.f32.mrf.mxu0
    %v3487 = vadd.f32 %v3458, %v3486
    %3488 = vmatmul.f32.gmra.mxu0 %v3332
    %v3489 = vpop.f32.mrf.mxu0
    %v3490 = vadd.f32 %v3461, %v3489
    %3491 = vdwg.mxu0
    %3492 = vmatpush.msra.mxu0 %v442
    %3493 = vmatpush.msra.mxu0 %v441
    %3494 = vmatpush.msra.mxu0 %v440
    %3495 = vmatpush.msra.mxu0 %v439
    %3496 = vmatpush.msra.mxu0 %v438
    %3497 = vmatpush.msra.mxu0 %v437
    %3498 = vmatpush.msra.mxu0 %v436
    %3499 = vmatpush.msra.mxu0 %v435
    %3500 = vmatpush.msra.mxu0 %v434
    %3501 = vmatpush.msra.mxu0 %v433
    %3502 = vmatpush.msra.mxu0 %v432
    %3503 = vmatpush.msra.mxu0 %v431
    %3504 = vmatpush.msra.mxu0 %v430
    %3505 = vmatpush.msra.mxu0 %v429
    %3506 = vmatpush.msra.mxu0 %v428
    %3507 = vmatpush.msra.mxu0 %v427
    %3508 = vmatmul.f32.gmra.mxu0 %v3312
    %v3509 = vpop.f32.mrf.mxu0
    %v3510 = vadd.f32 %v3481, %v3509
    %3511 = vmatmul.f32.gmra.mxu0 %v3319
    %v3512 = vpop.f32.mrf.mxu0
    %v3513 = vadd.f32 %v3484, %v3512
    %3514 = vmatmul.f32.gmra.mxu0 %v3326
    %v3515 = vpop.f32.mrf.mxu0
    %v3516 = vadd.f32 %v3487, %v3515
    %3517 = vmatmul.f32.gmra.mxu0 %v3333
    %v3518 = vpop.f32.mrf.mxu0
    %v3519 = vadd.f32 %v3490, %v3518
    %3520 = vdwg.mxu0
    %3521 = vmatpush.msra.mxu0 0.0
    %3522 = vmatpush.msra.mxu0 0.0
    %3523 = vmatpush.msra.mxu0 0.0
    %3524 = vmatpush.msra.mxu0 0.0
    %3525 = vmatpush.msra.mxu0 0.0
    %3526 = vmatpush.msra.mxu0 0.0
    %3527 = vmatpush.msra.mxu0 0.0
    %3528 = vmatpush.msra.mxu0 0.0
    %3529 = vmatpush.msra.mxu0 0.0
    %3530 = vmatpush.msra.mxu0 0.0
    %3531 = vmatpush.msra.mxu0 0.0
    %3532 = vmatpush.msra.mxu0 0.0
    %3533 = vmatpush.msra.mxu0 0.0
    %3534 = vmatpush.msra.mxu0 0.0
    %3535 = vmatpush.msra.mxu0 %v444
    %3536 = vmatpush.msra.mxu0 %v443
    %3537 = vmatmul.f32.gmra.mxu0 %v3336
    %v3538 = vpop.f32.mrf.mxu0
    %v3539 = vadd.f32 %v3510, %v3538
    %3540 = vmatmul.f32.gmra.mxu0 %v3339
    %v3541 = vpop.f32.mrf.mxu0
    %v3542 = vadd.f32 %v3513, %v3541
    %3543 = vmatmul.f32.gmra.mxu0 %v3342
    %v3544 = vpop.f32.mrf.mxu0
    %v3545 = vadd.f32 %v3516, %v3544
    %3546 = vmatmul.f32.gmra.mxu0 %v3345
    %v3547 = vpop.f32.mrf.mxu0
    %v3548 = vadd.f32 %v3519, %v3547
    %3549 = vdwg.mxu0
    %3550 = vxpose.xlu0.b32.start [1/16] %v3539, 128
    %3551 = vxpose.xlu0.b32.cont [2/16] %v3542, 128
    %3552 = vxpose.xlu0.b32.cont [3/16] %v3545, 128
    %3553 = vxpose.xlu0.b32.cont [4/16] %v3548, 128
    %3554 = vxpose.xlu0.b32.cont [5/16] 0.0, 128
    %3555 = vxpose.xlu0.b32.cont [6/16] 0.0, 128
    %3556 = vxpose.xlu0.b32.cont [7/16] 0.0, 128
    %3557 = vxpose.xlu0.b32.cont [8/16] 0.0, 128
    %3558 = vxpose.xlu0.b32.cont [9/16] 0.0, 128
    %3559 = vxpose.xlu0.b32.cont [10/16] 0.0, 128
    %3560 = vxpose.xlu0.b32.cont [11/16] 0.0, 128
    %3561 = vxpose.xlu0.b32.cont [12/16] 0.0, 128
    %3562 = vxpose.xlu0.b32.cont [13/16] 0.0, 128
    %3563 = vxpose.xlu0.b32.cont [14/16] 0.0, 128
    %3564 = vxpose.xlu0.b32.cont [15/16] 0.0, 128
    %3565 = vxpose.xlu0.b32.end [16/16] 0.0, 128
    %v3566 = vpop.trf.xlu0
    %v3567 = vpop.trf.xlu0
    %v3568 = vpop.trf.xlu0
    %v3569 = vpop.trf.xlu0
    %v3570 = vpop.trf.xlu0
    %v3571 = vpop.trf.xlu0
    %v3572 = vpop.trf.xlu0
    %v3573 = vpop.trf.xlu0
    %v3574 = vpop.trf.xlu0
    %v3575 = vpop.trf.xlu0
    %v3576 = vpop.trf.xlu0
    %v3577 = vpop.trf.xlu0
    %v3578 = vpop.trf.xlu0
    %v3579 = vpop.trf.xlu0
    %v3580 = vpop.trf.xlu0
    %v3581 = vpop.trf.xlu0
    %v3582 = vadd.f32 %v3566, %v853
    %v3583 = vadd.f32 %v3567, %v854
    %v3584 = vadd.f32 %v3568, %v855
    %v3585 = vadd.f32 %v3569, %v856
    %v3586 = vadd.f32 %v3570, %v857
    %v3587 = vadd.f32 %v3571, %v858
    %v3588 = vadd.f32 %v3572, %v859
    %v3589 = vadd.f32 %v3573, %v860
    %v3590 = vadd.f32 %v3574, %v861
    %v3591 = vadd.f32 %v3575, %v862
    %v3592 = vadd.f32 %v3576, %v863
    %v3593 = vadd.f32 %v3577, %v864
    %v3594 = vadd.f32 %v3578, %v865
    %v3595 = vadd.f32 %v3579, %v866
    %v3596 = vadd.f32 %v3580, %v867
    %v3597 = vadd.f32 %v3581, %v868
    %v3598 = vpack.c.bf16 %v3583, %v3582
    %v3599 = vpack.c.bf16 %v3585, %v3584
    %v3600 = vpack.c.bf16 %v3587, %v3586
    %v3601 = vpack.c.bf16 %v3589, %v3588
    %v3602 = vpack.c.bf16 %v3591, %v3590
    %v3603 = vpack.c.bf16 %v3593, %v3592
    %v3604 = vpack.c.bf16 %v3595, %v3594
    %v3605 = vpack.c.bf16 %v3597, %v3596
    %v3607 = vsel %vm1198, %v3598, 0
    %v3610 = vsel %vm1198, %v3599, 0
    %v3613 = vsel %vm1198, %v3600, 0
    %v3616 = vsel %vm1198, %v3601, 0
    %v3619 = vsel %vm1198, %v3602, 0
    %v3622 = vsel %vm1198, %v3603, 0
    %v3625 = vsel %vm1198, %v3604, 0
    %v3628 = vsel %vm1198, %v3605, 0
    %3630 = vmatpush.bf16.msra.mxu0 0
    %3631 = vmatpush.bf16.msra.mxu0 0
    %3632 = vmatpush.bf16.msra.mxu0 0
    %3633 = vmatpush.bf16.msra.mxu0 0
    %3634 = vmatpush.bf16.msra.mxu0 0
    %3635 = vmatpush.bf16.msra.mxu0 0
    %3636 = vmatpush.bf16.msra.mxu0 %v1195
    %3637 = vmatpush.bf16.msra.mxu0 %v1194
    %3638 = vmatmul.bf16.gmra.mxu0 %v3607
    %v3639 = vpop.f32.mrf.mxu0
    %v3640 = vadd.f32 %v1185, %v3639
    %v3641 = vpop.f32.mrf.mxu0
    %v3642 = vadd.f32 %v1185, %v3641
    %3643 = vmatmul.bf16.gmra.mxu0 %v3610
    %v3644 = vpop.f32.mrf.mxu0
    %v3645 = vadd.f32 %v1185, %v3644
    %v3646 = vpop.f32.mrf.mxu0
    %v3647 = vadd.f32 %v1185, %v3646
    %3648 = vmatmul.bf16.gmra.mxu0 %v3613
    %v3649 = vpop.f32.mrf.mxu0
    %v3650 = vadd.f32 %v1185, %v3649
    %v3651 = vpop.f32.mrf.mxu0
    %v3652 = vadd.f32 %v1185, %v3651
    %3653 = vmatmul.bf16.gmra.mxu0 %v3616
    %v3654 = vpop.f32.mrf.mxu0
    %v3655 = vadd.f32 %v1185, %v3654
    %v3656 = vpop.f32.mrf.mxu0
    %v3657 = vadd.f32 %v1185, %v3656
    %3658 = vmatmul.bf16.gmra.mxu0 %v3619
    %v3659 = vpop.f32.mrf.mxu0
    %v3660 = vadd.f32 %v1185, %v3659
    %v3661 = vpop.f32.mrf.mxu0
    %v3662 = vadd.f32 %v1185, %v3661
    %3663 = vmatmul.bf16.gmra.mxu0 %v3622
    %v3664 = vpop.f32.mrf.mxu0
    %v3665 = vadd.f32 %v1185, %v3664
    %v3666 = vpop.f32.mrf.mxu0
    %v3667 = vadd.f32 %v1185, %v3666
    %3668 = vmatmul.bf16.gmra.mxu0 %v3625
    %v3669 = vpop.f32.mrf.mxu0
    %v3670 = vadd.f32 %v1185, %v3669
    %v3671 = vpop.f32.mrf.mxu0
    %v3672 = vadd.f32 %v1185, %v3671
    %3673 = vmatmul.bf16.gmra.mxu0 %v3628
    %v3674 = vpop.f32.mrf.mxu0
    %v3675 = vadd.f32 %v1185, %v3674
    %v3676 = vpop.f32.mrf.mxu0
    %v3677 = vadd.f32 %v1185, %v3676
    %3678 = vdwg.mxu0
    %3679 = vmatpush.bf16.msra.mxu0 0
    %3680 = vmatpush.bf16.msra.mxu0 0
    %3681 = vmatpush.bf16.msra.mxu0 0
    %3682 = vmatpush.bf16.msra.mxu0 0
    %3683 = vmatpush.bf16.msra.mxu0 0
    %3684 = vmatpush.bf16.msra.mxu0 0
    %3685 = vmatpush.bf16.msra.mxu0 %v1282
    %3686 = vmatpush.bf16.msra.mxu0 %v1281
    %3687 = vmatmul.bf16.gmra.mxu0 %v3607
    %v3688 = vpop.f32.mrf.mxu0
    %v3689 = vadd.f32 %v1272, %v3688
    %v3690 = vpop.f32.mrf.mxu0
    %v3691 = vadd.f32 %v1272, %v3690
    %3692 = vmatmul.bf16.gmra.mxu0 %v3610
    %v3693 = vpop.f32.mrf.mxu0
    %v3694 = vadd.f32 %v1272, %v3693
    %v3695 = vpop.f32.mrf.mxu0
    %v3696 = vadd.f32 %v1272, %v3695
    %3697 = vmatmul.bf16.gmra.mxu0 %v3613
    %v3698 = vpop.f32.mrf.mxu0
    %v3699 = vadd.f32 %v1272, %v3698
    %v3700 = vpop.f32.mrf.mxu0
    %v3701 = vadd.f32 %v1272, %v3700
    %3702 = vmatmul.bf16.gmra.mxu0 %v3616
    %v3703 = vpop.f32.mrf.mxu0
    %v3704 = vadd.f32 %v1272, %v3703
    %v3705 = vpop.f32.mrf.mxu0
    %v3706 = vadd.f32 %v1272, %v3705
    %3707 = vmatmul.bf16.gmra.mxu0 %v3619
    %v3708 = vpop.f32.mrf.mxu0
    %v3709 = vadd.f32 %v1272, %v3708
    %v3710 = vpop.f32.mrf.mxu0
    %v3711 = vadd.f32 %v1272, %v3710
    %3712 = vmatmul.bf16.gmra.mxu0 %v3622
    %v3713 = vpop.f32.mrf.mxu0
    %v3714 = vadd.f32 %v1272, %v3713
    %v3715 = vpop.f32.mrf.mxu0
    %v3716 = vadd.f32 %v1272, %v3715
    %3717 = vmatmul.bf16.gmra.mxu0 %v3625
    %v3718 = vpop.f32.mrf.mxu0
    %v3719 = vadd.f32 %v1272, %v3718
    %v3720 = vpop.f32.mrf.mxu0
    %v3721 = vadd.f32 %v1272, %v3720
    %3722 = vmatmul.bf16.gmra.mxu0 %v3628
    %v3723 = vpop.f32.mrf.mxu0
    %v3724 = vadd.f32 %v1272, %v3723
    %v3725 = vpop.f32.mrf.mxu0
    %v3726 = vadd.f32 %v1272, %v3725
    %3727 = vdwg.mxu0
    %3728 = vmatpush.bf16.msra.mxu0 0
    %3729 = vmatpush.bf16.msra.mxu0 0
    %3730 = vmatpush.bf16.msra.mxu0 0
    %3731 = vmatpush.bf16.msra.mxu0 0
    %3732 = vmatpush.bf16.msra.mxu0 0
    %3733 = vmatpush.bf16.msra.mxu0 0
    %3734 = vmatpush.bf16.msra.mxu0 %v1344
    %3735 = vmatpush.bf16.msra.mxu0 %v1343
    %3736 = vmatmul.bf16.gmra.mxu0 %v3607
    %v3737 = vpop.f32.mrf.mxu0
    %v3738 = vadd.f32 %v1334, %v3737
    %v3739 = vpop.f32.mrf.mxu0
    %v3740 = vadd.f32 %v1334, %v3739
    %3741 = vmatmul.bf16.gmra.mxu0 %v3610
    %v3742 = vpop.f32.mrf.mxu0
    %v3743 = vadd.f32 %v1334, %v3742
    %v3744 = vpop.f32.mrf.mxu0
    %v3745 = vadd.f32 %v1334, %v3744
    %3746 = vmatmul.bf16.gmra.mxu0 %v3613
    %v3747 = vpop.f32.mrf.mxu0
    %v3748 = vadd.f32 %v1334, %v3747
    %v3749 = vpop.f32.mrf.mxu0
    %v3750 = vadd.f32 %v1334, %v3749
    %3751 = vmatmul.bf16.gmra.mxu0 %v3616
    %v3752 = vpop.f32.mrf.mxu0
    %v3753 = vadd.f32 %v1334, %v3752
    %v3754 = vpop.f32.mrf.mxu0
    %v3755 = vadd.f32 %v1334, %v3754
    %3756 = vmatmul.bf16.gmra.mxu0 %v3619
    %v3757 = vpop.f32.mrf.mxu0
    %v3758 = vadd.f32 %v1334, %v3757
    %v3759 = vpop.f32.mrf.mxu0
    %v3760 = vadd.f32 %v1334, %v3759
    %3761 = vmatmul.bf16.gmra.mxu0 %v3622
    %v3762 = vpop.f32.mrf.mxu0
    %v3763 = vadd.f32 %v1334, %v3762
    %v3764 = vpop.f32.mrf.mxu0
    %v3765 = vadd.f32 %v1334, %v3764
    %3766 = vmatmul.bf16.gmra.mxu0 %v3625
    %v3767 = vpop.f32.mrf.mxu0
    %v3768 = vadd.f32 %v1334, %v3767
    %v3769 = vpop.f32.mrf.mxu0
    %v3770 = vadd.f32 %v1334, %v3769
    %3771 = vmatmul.bf16.gmra.mxu0 %v3628
    %v3772 = vpop.f32.mrf.mxu0
    %v3773 = vadd.f32 %v1334, %v3772
    %v3774 = vpop.f32.mrf.mxu0
    %v3775 = vadd.f32 %v1334, %v3774
    %3776 = vdwg.mxu0
    %v3777 = vpack.c.bf16 %v3642, %v3640
    %v3778 = vpack.c.bf16 %v3647, %v3645
    %v3779 = vpack.c.bf16 %v3652, %v3650
    %v3780 = vpack.c.bf16 %v3657, %v3655
    %v3781 = vpack.c.bf16 %v3662, %v3660
    %v3782 = vpack.c.bf16 %v3667, %v3665
    %v3783 = vpack.c.bf16 %v3672, %v3670
    %v3784 = vpack.c.bf16 %v3677, %v3675
    %3785 = vxpose.xlu0.b32.start [1/16] %v3689, 128
    %3786 = vxpose.xlu0.b32.cont [2/16] %v3691, 128
    %3787 = vxpose.xlu0.b32.cont [3/16] %v3694, 128
    %3788 = vxpose.xlu0.b32.cont [4/16] %v3696, 128
    %3789 = vxpose.xlu0.b32.cont [5/16] %v3699, 128
    %3790 = vxpose.xlu0.b32.cont [6/16] %v3701, 128
    %3791 = vxpose.xlu0.b32.cont [7/16] %v3704, 128
    %3792 = vxpose.xlu0.b32.cont [8/16] %v3706, 128
    %3793 = vxpose.xlu0.b32.cont [9/16] %v3709, 128
    %3794 = vxpose.xlu0.b32.cont [10/16] %v3711, 128
    %3795 = vxpose.xlu0.b32.cont [11/16] %v3714, 128
    %3796 = vxpose.xlu0.b32.cont [12/16] %v3716, 128
    %3797 = vxpose.xlu0.b32.cont [13/16] %v3719, 128
    %3798 = vxpose.xlu0.b32.cont [14/16] %v3721, 128
    %3799 = vxpose.xlu0.b32.cont [15/16] %v3724, 128
    %3800 = vxpose.xlu0.b32.end [16/16] %v3726, 128
    %v3801 = vpop.trf.xlu0
    %v3802 = vpop.trf.xlu0
    %v3803 = vpop.trf.xlu0
    %v3804 = vpop.trf.xlu0
    %v3805 = vpop.trf.xlu0
    %v3806 = vpop.trf.xlu0
    %v3807 = vpop.trf.xlu0
    %v3808 = vpop.trf.xlu0
    %v3809 = vpop.trf.xlu0
    %v3810 = vpop.trf.xlu0
    %v3811 = vpop.trf.xlu0
    %v3812 = vpop.trf.xlu0
    %v3813 = vpop.trf.xlu0
    %v3814 = vpop.trf.xlu0
    %v3815 = vpop.trf.xlu0
    %v3816 = vpop.trf.xlu0
    loop: start=0, step=1, limit=4
    $region49: #{tpu_custom_call.1} parent=1 // loop_pre_header
      _
    $region50: #{tpu_custom_call.1} parent=1 // loop_header
      %s3818 = sphi 0, %s3822
      %p3819 = scmp.ge.s32.totalorder %s3818, 4
      %v3823 = vphi 0.0, %v4162
      %v3824 = vphi 0.0, %v4163
      %v3825 = vphi 0.0, %v4164
      %v3826 = vphi 0.0, %v4165
      %v3827 = vphi 0.0, %v4166
      %v3828 = vphi 0.0, %v4167
      %v3829 = vphi 0.0, %v4168
      %v3830 = vphi 0.0, %v4169
      %v3831 = vphi 0.0, %v4170
      %v3832 = vphi 0.0, %v4171
      %v3833 = vphi 0.0, %v4172
      %v3834 = vphi 0.0, %v4173
      %v3835 = vphi 0.0, %v4174
      %v3836 = vphi 0.0, %v4175
      %v3837 = vphi 0.0, %v4176
      %v3838 = vphi 0.0, %v4177
    $region51: #{tpu_custom_call.1} parent=1 // loop_header_branch
      %3821 = sbr.rel (%p3819) target = $region55
    $region52: #{tpu_custom_call.1} parent=1 // loop_body
      %s3839 = smul.u32 %s3818, 8
      %s3840 = sadd.s32 %s3839, 8
      %v3841 = vstv %s3839
      %vm3842 = vcmp.ge.s32.totalorder %v51, %v3841
      %vm3843 = vcmp.ge.s32.totalorder %v52, %v3841
      %vm3844 = vcmp.ge.s32.totalorder %v53, %v3841
      %vm3845 = vcmp.ge.s32.totalorder %v54, %v3841
      %v3846 = vstv %s3840
      %vm3847 = vcmp.lt.s32.totalorder %v51, %v3846
      %vm3848 = vcmp.lt.s32.totalorder %v52, %v3846
      %vm3849 = vcmp.lt.s32.totalorder %v53, %v3846
      %vm3850 = vcmp.lt.s32.totalorder %v54, %v3846
      %vm3851 = vmand %vm3842, %vm3847
      %vm3852 = vmand %vm3843, %vm3848
      %vm3853 = vmand %vm3844, %vm3849
      %vm3854 = vmand %vm3845, %vm3850
      %v3855 = vsel %vm3851, %v3801, 0.0
      %v3856 = vsel %vm3852, %v3802, 0.0
      %v3857 = vsel %vm3853, %v3803, 0.0
      %v3858 = vsel %vm3854, %v3804, 0.0
      %v3859 = vpack.c.bf16 %v3856, %v3855
      %v3860 = vpack.c.bf16 %v3858, %v3857
      %vm3861 = vcmp.ge.s32.totalorder %v446, %v3841
      %vm3862 = vcmp.lt.s32.totalorder %v446, %v3846
      %vm3863 = vmand %vm3861, %vm3862
      %v3864 = vsel %vm3863, %v3738, 0.0
      %v3865 = vsel %vm3863, %v3740, 0.0
      %v3866 = vsel %vm3863, %v3743, 0.0
      %v3867 = vsel %vm3863, %v3745, 0.0
      %v3868 = vsel %vm3863, %v3748, 0.0
      %v3869 = vsel %vm3863, %v3750, 0.0
      %v3870 = vsel %vm3863, %v3753, 0.0
      %v3871 = vsel %vm3863, %v3755, 0.0
      %v3872 = vsel %vm3863, %v3758, 0.0
      %v3873 = vsel %vm3863, %v3760, 0.0
      %v3874 = vsel %vm3863, %v3763, 0.0
      %v3875 = vsel %vm3863, %v3765, 0.0
      %v3876 = vsel %vm3863, %v3768, 0.0
      %v3877 = vsel %vm3863, %v3770, 0.0
      %v3878 = vsel %vm3863, %v3773, 0.0
      %v3879 = vsel %vm3863, %v3775, 0.0
      %v3880 = vpack.c.bf16 %v3865, %v3864
      %v3881 = vpack.c.bf16 %v3867, %v3866
      %v3882 = vpack.c.bf16 %v3869, %v3868
      %v3883 = vpack.c.bf16 %v3871, %v3870
      %v3884 = vpack.c.bf16 %v3873, %v3872
      %v3885 = vpack.c.bf16 %v3875, %v3874
      %v3886 = vpack.c.bf16 %v3877, %v3876
      %v3887 = vpack.c.bf16 %v3879, %v3878
      %v3889 = vsel %vm1198, %v3777, 0
      %v3892 = vsel %vm1198, %v3778, 0
      %v3895 = vsel %vm1198, %v3779, 0
      %v3898 = vsel %vm1198, %v3780, 0
      %v3901 = vsel %vm1198, %v3781, 0
      %v3904 = vsel %vm1198, %v3782, 0
      %v3907 = vsel %vm1198, %v3783, 0
      %v3910 = vsel %vm1198, %v3784, 0
      %3912 = vmatpush.bf16.msra.mxu0 0
      %3913 = vmatpush.bf16.msra.mxu0 0
      %3914 = vmatpush.bf16.msra.mxu0 0
      %3915 = vmatpush.bf16.msra.mxu0 0
      %3916 = vmatpush.bf16.msra.mxu0 0
      %3917 = vmatpush.bf16.msra.mxu0 0
      %3918 = vmatpush.bf16.msra.mxu0 %v3860
      %3919 = vmatpush.bf16.msra.mxu0 %v3859
      %3920 = vmatmul.bf16.gmra.mxu0 %v3889
      %v3921 = vpop.f32.mrf.mxu0
      %v3922 = vadd.f32 0.0, %v3921
      %v3923 = vpop.f32.mrf.mxu0
      %v3924 = vadd.f32 0.0, %v3923
      %3925 = vmatmul.bf16.gmra.mxu0 %v3892
      %v3926 = vpop.f32.mrf.mxu0
      %v3927 = vadd.f32 0.0, %v3926
      %v3928 = vpop.f32.mrf.mxu0
      %v3929 = vadd.f32 0.0, %v3928
      %3930 = vmatmul.bf16.gmra.mxu0 %v3895
      %v3931 = vpop.f32.mrf.mxu0
      %v3932 = vadd.f32 0.0, %v3931
      %v3933 = vpop.f32.mrf.mxu0
      %v3934 = vadd.f32 0.0, %v3933
      %3935 = vmatmul.bf16.gmra.mxu0 %v3898
      %v3936 = vpop.f32.mrf.mxu0
      %v3937 = vadd.f32 0.0, %v3936
      %v3938 = vpop.f32.mrf.mxu0
      %v3939 = vadd.f32 0.0, %v3938
      %3940 = vmatmul.bf16.gmra.mxu0 %v3901
      %v3941 = vpop.f32.mrf.mxu0
      %v3942 = vadd.f32 0.0, %v3941
      %v3943 = vpop.f32.mrf.mxu0
      %v3944 = vadd.f32 0.0, %v3943
      %3945 = vmatmul.bf16.gmra.mxu0 %v3904
      %v3946 = vpop.f32.mrf.mxu0
      %v3947 = vadd.f32 0.0, %v3946
      %v3948 = vpop.f32.mrf.mxu0
      %v3949 = vadd.f32 0.0, %v3948
      %3950 = vmatmul.bf16.gmra.mxu0 %v3907
      %v3951 = vpop.f32.mrf.mxu0
      %v3952 = vadd.f32 0.0, %v3951
      %v3953 = vpop.f32.mrf.mxu0
      %v3954 = vadd.f32 0.0, %v3953
      %3955 = vmatmul.bf16.gmra.mxu0 %v3910
      %v3956 = vpop.f32.mrf.mxu0
      %v3957 = vadd.f32 0.0, %v3956
      %v3958 = vpop.f32.mrf.mxu0
      %v3959 = vadd.f32 0.0, %v3958
      %3960 = vdwg.mxu0
      %3961 = vmax.xlane.f32.xlu0 %v3922
      %v3962 = vpop.xlane.xlu0 %3961
      %3963 = vmax.xlane.f32.xlu0 %v3924
      %v3964 = vpop.xlane.xlu0 %3963
      %3965 = vmax.xlane.f32.xlu0 %v3927
      %v3966 = vpop.xlane.xlu0 %3965
      %3967 = vmax.xlane.f32.xlu0 %v3929
      %v3968 = vpop.xlane.xlu0 %3967
      %3969 = vmax.xlane.f32.xlu0 %v3932
      %v3970 = vpop.xlane.xlu0 %3969
      %3971 = vmax.xlane.f32.xlu0 %v3934
      %v3972 = vpop.xlane.xlu0 %3971
      %3973 = vmax.xlane.f32.xlu0 %v3937
      %v3974 = vpop.xlane.xlu0 %3973
      %3975 = vmax.xlane.f32.xlu0 %v3939
      %v3976 = vpop.xlane.xlu0 %3975
      %3977 = vmax.xlane.f32.xlu0 %v3942
      %v3978 = vpop.xlane.xlu0 %3977
      %3979 = vmax.xlane.f32.xlu0 %v3944
      %v3980 = vpop.xlane.xlu0 %3979
      %3981 = vmax.xlane.f32.xlu0 %v3947
      %v3982 = vpop.xlane.xlu0 %3981
      %3983 = vmax.xlane.f32.xlu0 %v3949
      %v3984 = vpop.xlane.xlu0 %3983
      %3985 = vmax.xlane.f32.xlu0 %v3952
      %v3986 = vpop.xlane.xlu0 %3985
      %3987 = vmax.xlane.f32.xlu0 %v3954
      %v3988 = vpop.xlane.xlu0 %3987
      %3989 = vmax.xlane.f32.xlu0 %v3957
      %v3990 = vpop.xlane.xlu0 %3989
      %3991 = vmax.xlane.f32.xlu0 %v3959
      %v3992 = vpop.xlane.xlu0 %3991
      %v3993 = vsub.f32 %v3922, %v3962
      %v3994 = vsub.f32 %v3924, %v3964
      %v3995 = vsub.f32 %v3927, %v3966
      %v3996 = vsub.f32 %v3929, %v3968
      %v3997 = vsub.f32 %v3932, %v3970
      %v3998 = vsub.f32 %v3934, %v3972
      %v3999 = vsub.f32 %v3937, %v3974
      %v4000 = vsub.f32 %v3939, %v3976
      %v4001 = vsub.f32 %v3942, %v3978
      %v4002 = vsub.f32 %v3944, %v3980
      %v4003 = vsub.f32 %v3947, %v3982
      %v4004 = vsub.f32 %v3949, %v3984
      %v4005 = vsub.f32 %v3952, %v3986
      %v4006 = vsub.f32 %v3954, %v3988
      %v4007 = vsub.f32 %v3957, %v3990
      %v4008 = vsub.f32 %v3959, %v3992
      %v4009 = vmul.f32 %v3993, 1.442695
      %v4010 = vpow.pop %v4009
      %v4011 = vmul.f32 %v3994, 1.442695
      %v4012 = vpow.pop %v4011
      %v4013 = vmul.f32 %v3995, 1.442695
      %v4014 = vpow.pop %v4013
      %v4015 = vmul.f32 %v3996, 1.442695
      %v4016 = vpow.pop %v4015
      %v4017 = vmul.f32 %v3997, 1.442695
      %v4018 = vpow.pop %v4017
      %v4019 = vmul.f32 %v3998, 1.442695
      %v4020 = vpow.pop %v4019
      %v4021 = vmul.f32 %v3999, 1.442695
      %v4022 = vpow.pop %v4021
      %v4023 = vmul.f32 %v4000, 1.442695
      %v4024 = vpow.pop %v4023
      %v4025 = vmul.f32 %v4001, 1.442695
      %v4026 = vpow.pop %v4025
      %v4027 = vmul.f32 %v4002, 1.442695
      %v4028 = vpow.pop %v4027
      %v4029 = vmul.f32 %v4003, 1.442695
      %v4030 = vpow.pop %v4029
      %v4031 = vmul.f32 %v4004, 1.442695
      %v4032 = vpow.pop %v4031
      %v4033 = vmul.f32 %v4005, 1.442695
      %v4034 = vpow.pop %v4033
      %v4035 = vmul.f32 %v4006, 1.442695
      %v4036 = vpow.pop %v4035
      %v4037 = vmul.f32 %v4007, 1.442695
      %v4038 = vpow.pop %v4037
      %v4039 = vmul.f32 %v4008, 1.442695
      %v4040 = vpow.pop %v4039
      %4041 = vadd.xlane.f32.xlu0 %v4010
      %v4042 = vpop.xlane.xlu0 %4041
      %4043 = vadd.xlane.f32.xlu0 %v4012
      %v4044 = vpop.xlane.xlu0 %4043
      %4045 = vadd.xlane.f32.xlu0 %v4014
      %v4046 = vpop.xlane.xlu0 %4045
      %4047 = vadd.xlane.f32.xlu0 %v4016
      %v4048 = vpop.xlane.xlu0 %4047
      %4049 = vadd.xlane.f32.xlu0 %v4018
      %v4050 = vpop.xlane.xlu0 %4049
      %4051 = vadd.xlane.f32.xlu0 %v4020
      %v4052 = vpop.xlane.xlu0 %4051
      %4053 = vadd.xlane.f32.xlu0 %v4022
      %v4054 = vpop.xlane.xlu0 %4053
      %4055 = vadd.xlane.f32.xlu0 %v4024
      %v4056 = vpop.xlane.xlu0 %4055
      %4057 = vadd.xlane.f32.xlu0 %v4026
      %v4058 = vpop.xlane.xlu0 %4057
      %4059 = vadd.xlane.f32.xlu0 %v4028
      %v4060 = vpop.xlane.xlu0 %4059
      %4061 = vadd.xlane.f32.xlu0 %v4030
      %v4062 = vpop.xlane.xlu0 %4061
      %4063 = vadd.xlane.f32.xlu0 %v4032
      %v4064 = vpop.xlane.xlu0 %4063
      %4065 = vadd.xlane.f32.xlu0 %v4034
      %v4066 = vpop.xlane.xlu0 %4065
      %4067 = vadd.xlane.f32.xlu0 %v4036
      %v4068 = vpop.xlane.xlu0 %4067
      %4069 = vadd.xlane.f32.xlu0 %v4038
      %v4070 = vpop.xlane.xlu0 %4069
      %4071 = vadd.xlane.f32.xlu0 %v4040
      %v4072 = vpop.xlane.xlu0 %4071
      %v4073 = vrcp.pop %v4042
      %v4074 = vrcp.pop %v4044
      %v4075 = vrcp.pop %v4046
      %v4076 = vrcp.pop %v4048
      %v4077 = vrcp.pop %v4050
      %v4078 = vrcp.pop %v4052
      %v4079 = vrcp.pop %v4054
      %v4080 = vrcp.pop %v4056
      %v4081 = vrcp.pop %v4058
      %v4082 = vrcp.pop %v4060
      %v4083 = vrcp.pop %v4062
      %v4084 = vrcp.pop %v4064
      %v4085 = vrcp.pop %v4066
      %v4086 = vrcp.pop %v4068
      %v4087 = vrcp.pop %v4070
      %v4088 = vrcp.pop %v4072
      %v4089 = vmul.f32 %v4010, %v4073
      %v4090 = vmul.f32 %v4012, %v4074
      %v4091 = vmul.f32 %v4014, %v4075
      %v4092 = vmul.f32 %v4016, %v4076
      %v4093 = vmul.f32 %v4018, %v4077
      %v4094 = vmul.f32 %v4020, %v4078
      %v4095 = vmul.f32 %v4022, %v4079
      %v4096 = vmul.f32 %v4024, %v4080
      %v4097 = vmul.f32 %v4026, %v4081
      %v4098 = vmul.f32 %v4028, %v4082
      %v4099 = vmul.f32 %v4030, %v4083
      %v4100 = vmul.f32 %v4032, %v4084
      %v4101 = vmul.f32 %v4034, %v4085
      %v4102 = vmul.f32 %v4036, %v4086
      %v4103 = vmul.f32 %v4038, %v4087
      %v4104 = vmul.f32 %v4040, %v4088
      %v4105 = vpack.c.bf16 %v4090, %v4089
      %v4106 = vpack.c.bf16 %v4092, %v4091
      %v4107 = vpack.c.bf16 %v4094, %v4093
      %v4108 = vpack.c.bf16 %v4096, %v4095
      %v4109 = vpack.c.bf16 %v4098, %v4097
      %v4110 = vpack.c.bf16 %v4100, %v4099
      %v4111 = vpack.c.bf16 %v4102, %v4101
      %v4112 = vpack.c.bf16 %v4104, %v4103
      %4113 = vmatpush.bf16.msra.mxu0 %v3887
      %4114 = vmatpush.bf16.msra.mxu0 %v3886
      %4115 = vmatpush.bf16.msra.mxu0 %v3885
      %4116 = vmatpush.bf16.msra.mxu0 %v3884
      %4117 = vmatpush.bf16.msra.mxu0 %v3883
      %4118 = vmatpush.bf16.msra.mxu0 %v3882
      %4119 = vmatpush.bf16.msra.mxu0 %v3881
      %4120 = vmatpush.bf16.msra.mxu0 %v3880
      %4121 = vmatmul.bf16.gmra.mxu0 %v4105
      %v4122 = vpop.f32.mrf.mxu0
      %v4123 = vadd.f32 0.0, %v4122
      %v4124 = vpop.f32.mrf.mxu0
      %v4125 = vadd.f32 0.0, %v4124
      %4126 = vmatmul.bf16.gmra.mxu0 %v4106
      %v4127 = vpop.f32.mrf.mxu0
      %v4128 = vadd.f32 0.0, %v4127
      %v4129 = vpop.f32.mrf.mxu0
      %v4130 = vadd.f32 0.0, %v4129
      %4131 = vmatmul.bf16.gmra.mxu0 %v4107
      %v4132 = vpop.f32.mrf.mxu0
      %v4133 = vadd.f32 0.0, %v4132
      %v4134 = vpop.f32.mrf.mxu0
      %v4135 = vadd.f32 0.0, %v4134
      %4136 = vmatmul.bf16.gmra.mxu0 %v4108
      %v4137 = vpop.f32.mrf.mxu0
      %v4138 = vadd.f32 0.0, %v4137
      %v4139 = vpop.f32.mrf.mxu0
      %v4140 = vadd.f32 0.0, %v4139
      %4141 = vmatmul.bf16.gmra.mxu0 %v4109
      %v4142 = vpop.f32.mrf.mxu0
      %v4143 = vadd.f32 0.0, %v4142
      %v4144 = vpop.f32.mrf.mxu0
      %v4145 = vadd.f32 0.0, %v4144
      %4146 = vmatmul.bf16.gmra.mxu0 %v4110
      %v4147 = vpop.f32.mrf.mxu0
      %v4148 = vadd.f32 0.0, %v4147
      %v4149 = vpop.f32.mrf.mxu0
      %v4150 = vadd.f32 0.0, %v4149
      %4151 = vmatmul.bf16.gmra.mxu0 %v4111
      %v4152 = vpop.f32.mrf.mxu0
      %v4153 = vadd.f32 0.0, %v4152
      %v4154 = vpop.f32.mrf.mxu0
      %v4155 = vadd.f32 0.0, %v4154
      %4156 = vmatmul.bf16.gmra.mxu0 %v4112
      %v4157 = vpop.f32.mrf.mxu0
      %v4158 = vadd.f32 0.0, %v4157
      %v4159 = vpop.f32.mrf.mxu0
      %v4160 = vadd.f32 0.0, %v4159
      %4161 = vdwg.mxu0
      %v4162 = vadd.f32 %v3823, %v4123
      %v4163 = vadd.f32 %v3824, %v4125
      %v4164 = vadd.f32 %v3825, %v4128
      %v4165 = vadd.f32 %v3826, %v4130
      %v4166 = vadd.f32 %v3827, %v4133
      %v4167 = vadd.f32 %v3828, %v4135
      %v4168 = vadd.f32 %v3829, %v4138
      %v4169 = vadd.f32 %v3830, %v4140
      %v4170 = vadd.f32 %v3831, %v4143
      %v4171 = vadd.f32 %v3832, %v4145
      %v4172 = vadd.f32 %v3833, %v4148
      %v4173 = vadd.f32 %v3834, %v4150
      %v4174 = vadd.f32 %v3835, %v4153
      %v4175 = vadd.f32 %v3836, %v4155
      %v4176 = vadd.f32 %v3837, %v4158
      %v4177 = vadd.f32 %v3838, %v4160
    $region53: #{tpu_custom_call.1} parent=1 // loop_footer
      %s3822 = sadd.s32 1, %s3818
    $region54: #{tpu_custom_call.1} parent=1 // loop_footer_branch
      %3817 = sbr.rel target = $region50
    $region55: #{tpu_custom_call.1} parent=1 // loop_exit
      _
    %v4178 = vpack.c.bf16 %v3824, %v3823
    %v4179 = vpack.c.bf16 %v3826, %v3825
    %v4180 = vpack.c.bf16 %v3828, %v3827
    %v4181 = vpack.c.bf16 %v3830, %v3829
    %v4182 = vpack.c.bf16 %v3832, %v3831
    %v4183 = vpack.c.bf16 %v3834, %v3833
    %v4184 = vpack.c.bf16 %v3836, %v3835
    %v4185 = vpack.c.bf16 %v3838, %v3837
    %v4186 = vld [vmem:[%s5] sm:$0xf]
    %v4187 = vld [vmem:[%s5 + $0x4] sm:$0xf]
    %v4188 = vld [vmem:[%s5 + $0x8] sm:$0xf]
    %v4189 = vld [vmem:[%s5 + $0xc] sm:$0xf]
    %v4194 = vunpack.c.l.b16 %v4186
    %v4195 = vunpack.c.l.b16 %v4187
    %v4196 = vunpack.c.l.b16 %v4188
    %v4197 = vunpack.c.l.b16 %v4189
    %v4198 = vpack.c.b16 %v4195, %v4194
    %v4199 = vpack.c.b16 %v4197, %v4196
    %v4203 = vsel %vm1198, %v4178, 0
    %v4206 = vsel %vm1198, %v4179, 0
    %v4209 = vsel %vm1198, %v4180, 0
    %v4212 = vsel %vm1198, %v4181, 0
    %v4215 = vsel %vm1198, %v4182, 0
    %v4218 = vsel %vm1198, %v4183, 0
    %v4221 = vsel %vm1198, %v4184, 0
    %v4224 = vsel %vm1198, %v4185, 0
    %4226 = vmatpush.bf16.msra.mxu0 0
    %4227 = vmatpush.bf16.msra.mxu0 0
    %4228 = vmatpush.bf16.msra.mxu0 0
    %4229 = vmatpush.bf16.msra.mxu0 0
    %4230 = vmatpush.bf16.msra.mxu0 0
    %4231 = vmatpush.bf16.msra.mxu0 0
    %4232 = vmatpush.bf16.msra.mxu0 %v4199
    %4233 = vmatpush.bf16.msra.mxu0 %v4198
    %4234 = vmatmul.bf16.gmra.mxu0 %v4203
    %v4235 = vpop.f32.mrf.mxu0
    %v4236 = vadd.f32 %v1809, %v4235
    %v4237 = vpop.f32.mrf.mxu0
    %v4238 = vadd.f32 %v1809, %v4237
    %4239 = vmatmul.bf16.gmra.mxu0 %v4206
    %v4240 = vpop.f32.mrf.mxu0
    %v4241 = vadd.f32 %v1809, %v4240
    %v4242 = vpop.f32.mrf.mxu0
    %v4243 = vadd.f32 %v1809, %v4242
    %4244 = vmatmul.bf16.gmra.mxu0 %v4209
    %v4245 = vpop.f32.mrf.mxu0
    %v4246 = vadd.f32 %v1809, %v4245
    %v4247 = vpop.f32.mrf.mxu0
    %v4248 = vadd.f32 %v1809, %v4247
    %4249 = vmatmul.bf16.gmra.mxu0 %v4212
    %v4250 = vpop.f32.mrf.mxu0
    %v4251 = vadd.f32 %v1809, %v4250
    %v4252 = vpop.f32.mrf.mxu0
    %v4253 = vadd.f32 %v1809, %v4252
    %4254 = vmatmul.bf16.gmra.mxu0 %v4215
    %v4255 = vpop.f32.mrf.mxu0
    %v4256 = vadd.f32 %v1809, %v4255
    %v4257 = vpop.f32.mrf.mxu0
    %v4258 = vadd.f32 %v1809, %v4257
    %4259 = vmatmul.bf16.gmra.mxu0 %v4218
    %v4260 = vpop.f32.mrf.mxu0
    %v4261 = vadd.f32 %v1809, %v4260
    %v4262 = vpop.f32.mrf.mxu0
    %v4263 = vadd.f32 %v1809, %v4262
    %4264 = vmatmul.bf16.gmra.mxu0 %v4221
    %v4265 = vpop.f32.mrf.mxu0
    %v4266 = vadd.f32 %v1809, %v4265
    %v4267 = vpop.f32.mrf.mxu0
    %v4268 = vadd.f32 %v1809, %v4267
    %4269 = vmatmul.bf16.gmra.mxu0 %v4224
    %v4270 = vpop.f32.mrf.mxu0
    %v4271 = vadd.f32 %v1809, %v4270
    %v4272 = vpop.f32.mrf.mxu0
    %v4273 = vadd.f32 %v1809, %v4272
    %4274 = vdwg.mxu0
    %v4275 = vadd.f32 %v3582, %v4236
    %v4276 = vadd.f32 %v3583, %v4238
    %v4277 = vadd.f32 %v3584, %v4241
    %v4278 = vadd.f32 %v3585, %v4243
    %v4279 = vadd.f32 %v3586, %v4246
    %v4280 = vadd.f32 %v3587, %v4248
    %v4281 = vadd.f32 %v3588, %v4251
    %v4282 = vadd.f32 %v3589, %v4253
    %v4283 = vadd.f32 %v3590, %v4256
    %v4284 = vadd.f32 %v3591, %v4258
    %v4285 = vadd.f32 %v3592, %v4261
    %v4286 = vadd.f32 %v3593, %v4263
    %v4287 = vadd.f32 %v3594, %v4266
    %v4288 = vadd.f32 %v3595, %v4268
    %v4289 = vadd.f32 %v3596, %v4271
    %v4290 = vadd.f32 %v3597, %v4273
    %v4291 = vsel %vm1198, %v4275, 0.0
    %4292 = vadd.xlane.f32.xlu0 %v4291
    %v4293 = vpop.xlane.xlu0 %4292
    %v4294 = vsel %vm1198, %v4276, 0.0
    %4295 = vadd.xlane.f32.xlu0 %v4294
    %v4296 = vpop.xlane.xlu0 %4295
    %v4297 = vsel %vm1198, %v4277, 0.0
    %4298 = vadd.xlane.f32.xlu0 %v4297
    %v4299 = vpop.xlane.xlu0 %4298
    %v4300 = vsel %vm1198, %v4278, 0.0
    %4301 = vadd.xlane.f32.xlu0 %v4300
    %v4302 = vpop.xlane.xlu0 %4301
    %v4303 = vsel %vm1198, %v4279, 0.0
    %4304 = vadd.xlane.f32.xlu0 %v4303
    %v4305 = vpop.xlane.xlu0 %4304
    %v4306 = vsel %vm1198, %v4280, 0.0
    %4307 = vadd.xlane.f32.xlu0 %v4306
    %v4308 = vpop.xlane.xlu0 %4307
    %v4309 = vsel %vm1198, %v4281, 0.0
    %4310 = vadd.xlane.f32.xlu0 %v4309
    %v4311 = vpop.xlane.xlu0 %4310
    %v4312 = vsel %vm1198, %v4282, 0.0
    %4313 = vadd.xlane.f32.xlu0 %v4312
    %v4314 = vpop.xlane.xlu0 %4313
    %v4315 = vsel %vm1198, %v4283, 0.0
    %4316 = vadd.xlane.f32.xlu0 %v4315
    %v4317 = vpop.xlane.xlu0 %4316
    %v4318 = vsel %vm1198, %v4284, 0.0
    %4319 = vadd.xlane.f32.xlu0 %v4318
    %v4320 = vpop.xlane.xlu0 %4319
    %v4321 = vsel %vm1198, %v4285, 0.0
    %4322 = vadd.xlane.f32.xlu0 %v4321
    %v4323 = vpop.xlane.xlu0 %4322
    %v4324 = vsel %vm1198, %v4286, 0.0
    %4325 = vadd.xlane.f32.xlu0 %v4324
    %v4326 = vpop.xlane.xlu0 %4325
    %v4327 = vsel %vm1198, %v4287, 0.0
    %4328 = vadd.xlane.f32.xlu0 %v4327
    %v4329 = vpop.xlane.xlu0 %4328
    %v4330 = vsel %vm1198, %v4288, 0.0
    %4331 = vadd.xlane.f32.xlu0 %v4330
    %v4332 = vpop.xlane.xlu0 %4331
    %v4333 = vsel %vm1198, %v4289, 0.0
    %4334 = vadd.xlane.f32.xlu0 %v4333
    %v4335 = vpop.xlane.xlu0 %4334
    %v4336 = vsel %vm1198, %v4290, 0.0
    %4337 = vadd.xlane.f32.xlu0 %v4336
    %v4338 = vpop.xlane.xlu0 %4337
    %v4339 = vmul.f32 %v4293, %v1965
    %v4340 = vmul.f32 %v4296, %v1965
    %v4341 = vmul.f32 %v4299, %v1965
    %v4342 = vmul.f32 %v4302, %v1965
    %v4343 = vmul.f32 %v4305, %v1965
    %v4344 = vmul.f32 %v4308, %v1965
    %v4345 = vmul.f32 %v4311, %v1965
    %v4346 = vmul.f32 %v4314, %v1965
    %v4347 = vmul.f32 %v4317, %v1965
    %v4348 = vmul.f32 %v4320, %v1965
    %v4349 = vmul.f32 %v4323, %v1965
    %v4350 = vmul.f32 %v4326, %v1965
    %v4351 = vmul.f32 %v4329, %v1965
    %v4352 = vmul.f32 %v4332, %v1965
    %v4353 = vmul.f32 %v4335, %v1965
    %v4354 = vmul.f32 %v4338, %v1965
    %v4355 = vmul.f32 %v4275, %v4275
    %v4356 = vmul.f32 %v4276, %v4276
    %v4357 = vmul.f32 %v4277, %v4277
    %v4358 = vmul.f32 %v4278, %v4278
    %v4359 = vmul.f32 %v4279, %v4279
    %v4360 = vmul.f32 %v4280, %v4280
    %v4361 = vmul.f32 %v4281, %v4281
    %v4362 = vmul.f32 %v4282, %v4282
    %v4363 = vmul.f32 %v4283, %v4283
    %v4364 = vmul.f32 %v4284, %v4284
    %v4365 = vmul.f32 %v4285, %v4285
    %v4366 = vmul.f32 %v4286, %v4286
    %v4367 = vmul.f32 %v4287, %v4287
    %v4368 = vmul.f32 %v4288, %v4288
    %v4369 = vmul.f32 %v4289, %v4289
    %v4370 = vmul.f32 %v4290, %v4290
    %v4371 = vsel %vm1198, %v4355, 0.0
    %4372 = vadd.xlane.f32.xlu0 %v4371
    %v4373 = vpop.xlane.xlu0 %4372
    %v4374 = vsel %vm1198, %v4356, 0.0
    %4375 = vadd.xlane.f32.xlu0 %v4374
    %v4376 = vpop.xlane.xlu0 %4375
    %v4377 = vsel %vm1198, %v4357, 0.0
    %4378 = vadd.xlane.f32.xlu0 %v4377
    %v4379 = vpop.xlane.xlu0 %4378
    %v4380 = vsel %vm1198, %v4358, 0.0
    %4381 = vadd.xlane.f32.xlu0 %v4380
    %v4382 = vpop.xlane.xlu0 %4381
    %v4383 = vsel %vm1198, %v4359, 0.0
    %4384 = vadd.xlane.f32.xlu0 %v4383
    %v4385 = vpop.xlane.xlu0 %4384
    %v4386 = vsel %vm1198, %v4360, 0.0
    %4387 = vadd.xlane.f32.xlu0 %v4386
    %v4388 = vpop.xlane.xlu0 %4387
    %v4389 = vsel %vm1198, %v4361, 0.0
    %4390 = vadd.xlane.f32.xlu0 %v4389
    %v4391 = vpop.xlane.xlu0 %4390
    %v4392 = vsel %vm1198, %v4362, 0.0
    %4393 = vadd.xlane.f32.xlu0 %v4392
    %v4394 = vpop.xlane.xlu0 %4393
    %v4395 = vsel %vm1198, %v4363, 0.0
    %4396 = vadd.xlane.f32.xlu0 %v4395
    %v4397 = vpop.xlane.xlu0 %4396
    %v4398 = vsel %vm1198, %v4364, 0.0
    %4399 = vadd.xlane.f32.xlu0 %v4398
    %v4400 = vpop.xlane.xlu0 %4399
    %v4401 = vsel %vm1198, %v4365, 0.0
    %4402 = vadd.xlane.f32.xlu0 %v4401
    %v4403 = vpop.xlane.xlu0 %4402
    %v4404 = vsel %vm1198, %v4366, 0.0
    %4405 = vadd.xlane.f32.xlu0 %v4404
    %v4406 = vpop.xlane.xlu0 %4405
    %v4407 = vsel %vm1198, %v4367, 0.0
    %4408 = vadd.xlane.f32.xlu0 %v4407
    %v4409 = vpop.xlane.xlu0 %4408
    %v4410 = vsel %vm1198, %v4368, 0.0
    %4411 = vadd.xlane.f32.xlu0 %v4410
    %v4412 = vpop.xlane.xlu0 %4411
    %v4413 = vsel %vm1198, %v4369, 0.0
    %4414 = vadd.xlane.f32.xlu0 %v4413
    %v4415 = vpop.xlane.xlu0 %4414
    %v4416 = vsel %vm1198, %v4370, 0.0
    %4417 = vadd.xlane.f32.xlu0 %v4416
    %v4418 = vpop.xlane.xlu0 %4417
    %v4419 = vmul.f32 %v4373, %v1965
    %v4420 = vmul.f32 %v4376, %v1965
    %v4421 = vmul.f32 %v4379, %v1965
    %v4422 = vmul.f32 %v4382, %v1965
    %v4423 = vmul.f32 %v4385, %v1965
    %v4424 = vmul.f32 %v4388, %v1965
    %v4425 = vmul.f32 %v4391, %v1965
    %v4426 = vmul.f32 %v4394, %v1965
    %v4427 = vmul.f32 %v4397, %v1965
    %v4428 = vmul.f32 %v4400, %v1965
    %v4429 = vmul.f32 %v4403, %v1965
    %v4430 = vmul.f32 %v4406, %v1965
    %v4431 = vmul.f32 %v4409, %v1965
    %v4432 = vmul.f32 %v4412, %v1965
    %v4433 = vmul.f32 %v4415, %v1965
    %v4434 = vmul.f32 %v4418, %v1965
    %v4435 = vsub.f32 %v4275, %v4339
    %v4436 = vsub.f32 %v4276, %v4340
    %v4437 = vsub.f32 %v4277, %v4341
    %v4438 = vsub.f32 %v4278, %v4342
    %v4439 = vsub.f32 %v4279, %v4343
    %v4440 = vsub.f32 %v4280, %v4344
    %v4441 = vsub.f32 %v4281, %v4345
    %v4442 = vsub.f32 %v4282, %v4346
    %v4443 = vsub.f32 %v4283, %v4347
    %v4444 = vsub.f32 %v4284, %v4348
    %v4445 = vsub.f32 %v4285, %v4349
    %v4446 = vsub.f32 %v4286, %v4350
    %v4447 = vsub.f32 %v4287, %v4351
    %v4448 = vsub.f32 %v4288, %v4352
    %v4449 = vsub.f32 %v4289, %v4353
    %v4450 = vsub.f32 %v4290, %v4354
    %v4451 = vmul.f32 %v4339, %v4339
    %v4452 = vmul.f32 %v4340, %v4340
    %v4453 = vmul.f32 %v4341, %v4341
    %v4454 = vmul.f32 %v4342, %v4342
    %v4455 = vmul.f32 %v4343, %v4343
    %v4456 = vmul.f32 %v4344, %v4344
    %v4457 = vmul.f32 %v4345, %v4345
    %v4458 = vmul.f32 %v4346, %v4346
    %v4459 = vmul.f32 %v4347, %v4347
    %v4460 = vmul.f32 %v4348, %v4348
    %v4461 = vmul.f32 %v4349, %v4349
    %v4462 = vmul.f32 %v4350, %v4350
    %v4463 = vmul.f32 %v4351, %v4351
    %v4464 = vmul.f32 %v4352, %v4352
    %v4465 = vmul.f32 %v4353, %v4353
    %v4466 = vmul.f32 %v4354, %v4354
    %v4467 = vsub.f32 %v4419, %v4451
    %v4468 = vsub.f32 %v4420, %v4452
    %v4469 = vsub.f32 %v4421, %v4453
    %v4470 = vsub.f32 %v4422, %v4454
    %v4471 = vsub.f32 %v4423, %v4455
    %v4472 = vsub.f32 %v4424, %v4456
    %v4473 = vsub.f32 %v4425, %v4457
    %v4474 = vsub.f32 %v4426, %v4458
    %v4475 = vsub.f32 %v4427, %v4459
    %v4476 = vsub.f32 %v4428, %v4460
    %v4477 = vsub.f32 %v4429, %v4461
    %v4478 = vsub.f32 %v4430, %v4462
    %v4479 = vsub.f32 %v4431, %v4463
    %v4480 = vsub.f32 %v4432, %v4464
    %v4481 = vsub.f32 %v4433, %v4465
    %v4482 = vsub.f32 %v4434, %v4466
    %v4483 = vadd.f32 %v4467, 1e-05
    %v4484 = vadd.f32 %v4468, 1e-05
    %v4485 = vadd.f32 %v4469, 1e-05
    %v4486 = vadd.f32 %v4470, 1e-05
    %v4487 = vadd.f32 %v4471, 1e-05
    %v4488 = vadd.f32 %v4472, 1e-05
    %v4489 = vadd.f32 %v4473, 1e-05
    %v4490 = vadd.f32 %v4474, 1e-05
    %v4491 = vadd.f32 %v4475, 1e-05
    %v4492 = vadd.f32 %v4476, 1e-05
    %v4493 = vadd.f32 %v4477, 1e-05
    %v4494 = vadd.f32 %v4478, 1e-05
    %v4495 = vadd.f32 %v4479, 1e-05
    %v4496 = vadd.f32 %v4480, 1e-05
    %v4497 = vadd.f32 %v4481, 1e-05
    %v4498 = vadd.f32 %v4482, 1e-05
    %v4499 = vrsqrt.pop %v4483
    %v4500 = vmul.f32 %v4499, %v4483
    %v4501 = vmul.f32 %v4500, %v4499
    %v4502 = vmul.f32 0.5, %v4501
    %v4503 = vsub.f32 1.5, %v4502
    %v4504 = vmul.f32 %v4499, %v4503
    %vm4505 = vweird.f32 %v4483
    %vm4506 = vweird.f32 %v4499
    %vm4507 = vmor %vm4505, %vm4506
    %v4508 = vsel %vm4507, %v4499, %v4504
    %v4509 = vrsqrt.pop %v4484
    %v4510 = vmul.f32 %v4509, %v4484
    %v4511 = vmul.f32 %v4510, %v4509
    %v4512 = vmul.f32 0.5, %v4511
    %v4513 = vsub.f32 1.5, %v4512
    %v4514 = vmul.f32 %v4509, %v4513
    %vm4515 = vweird.f32 %v4484
    %vm4516 = vweird.f32 %v4509
    %vm4517 = vmor %vm4515, %vm4516
    %v4518 = vsel %vm4517, %v4509, %v4514
    %v4519 = vrsqrt.pop %v4485
    %v4520 = vmul.f32 %v4519, %v4485
    %v4521 = vmul.f32 %v4520, %v4519
    %v4522 = vmul.f32 0.5, %v4521
    %v4523 = vsub.f32 1.5, %v4522
    %v4524 = vmul.f32 %v4519, %v4523
    %vm4525 = vweird.f32 %v4485
    %vm4526 = vweird.f32 %v4519
    %vm4527 = vmor %vm4525, %vm4526
    %v4528 = vsel %vm4527, %v4519, %v4524
    %v4529 = vrsqrt.pop %v4486
    %v4530 = vmul.f32 %v4529, %v4486
    %v4531 = vmul.f32 %v4530, %v4529
    %v4532 = vmul.f32 0.5, %v4531
    %v4533 = vsub.f32 1.5, %v4532
    %v4534 = vmul.f32 %v4529, %v4533
    %vm4535 = vweird.f32 %v4486
    %vm4536 = vweird.f32 %v4529
    %vm4537 = vmor %vm4535, %vm4536
    %v4538 = vsel %vm4537, %v4529, %v4534
    %v4539 = vrsqrt.pop %v4487
    %v4540 = vmul.f32 %v4539, %v4487
    %v4541 = vmul.f32 %v4540, %v4539
    %v4542 = vmul.f32 0.5, %v4541
    %v4543 = vsub.f32 1.5, %v4542
    %v4544 = vmul.f32 %v4539, %v4543
    %vm4545 = vweird.f32 %v4487
    %vm4546 = vweird.f32 %v4539
    %vm4547 = vmor %vm4545, %vm4546
    %v4548 = vsel %vm4547, %v4539, %v4544
    %v4549 = vrsqrt.pop %v4488
    %v4550 = vmul.f32 %v4549, %v4488
    %v4551 = vmul.f32 %v4550, %v4549
    %v4552 = vmul.f32 0.5, %v4551
    %v4553 = vsub.f32 1.5, %v4552
    %v4554 = vmul.f32 %v4549, %v4553
    %vm4555 = vweird.f32 %v4488
    %vm4556 = vweird.f32 %v4549
    %vm4557 = vmor %vm4555, %vm4556
    %v4558 = vsel %vm4557, %v4549, %v4554
    %v4559 = vrsqrt.pop %v4489
    %v4560 = vmul.f32 %v4559, %v4489
    %v4561 = vmul.f32 %v4560, %v4559
    %v4562 = vmul.f32 0.5, %v4561
    %v4563 = vsub.f32 1.5, %v4562
    %v4564 = vmul.f32 %v4559, %v4563
    %vm4565 = vweird.f32 %v4489
    %vm4566 = vweird.f32 %v4559
    %vm4567 = vmor %vm4565, %vm4566
    %v4568 = vsel %vm4567, %v4559, %v4564
    %v4569 = vrsqrt.pop %v4490
    %v4570 = vmul.f32 %v4569, %v4490
    %v4571 = vmul.f32 %v4570, %v4569
    %v4572 = vmul.f32 0.5, %v4571
    %v4573 = vsub.f32 1.5, %v4572
    %v4574 = vmul.f32 %v4569, %v4573
    %vm4575 = vweird.f32 %v4490
    %vm4576 = vweird.f32 %v4569
    %vm4577 = vmor %vm4575, %vm4576
    %v4578 = vsel %vm4577, %v4569, %v4574
    %v4579 = vrsqrt.pop %v4491
    %v4580 = vmul.f32 %v4579, %v4491
    %v4581 = vmul.f32 %v4580, %v4579
    %v4582 = vmul.f32 0.5, %v4581
    %v4583 = vsub.f32 1.5, %v4582
    %v4584 = vmul.f32 %v4579, %v4583
    %vm4585 = vweird.f32 %v4491
    %vm4586 = vweird.f32 %v4579
    %vm4587 = vmor %vm4585, %vm4586
    %v4588 = vsel %vm4587, %v4579, %v4584
    %v4589 = vrsqrt.pop %v4492
    %v4590 = vmul.f32 %v4589, %v4492
    %v4591 = vmul.f32 %v4590, %v4589
    %v4592 = vmul.f32 0.5, %v4591
    %v4593 = vsub.f32 1.5, %v4592
    %v4594 = vmul.f32 %v4589, %v4593
    %vm4595 = vweird.f32 %v4492
    %vm4596 = vweird.f32 %v4589
    %vm4597 = vmor %vm4595, %vm4596
    %v4598 = vsel %vm4597, %v4589, %v4594
    %v4599 = vrsqrt.pop %v4493
    %v4600 = vmul.f32 %v4599, %v4493
    %v4601 = vmul.f32 %v4600, %v4599
    %v4602 = vmul.f32 0.5, %v4601
    %v4603 = vsub.f32 1.5, %v4602
    %v4604 = vmul.f32 %v4599, %v4603
    %vm4605 = vweird.f32 %v4493
    %vm4606 = vweird.f32 %v4599
    %vm4607 = vmor %vm4605, %vm4606
    %v4608 = vsel %vm4607, %v4599, %v4604
    %v4609 = vrsqrt.pop %v4494
    %v4610 = vmul.f32 %v4609, %v4494
    %v4611 = vmul.f32 %v4610, %v4609
    %v4612 = vmul.f32 0.5, %v4611
    %v4613 = vsub.f32 1.5, %v4612
    %v4614 = vmul.f32 %v4609, %v4613
    %vm4615 = vweird.f32 %v4494
    %vm4616 = vweird.f32 %v4609
    %vm4617 = vmor %vm4615, %vm4616
    %v4618 = vsel %vm4617, %v4609, %v4614
    %v4619 = vrsqrt.pop %v4495
    %v4620 = vmul.f32 %v4619, %v4495
    %v4621 = vmul.f32 %v4620, %v4619
    %v4622 = vmul.f32 0.5, %v4621
    %v4623 = vsub.f32 1.5, %v4622
    %v4624 = vmul.f32 %v4619, %v4623
    %vm4625 = vweird.f32 %v4495
    %vm4626 = vweird.f32 %v4619
    %vm4627 = vmor %vm4625, %vm4626
    %v4628 = vsel %vm4627, %v4619, %v4624
    %v4629 = vrsqrt.pop %v4496
    %v4630 = vmul.f32 %v4629, %v4496
    %v4631 = vmul.f32 %v4630, %v4629
    %v4632 = vmul.f32 0.5, %v4631
    %v4633 = vsub.f32 1.5, %v4632
    %v4634 = vmul.f32 %v4629, %v4633
    %vm4635 = vweird.f32 %v4496
    %vm4636 = vweird.f32 %v4629
    %vm4637 = vmor %vm4635, %vm4636
    %v4638 = vsel %vm4637, %v4629, %v4634
    %v4639 = vrsqrt.pop %v4497
    %v4640 = vmul.f32 %v4639, %v4497
    %v4641 = vmul.f32 %v4640, %v4639
    %v4642 = vmul.f32 0.5, %v4641
    %v4643 = vsub.f32 1.5, %v4642
    %v4644 = vmul.f32 %v4639, %v4643
    %vm4645 = vweird.f32 %v4497
    %vm4646 = vweird.f32 %v4639
    %vm4647 = vmor %vm4645, %vm4646
    %v4648 = vsel %vm4647, %v4639, %v4644
    %v4649 = vrsqrt.pop %v4498
    %v4650 = vmul.f32 %v4649, %v4498
    %v4651 = vmul.f32 %v4650, %v4649
    %v4652 = vmul.f32 0.5, %v4651
    %v4653 = vsub.f32 1.5, %v4652
    %v4654 = vmul.f32 %v4649, %v4653
    %vm4655 = vweird.f32 %v4498
    %vm4656 = vweird.f32 %v4649
    %vm4657 = vmor %vm4655, %vm4656
    %v4658 = vsel %vm4657, %v4649, %v4654
    %v4659 = vmul.f32 %v4435, %v4508
    %v4660 = vmul.f32 %v4436, %v4518
    %v4661 = vmul.f32 %v4437, %v4528
    %v4662 = vmul.f32 %v4438, %v4538
    %v4663 = vmul.f32 %v4439, %v4548
    %v4664 = vmul.f32 %v4440, %v4558
    %v4665 = vmul.f32 %v4441, %v4568
    %v4666 = vmul.f32 %v4442, %v4578
    %v4667 = vmul.f32 %v4443, %v4588
    %v4668 = vmul.f32 %v4444, %v4598
    %v4669 = vmul.f32 %v4445, %v4608
    %v4670 = vmul.f32 %v4446, %v4618
    %v4671 = vmul.f32 %v4447, %v4628
    %v4672 = vmul.f32 %v4448, %v4638
    %v4673 = vmul.f32 %v4449, %v4648
    %v4674 = vmul.f32 %v4450, %v4658
    %v4675 = vmul.f32 %v4659, %v2302
    %v4676 = vmul.f32 %v4660, %v2302
    %v4677 = vmul.f32 %v4661, %v2302
    %v4678 = vmul.f32 %v4662, %v2302
    %v4679 = vmul.f32 %v4663, %v2302
    %v4680 = vmul.f32 %v4664, %v2302
    %v4681 = vmul.f32 %v4665, %v2302
    %v4682 = vmul.f32 %v4666, %v2302
    %v4683 = vmul.f32 %v4667, %v2302
    %v4684 = vmul.f32 %v4668, %v2302
    %v4685 = vmul.f32 %v4669, %v2302
    %v4686 = vmul.f32 %v4670, %v2302
    %v4687 = vmul.f32 %v4671, %v2302
    %v4688 = vmul.f32 %v4672, %v2302
    %v4689 = vmul.f32 %v4673, %v2302
    %v4690 = vmul.f32 %v4674, %v2302
    %v4691 = vadd.f32 %v4675, %v2319
    %v4692 = vadd.f32 %v4676, %v2319
    %v4693 = vadd.f32 %v4677, %v2319
    %v4694 = vadd.f32 %v4678, %v2319
    %v4695 = vadd.f32 %v4679, %v2319
    %v4696 = vadd.f32 %v4680, %v2319
    %v4697 = vadd.f32 %v4681, %v2319
    %v4698 = vadd.f32 %v4682, %v2319
    %v4699 = vadd.f32 %v4683, %v2319
    %v4700 = vadd.f32 %v4684, %v2319
    %v4701 = vadd.f32 %v4685, %v2319
    %v4702 = vadd.f32 %v4686, %v2319
    %v4703 = vadd.f32 %v4687, %v2319
    %v4704 = vadd.f32 %v4688, %v2319
    %v4705 = vadd.f32 %v4689, %v2319
    %v4706 = vadd.f32 %v4690, %v2319
    %v4707 = vpack.c.bf16 %v4692, %v4691
    %v4708 = vpack.c.bf16 %v4694, %v4693
    %v4709 = vpack.c.bf16 %v4696, %v4695
    %v4710 = vpack.c.bf16 %v4698, %v4697
    %v4711 = vpack.c.bf16 %v4700, %v4699
    %v4712 = vpack.c.bf16 %v4702, %v4701
    %v4713 = vpack.c.bf16 %v4704, %v4703
    %v4714 = vpack.c.bf16 %v4706, %v4705
    %v4715 = vld [vmem:[%s6] sm:$0xf]
    %v4716 = vld [vmem:[%s6 + $0x4] sm:$0xf]
    %v4717 = vld [vmem:[%s6 + $0x8] sm:$0xf]
    %v4718 = vld [vmem:[%s6 + $0xc] sm:$0xf]
    %v4723 = vunpack.c.l.b16 %v4715
    %v4724 = vunpack.c.l.b16 %v4716
    %v4725 = vunpack.c.l.b16 %v4717
    %v4726 = vunpack.c.l.b16 %v4718
    %v4727 = vpack.c.b16 %v4724, %v4723
    %v4728 = vpack.c.b16 %v4726, %v4725
    %v4732 = vsel %vm1198, %v4707, 0
    %v4735 = vsel %vm1198, %v4708, 0
    %v4738 = vsel %vm1198, %v4709, 0
    %v4741 = vsel %vm1198, %v4710, 0
    %v4744 = vsel %vm1198, %v4711, 0
    %v4747 = vsel %vm1198, %v4712, 0
    %v4750 = vsel %vm1198, %v4713, 0
    %v4753 = vsel %vm1198, %v4714, 0
    %4755 = vmatpush.bf16.msra.mxu0 0
    %4756 = vmatpush.bf16.msra.mxu0 0
    %4757 = vmatpush.bf16.msra.mxu0 0
    %4758 = vmatpush.bf16.msra.mxu0 0
    %4759 = vmatpush.bf16.msra.mxu0 0
    %4760 = vmatpush.bf16.msra.mxu0 0
    %4761 = vmatpush.bf16.msra.mxu0 %v4728
    %4762 = vmatpush.bf16.msra.mxu0 %v4727
    %4763 = vmatmul.bf16.gmra.mxu0 %v4732
    %v4764 = vpop.f32.mrf.mxu0
    %v4765 = vadd.f32 %v2348, %v4764
    %v4766 = vpop.f32.mrf.mxu0
    %v4767 = vadd.f32 %v2348, %v4766
    %4768 = vmatmul.bf16.gmra.mxu0 %v4735
    %v4769 = vpop.f32.mrf.mxu0
    %v4770 = vadd.f32 %v2348, %v4769
    %v4771 = vpop.f32.mrf.mxu0
    %v4772 = vadd.f32 %v2348, %v4771
    %4773 = vmatmul.bf16.gmra.mxu0 %v4738
    %v4774 = vpop.f32.mrf.mxu0
    %v4775 = vadd.f32 %v2348, %v4774
    %v4776 = vpop.f32.mrf.mxu0
    %v4777 = vadd.f32 %v2348, %v4776
    %4778 = vmatmul.bf16.gmra.mxu0 %v4741
    %v4779 = vpop.f32.mrf.mxu0
    %v4780 = vadd.f32 %v2348, %v4779
    %v4781 = vpop.f32.mrf.mxu0
    %v4782 = vadd.f32 %v2348, %v4781
    %4783 = vmatmul.bf16.gmra.mxu0 %v4744
    %v4784 = vpop.f32.mrf.mxu0
    %v4785 = vadd.f32 %v2348, %v4784
    %v4786 = vpop.f32.mrf.mxu0
    %v4787 = vadd.f32 %v2348, %v4786
    %4788 = vmatmul.bf16.gmra.mxu0 %v4747
    %v4789 = vpop.f32.mrf.mxu0
    %v4790 = vadd.f32 %v2348, %v4789
    %v4791 = vpop.f32.mrf.mxu0
    %v4792 = vadd.f32 %v2348, %v4791
    %4793 = vmatmul.bf16.gmra.mxu0 %v4750
    %v4794 = vpop.f32.mrf.mxu0
    %v4795 = vadd.f32 %v2348, %v4794
    %v4796 = vpop.f32.mrf.mxu0
    %v4797 = vadd.f32 %v2348, %v4796
    %4798 = vmatmul.bf16.gmra.mxu0 %v4753
    %v4799 = vpop.f32.mrf.mxu0
    %v4800 = vadd.f32 %v2348, %v4799
    %v4801 = vpop.f32.mrf.mxu0
    %v4802 = vadd.f32 %v2348, %v4801
    %4803 = vdwg.mxu0
    %v4804 = vmax.f32 %v4765, 0.0
    %v4805 = vmax.f32 %v4767, 0.0
    %v4806 = vmax.f32 %v4770, 0.0
    %v4807 = vmax.f32 %v4772, 0.0
    %v4808 = vmax.f32 %v4775, 0.0
    %v4809 = vmax.f32 %v4777, 0.0
    %v4810 = vmax.f32 %v4780, 0.0
    %v4811 = vmax.f32 %v4782, 0.0
    %v4812 = vmax.f32 %v4785, 0.0
    %v4813 = vmax.f32 %v4787, 0.0
    %v4814 = vmax.f32 %v4790, 0.0
    %v4815 = vmax.f32 %v4792, 0.0
    %v4816 = vmax.f32 %v4795, 0.0
    %v4817 = vmax.f32 %v4797, 0.0
    %v4818 = vmax.f32 %v4800, 0.0
    %v4819 = vmax.f32 %v4802, 0.0
    %v4820 = vpack.c.bf16 %v4805, %v4804
    %v4821 = vpack.c.bf16 %v4807, %v4806
    %v4822 = vpack.c.bf16 %v4809, %v4808
    %v4823 = vpack.c.bf16 %v4811, %v4810
    %v4824 = vpack.c.bf16 %v4813, %v4812
    %v4825 = vpack.c.bf16 %v4815, %v4814
    %v4826 = vpack.c.bf16 %v4817, %v4816
    %v4827 = vpack.c.bf16 %v4819, %v4818
    %v4828 = vld [vmem:[%s7] sm:$0xf]
    %v4829 = vld [vmem:[%s7 + $0x4] sm:$0xf]
    %v4830 = vld [vmem:[%s7 + $0x8] sm:$0xf]
    %v4831 = vld [vmem:[%s7 + $0xc] sm:$0xf]
    %v4832 = vld [vmem:[%s7 + $0x10] sm:$0xf]
    %v4833 = vld [vmem:[%s7 + $0x14] sm:$0xf]
    %v4834 = vld [vmem:[%s7 + $0x18] sm:$0xf]
    %v4835 = vld [vmem:[%s7 + $0x1c] sm:$0xf]
    %v4844 = vunpack.c.l.b16 %v4828
    %v4845 = vunpack.c.l.b16 %v4829
    %v4846 = vunpack.c.l.b16 %v4830
    %v4847 = vunpack.c.l.b16 %v4831
    %v4848 = vunpack.c.l.b16 %v4832
    %v4849 = vunpack.c.l.b16 %v4833
    %v4850 = vunpack.c.l.b16 %v4834
    %v4851 = vunpack.c.l.b16 %v4835
    %v4852 = vpack.c.b16 %v4845, %v4844
    %v4853 = vpack.c.b16 %v4847, %v4846
    %v4854 = vpack.c.b16 %v4849, %v4848
    %v4855 = vpack.c.b16 %v4851, %v4850
    %v4861 = vsel %vm2491, %v4820, 0
    %v4864 = vsel %vm2491, %v4821, 0
    %v4867 = vsel %vm2491, %v4822, 0
    %v4870 = vsel %vm2491, %v4823, 0
    %v4873 = vsel %vm2491, %v4824, 0
    %v4876 = vsel %vm2491, %v4825, 0
    %v4879 = vsel %vm2491, %v4826, 0
    %v4882 = vsel %vm2491, %v4827, 0
    %4884 = vmatpush.bf16.msra.mxu0 0
    %4885 = vmatpush.bf16.msra.mxu0 0
    %4886 = vmatpush.bf16.msra.mxu0 0
    %4887 = vmatpush.bf16.msra.mxu0 0
    %4888 = vmatpush.bf16.msra.mxu0 %v4855
    %4889 = vmatpush.bf16.msra.mxu0 %v4854
    %4890 = vmatpush.bf16.msra.mxu0 %v4853
    %4891 = vmatpush.bf16.msra.mxu0 %v4852
    %4892 = vmatmul.bf16.gmra.mxu0 %v4861
    %v4893 = vpop.f32.mrf.mxu0
    %v4894 = vadd.f32 %v2466, %v4893
    %v4895 = vpop.f32.mrf.mxu0
    %v4896 = vadd.f32 %v2466, %v4895
    %4897 = vmatmul.bf16.gmra.mxu0 %v4864
    %v4898 = vpop.f32.mrf.mxu0
    %v4899 = vadd.f32 %v2466, %v4898
    %v4900 = vpop.f32.mrf.mxu0
    %v4901 = vadd.f32 %v2466, %v4900
    %4902 = vmatmul.bf16.gmra.mxu0 %v4867
    %v4903 = vpop.f32.mrf.mxu0
    %v4904 = vadd.f32 %v2466, %v4903
    %v4905 = vpop.f32.mrf.mxu0
    %v4906 = vadd.f32 %v2466, %v4905
    %4907 = vmatmul.bf16.gmra.mxu0 %v4870
    %v4908 = vpop.f32.mrf.mxu0
    %v4909 = vadd.f32 %v2466, %v4908
    %v4910 = vpop.f32.mrf.mxu0
    %v4911 = vadd.f32 %v2466, %v4910
    %4912 = vmatmul.bf16.gmra.mxu0 %v4873
    %v4913 = vpop.f32.mrf.mxu0
    %v4914 = vadd.f32 %v2466, %v4913
    %v4915 = vpop.f32.mrf.mxu0
    %v4916 = vadd.f32 %v2466, %v4915
    %4917 = vmatmul.bf16.gmra.mxu0 %v4876
    %v4918 = vpop.f32.mrf.mxu0
    %v4919 = vadd.f32 %v2466, %v4918
    %v4920 = vpop.f32.mrf.mxu0
    %v4921 = vadd.f32 %v2466, %v4920
    %4922 = vmatmul.bf16.gmra.mxu0 %v4879
    %v4923 = vpop.f32.mrf.mxu0
    %v4924 = vadd.f32 %v2466, %v4923
    %v4925 = vpop.f32.mrf.mxu0
    %v4926 = vadd.f32 %v2466, %v4925
    %4927 = vmatmul.bf16.gmra.mxu0 %v4882
    %v4928 = vpop.f32.mrf.mxu0
    %v4929 = vadd.f32 %v2466, %v4928
    %v4930 = vpop.f32.mrf.mxu0
    %v4931 = vadd.f32 %v2466, %v4930
    %4932 = vdwg.mxu0
    %v4933 = vadd.f32 %v4691, %v4894
    %v4934 = vadd.f32 %v4692, %v4896
    %v4935 = vadd.f32 %v4693, %v4899
    %v4936 = vadd.f32 %v4694, %v4901
    %v4937 = vadd.f32 %v4695, %v4904
    %v4938 = vadd.f32 %v4696, %v4906
    %v4939 = vadd.f32 %v4697, %v4909
    %v4940 = vadd.f32 %v4698, %v4911
    %v4941 = vadd.f32 %v4699, %v4914
    %v4942 = vadd.f32 %v4700, %v4916
    %v4943 = vadd.f32 %v4701, %v4919
    %v4944 = vadd.f32 %v4702, %v4921
    %v4945 = vadd.f32 %v4703, %v4924
    %v4946 = vadd.f32 %v4704, %v4926
    %v4947 = vadd.f32 %v4705, %v4929
    %v4948 = vadd.f32 %v4706, %v4931
    %v4949 = vsel %vm1198, %v4933, 0.0
    %4950 = vadd.xlane.f32.xlu0 %v4949
    %v4951 = vpop.xlane.xlu0 %4950
    %v4952 = vsel %vm1198, %v4934, 0.0
    %4953 = vadd.xlane.f32.xlu0 %v4952
    %v4954 = vpop.xlane.xlu0 %4953
    %v4955 = vsel %vm1198, %v4935, 0.0
    %4956 = vadd.xlane.f32.xlu0 %v4955
    %v4957 = vpop.xlane.xlu0 %4956
    %v4958 = vsel %vm1198, %v4936, 0.0
    %4959 = vadd.xlane.f32.xlu0 %v4958
    %v4960 = vpop.xlane.xlu0 %4959
    %v4961 = vsel %vm1198, %v4937, 0.0
    %4962 = vadd.xlane.f32.xlu0 %v4961
    %v4963 = vpop.xlane.xlu0 %4962
    %v4964 = vsel %vm1198, %v4938, 0.0
    %4965 = vadd.xlane.f32.xlu0 %v4964
    %v4966 = vpop.xlane.xlu0 %4965
    %v4967 = vsel %vm1198, %v4939, 0.0
    %4968 = vadd.xlane.f32.xlu0 %v4967
    %v4969 = vpop.xlane.xlu0 %4968
    %v4970 = vsel %vm1198, %v4940, 0.0
    %4971 = vadd.xlane.f32.xlu0 %v4970
    %v4972 = vpop.xlane.xlu0 %4971
    %v4973 = vsel %vm1198, %v4941, 0.0
    %4974 = vadd.xlane.f32.xlu0 %v4973
    %v4975 = vpop.xlane.xlu0 %4974
    %v4976 = vsel %vm1198, %v4942, 0.0
    %4977 = vadd.xlane.f32.xlu0 %v4976
    %v4978 = vpop.xlane.xlu0 %4977
    %v4979 = vsel %vm1198, %v4943, 0.0
    %4980 = vadd.xlane.f32.xlu0 %v4979
    %v4981 = vpop.xlane.xlu0 %4980
    %v4982 = vsel %vm1198, %v4944, 0.0
    %4983 = vadd.xlane.f32.xlu0 %v4982
    %v4984 = vpop.xlane.xlu0 %4983
    %v4985 = vsel %vm1198, %v4945, 0.0
    %4986 = vadd.xlane.f32.xlu0 %v4985
    %v4987 = vpop.xlane.xlu0 %4986
    %v4988 = vsel %vm1198, %v4946, 0.0
    %4989 = vadd.xlane.f32.xlu0 %v4988
    %v4990 = vpop.xlane.xlu0 %4989
    %v4991 = vsel %vm1198, %v4947, 0.0
    %4992 = vadd.xlane.f32.xlu0 %v4991
    %v4993 = vpop.xlane.xlu0 %4992
    %v4994 = vsel %vm1198, %v4948, 0.0
    %4995 = vadd.xlane.f32.xlu0 %v4994
    %v4996 = vpop.xlane.xlu0 %4995
    %v4997 = vmul.f32 %v4951, %v1965
    %v4998 = vmul.f32 %v4954, %v1965
    %v4999 = vmul.f32 %v4957, %v1965
    %v5000 = vmul.f32 %v4960, %v1965
    %v5001 = vmul.f32 %v4963, %v1965
    %v5002 = vmul.f32 %v4966, %v1965
    %v5003 = vmul.f32 %v4969, %v1965
    %v5004 = vmul.f32 %v4972, %v1965
    %v5005 = vmul.f32 %v4975, %v1965
    %v5006 = vmul.f32 %v4978, %v1965
    %v5007 = vmul.f32 %v4981, %v1965
    %v5008 = vmul.f32 %v4984, %v1965
    %v5009 = vmul.f32 %v4987, %v1965
    %v5010 = vmul.f32 %v4990, %v1965
    %v5011 = vmul.f32 %v4993, %v1965
    %v5012 = vmul.f32 %v4996, %v1965
    %v5013 = vmul.f32 %v4933, %v4933
    %v5014 = vmul.f32 %v4934, %v4934
    %v5015 = vmul.f32 %v4935, %v4935
    %v5016 = vmul.f32 %v4936, %v4936
    %v5017 = vmul.f32 %v4937, %v4937
    %v5018 = vmul.f32 %v4938, %v4938
    %v5019 = vmul.f32 %v4939, %v4939
    %v5020 = vmul.f32 %v4940, %v4940
    %v5021 = vmul.f32 %v4941, %v4941
    %v5022 = vmul.f32 %v4942, %v4942
    %v5023 = vmul.f32 %v4943, %v4943
    %v5024 = vmul.f32 %v4944, %v4944
    %v5025 = vmul.f32 %v4945, %v4945
    %v5026 = vmul.f32 %v4946, %v4946
    %v5027 = vmul.f32 %v4947, %v4947
    %v5028 = vmul.f32 %v4948, %v4948
    %v5029 = vsel %vm1198, %v5013, 0.0
    %5030 = vadd.xlane.f32.xlu0 %v5029
    %v5031 = vpop.xlane.xlu0 %5030
    %v5032 = vsel %vm1198, %v5014, 0.0
    %5033 = vadd.xlane.f32.xlu0 %v5032
    %v5034 = vpop.xlane.xlu0 %5033
    %v5035 = vsel %vm1198, %v5015, 0.0
    %5036 = vadd.xlane.f32.xlu0 %v5035
    %v5037 = vpop.xlane.xlu0 %5036
    %v5038 = vsel %vm1198, %v5016, 0.0
    %5039 = vadd.xlane.f32.xlu0 %v5038
    %v5040 = vpop.xlane.xlu0 %5039
    %v5041 = vsel %vm1198, %v5017, 0.0
    %5042 = vadd.xlane.f32.xlu0 %v5041
    %v5043 = vpop.xlane.xlu0 %5042
    %v5044 = vsel %vm1198, %v5018, 0.0
    %5045 = vadd.xlane.f32.xlu0 %v5044
    %v5046 = vpop.xlane.xlu0 %5045
    %v5047 = vsel %vm1198, %v5019, 0.0
    %5048 = vadd.xlane.f32.xlu0 %v5047
    %v5049 = vpop.xlane.xlu0 %5048
    %v5050 = vsel %vm1198, %v5020, 0.0
    %5051 = vadd.xlane.f32.xlu0 %v5050
    %v5052 = vpop.xlane.xlu0 %5051
    %v5053 = vsel %vm1198, %v5021, 0.0
    %5054 = vadd.xlane.f32.xlu0 %v5053
    %v5055 = vpop.xlane.xlu0 %5054
    %v5056 = vsel %vm1198, %v5022, 0.0
    %5057 = vadd.xlane.f32.xlu0 %v5056
    %v5058 = vpop.xlane.xlu0 %5057
    %v5059 = vsel %vm1198, %v5023, 0.0
    %5060 = vadd.xlane.f32.xlu0 %v5059
    %v5061 = vpop.xlane.xlu0 %5060
    %v5062 = vsel %vm1198, %v5024, 0.0
    %5063 = vadd.xlane.f32.xlu0 %v5062
    %v5064 = vpop.xlane.xlu0 %5063
    %v5065 = vsel %vm1198, %v5025, 0.0
    %5066 = vadd.xlane.f32.xlu0 %v5065
    %v5067 = vpop.xlane.xlu0 %5066
    %v5068 = vsel %vm1198, %v5026, 0.0
    %5069 = vadd.xlane.f32.xlu0 %v5068
    %v5070 = vpop.xlane.xlu0 %5069
    %v5071 = vsel %vm1198, %v5027, 0.0
    %5072 = vadd.xlane.f32.xlu0 %v5071
    %v5073 = vpop.xlane.xlu0 %5072
    %v5074 = vsel %vm1198, %v5028, 0.0
    %5075 = vadd.xlane.f32.xlu0 %v5074
    %v5076 = vpop.xlane.xlu0 %5075
    %v5077 = vmul.f32 %v5031, %v1965
    %v5078 = vmul.f32 %v5034, %v1965
    %v5079 = vmul.f32 %v5037, %v1965
    %v5080 = vmul.f32 %v5040, %v1965
    %v5081 = vmul.f32 %v5043, %v1965
    %v5082 = vmul.f32 %v5046, %v1965
    %v5083 = vmul.f32 %v5049, %v1965
    %v5084 = vmul.f32 %v5052, %v1965
    %v5085 = vmul.f32 %v5055, %v1965
    %v5086 = vmul.f32 %v5058, %v1965
    %v5087 = vmul.f32 %v5061, %v1965
    %v5088 = vmul.f32 %v5064, %v1965
    %v5089 = vmul.f32 %v5067, %v1965
    %v5090 = vmul.f32 %v5070, %v1965
    %v5091 = vmul.f32 %v5073, %v1965
    %v5092 = vmul.f32 %v5076, %v1965
    %v5093 = vsub.f32 %v4933, %v4997
    %v5094 = vsub.f32 %v4934, %v4998
    %v5095 = vsub.f32 %v4935, %v4999
    %v5096 = vsub.f32 %v4936, %v5000
    %v5097 = vsub.f32 %v4937, %v5001
    %v5098 = vsub.f32 %v4938, %v5002
    %v5099 = vsub.f32 %v4939, %v5003
    %v5100 = vsub.f32 %v4940, %v5004
    %v5101 = vsub.f32 %v4941, %v5005
    %v5102 = vsub.f32 %v4942, %v5006
    %v5103 = vsub.f32 %v4943, %v5007
    %v5104 = vsub.f32 %v4944, %v5008
    %v5105 = vsub.f32 %v4945, %v5009
    %v5106 = vsub.f32 %v4946, %v5010
    %v5107 = vsub.f32 %v4947, %v5011
    %v5108 = vsub.f32 %v4948, %v5012
    %v5109 = vmul.f32 %v4997, %v4997
    %v5110 = vmul.f32 %v4998, %v4998
    %v5111 = vmul.f32 %v4999, %v4999
    %v5112 = vmul.f32 %v5000, %v5000
    %v5113 = vmul.f32 %v5001, %v5001
    %v5114 = vmul.f32 %v5002, %v5002
    %v5115 = vmul.f32 %v5003, %v5003
    %v5116 = vmul.f32 %v5004, %v5004
    %v5117 = vmul.f32 %v5005, %v5005
    %v5118 = vmul.f32 %v5006, %v5006
    %v5119 = vmul.f32 %v5007, %v5007
    %v5120 = vmul.f32 %v5008, %v5008
    %v5121 = vmul.f32 %v5009, %v5009
    %v5122 = vmul.f32 %v5010, %v5010
    %v5123 = vmul.f32 %v5011, %v5011
    %v5124 = vmul.f32 %v5012, %v5012
    %v5125 = vsub.f32 %v5077, %v5109
    %v5126 = vsub.f32 %v5078, %v5110
    %v5127 = vsub.f32 %v5079, %v5111
    %v5128 = vsub.f32 %v5080, %v5112
    %v5129 = vsub.f32 %v5081, %v5113
    %v5130 = vsub.f32 %v5082, %v5114
    %v5131 = vsub.f32 %v5083, %v5115
    %v5132 = vsub.f32 %v5084, %v5116
    %v5133 = vsub.f32 %v5085, %v5117
    %v5134 = vsub.f32 %v5086, %v5118
    %v5135 = vsub.f32 %v5087, %v5119
    %v5136 = vsub.f32 %v5088, %v5120
    %v5137 = vsub.f32 %v5089, %v5121
    %v5138 = vsub.f32 %v5090, %v5122
    %v5139 = vsub.f32 %v5091, %v5123
    %v5140 = vsub.f32 %v5092, %v5124
    %v5141 = vadd.f32 %v5125, 1e-05
    %v5142 = vadd.f32 %v5126, 1e-05
    %v5143 = vadd.f32 %v5127, 1e-05
    %v5144 = vadd.f32 %v5128, 1e-05
    %v5145 = vadd.f32 %v5129, 1e-05
    %v5146 = vadd.f32 %v5130, 1e-05
    %v5147 = vadd.f32 %v5131, 1e-05
    %v5148 = vadd.f32 %v5132, 1e-05
    %v5149 = vadd.f32 %v5133, 1e-05
    %v5150 = vadd.f32 %v5134, 1e-05
    %v5151 = vadd.f32 %v5135, 1e-05
    %v5152 = vadd.f32 %v5136, 1e-05
    %v5153 = vadd.f32 %v5137, 1e-05
    %v5154 = vadd.f32 %v5138, 1e-05
    %v5155 = vadd.f32 %v5139, 1e-05
    %v5156 = vadd.f32 %v5140, 1e-05
    %v5157 = vrsqrt.pop %v5141
    %v5158 = vmul.f32 %v5157, %v5141
    %v5159 = vmul.f32 %v5158, %v5157
    %v5160 = vmul.f32 0.5, %v5159
    %v5161 = vsub.f32 1.5, %v5160
    %v5162 = vmul.f32 %v5157, %v5161
    %vm5163 = vweird.f32 %v5141
    %vm5164 = vweird.f32 %v5157
    %vm5165 = vmor %vm5163, %vm5164
    %v5166 = vsel %vm5165, %v5157, %v5162
    %v5167 = vrsqrt.pop %v5142
    %v5168 = vmul.f32 %v5167, %v5142
    %v5169 = vmul.f32 %v5168, %v5167
    %v5170 = vmul.f32 0.5, %v5169
    %v5171 = vsub.f32 1.5, %v5170
    %v5172 = vmul.f32 %v5167, %v5171
    %vm5173 = vweird.f32 %v5142
    %vm5174 = vweird.f32 %v5167
    %vm5175 = vmor %vm5173, %vm5174
    %v5176 = vsel %vm5175, %v5167, %v5172
    %v5177 = vrsqrt.pop %v5143
    %v5178 = vmul.f32 %v5177, %v5143
    %v5179 = vmul.f32 %v5178, %v5177
    %v5180 = vmul.f32 0.5, %v5179
    %v5181 = vsub.f32 1.5, %v5180
    %v5182 = vmul.f32 %v5177, %v5181
    %vm5183 = vweird.f32 %v5143
    %vm5184 = vweird.f32 %v5177
    %vm5185 = vmor %vm5183, %vm5184
    %v5186 = vsel %vm5185, %v5177, %v5182
    %v5187 = vrsqrt.pop %v5144
    %v5188 = vmul.f32 %v5187, %v5144
    %v5189 = vmul.f32 %v5188, %v5187
    %v5190 = vmul.f32 0.5, %v5189
    %v5191 = vsub.f32 1.5, %v5190
    %v5192 = vmul.f32 %v5187, %v5191
    %vm5193 = vweird.f32 %v5144
    %vm5194 = vweird.f32 %v5187
    %vm5195 = vmor %vm5193, %vm5194
    %v5196 = vsel %vm5195, %v5187, %v5192
    %v5197 = vrsqrt.pop %v5145
    %v5198 = vmul.f32 %v5197, %v5145
    %v5199 = vmul.f32 %v5198, %v5197
    %v5200 = vmul.f32 0.5, %v5199
    %v5201 = vsub.f32 1.5, %v5200
    %v5202 = vmul.f32 %v5197, %v5201
    %vm5203 = vweird.f32 %v5145
    %vm5204 = vweird.f32 %v5197
    %vm5205 = vmor %vm5203, %vm5204
    %v5206 = vsel %vm5205, %v5197, %v5202
    %v5207 = vrsqrt.pop %v5146
    %v5208 = vmul.f32 %v5207, %v5146
    %v5209 = vmul.f32 %v5208, %v5207
    %v5210 = vmul.f32 0.5, %v5209
    %v5211 = vsub.f32 1.5, %v5210
    %v5212 = vmul.f32 %v5207, %v5211
    %vm5213 = vweird.f32 %v5146
    %vm5214 = vweird.f32 %v5207
    %vm5215 = vmor %vm5213, %vm5214
    %v5216 = vsel %vm5215, %v5207, %v5212
    %v5217 = vrsqrt.pop %v5147
    %v5218 = vmul.f32 %v5217, %v5147
    %v5219 = vmul.f32 %v5218, %v5217
    %v5220 = vmul.f32 0.5, %v5219
    %v5221 = vsub.f32 1.5, %v5220
    %v5222 = vmul.f32 %v5217, %v5221
    %vm5223 = vweird.f32 %v5147
    %vm5224 = vweird.f32 %v5217
    %vm5225 = vmor %vm5223, %vm5224
    %v5226 = vsel %vm5225, %v5217, %v5222
    %v5227 = vrsqrt.pop %v5148
    %v5228 = vmul.f32 %v5227, %v5148
    %v5229 = vmul.f32 %v5228, %v5227
    %v5230 = vmul.f32 0.5, %v5229
    %v5231 = vsub.f32 1.5, %v5230
    %v5232 = vmul.f32 %v5227, %v5231
    %vm5233 = vweird.f32 %v5148
    %vm5234 = vweird.f32 %v5227
    %vm5235 = vmor %vm5233, %vm5234
    %v5236 = vsel %vm5235, %v5227, %v5232
    %v5237 = vrsqrt.pop %v5149
    %v5238 = vmul.f32 %v5237, %v5149
    %v5239 = vmul.f32 %v5238, %v5237
    %v5240 = vmul.f32 0.5, %v5239
    %v5241 = vsub.f32 1.5, %v5240
    %v5242 = vmul.f32 %v5237, %v5241
    %vm5243 = vweird.f32 %v5149
    %vm5244 = vweird.f32 %v5237
    %vm5245 = vmor %vm5243, %vm5244
    %v5246 = vsel %vm5245, %v5237, %v5242
    %v5247 = vrsqrt.pop %v5150
    %v5248 = vmul.f32 %v5247, %v5150
    %v5249 = vmul.f32 %v5248, %v5247
    %v5250 = vmul.f32 0.5, %v5249
    %v5251 = vsub.f32 1.5, %v5250
    %v5252 = vmul.f32 %v5247, %v5251
    %vm5253 = vweird.f32 %v5150
    %vm5254 = vweird.f32 %v5247
    %vm5255 = vmor %vm5253, %vm5254
    %v5256 = vsel %vm5255, %v5247, %v5252
    %v5257 = vrsqrt.pop %v5151
    %v5258 = vmul.f32 %v5257, %v5151
    %v5259 = vmul.f32 %v5258, %v5257
    %v5260 = vmul.f32 0.5, %v5259
    %v5261 = vsub.f32 1.5, %v5260
    %v5262 = vmul.f32 %v5257, %v5261
    %vm5263 = vweird.f32 %v5151
    %vm5264 = vweird.f32 %v5257
    %vm5265 = vmor %vm5263, %vm5264
    %v5266 = vsel %vm5265, %v5257, %v5262
    %v5267 = vrsqrt.pop %v5152
    %v5268 = vmul.f32 %v5267, %v5152
    %v5269 = vmul.f32 %v5268, %v5267
    %v5270 = vmul.f32 0.5, %v5269
    %v5271 = vsub.f32 1.5, %v5270
    %v5272 = vmul.f32 %v5267, %v5271
    %vm5273 = vweird.f32 %v5152
    %vm5274 = vweird.f32 %v5267
    %vm5275 = vmor %vm5273, %vm5274
    %v5276 = vsel %vm5275, %v5267, %v5272
    %v5277 = vrsqrt.pop %v5153
    %v5278 = vmul.f32 %v5277, %v5153
    %v5279 = vmul.f32 %v5278, %v5277
    %v5280 = vmul.f32 0.5, %v5279
    %v5281 = vsub.f32 1.5, %v5280
    %v5282 = vmul.f32 %v5277, %v5281
    %vm5283 = vweird.f32 %v5153
    %vm5284 = vweird.f32 %v5277
    %vm5285 = vmor %vm5283, %vm5284
    %v5286 = vsel %vm5285, %v5277, %v5282
    %v5287 = vrsqrt.pop %v5154
    %v5288 = vmul.f32 %v5287, %v5154
    %v5289 = vmul.f32 %v5288, %v5287
    %v5290 = vmul.f32 0.5, %v5289
    %v5291 = vsub.f32 1.5, %v5290
    %v5292 = vmul.f32 %v5287, %v5291
    %vm5293 = vweird.f32 %v5154
    %vm5294 = vweird.f32 %v5287
    %vm5295 = vmor %vm5293, %vm5294
    %v5296 = vsel %vm5295, %v5287, %v5292
    %v5297 = vrsqrt.pop %v5155
    %v5298 = vmul.f32 %v5297, %v5155
    %v5299 = vmul.f32 %v5298, %v5297
    %v5300 = vmul.f32 0.5, %v5299
    %v5301 = vsub.f32 1.5, %v5300
    %v5302 = vmul.f32 %v5297, %v5301
    %vm5303 = vweird.f32 %v5155
    %vm5304 = vweird.f32 %v5297
    %vm5305 = vmor %vm5303, %vm5304
    %v5306 = vsel %vm5305, %v5297, %v5302
    %v5307 = vrsqrt.pop %v5156
    %v5308 = vmul.f32 %v5307, %v5156
    %v5309 = vmul.f32 %v5308, %v5307
    %v5310 = vmul.f32 0.5, %v5309
    %v5311 = vsub.f32 1.5, %v5310
    %v5312 = vmul.f32 %v5307, %v5311
    %vm5313 = vweird.f32 %v5156
    %vm5314 = vweird.f32 %v5307
    %vm5315 = vmor %vm5313, %vm5314
    %v5316 = vsel %vm5315, %v5307, %v5312
    %v5317 = vmul.f32 %v5093, %v5166
    %v5318 = vmul.f32 %v5094, %v5176
    %v5319 = vmul.f32 %v5095, %v5186
    %v5320 = vmul.f32 %v5096, %v5196
    %v5321 = vmul.f32 %v5097, %v5206
    %v5322 = vmul.f32 %v5098, %v5216
    %v5323 = vmul.f32 %v5099, %v5226
    %v5324 = vmul.f32 %v5100, %v5236
    %v5325 = vmul.f32 %v5101, %v5246
    %v5326 = vmul.f32 %v5102, %v5256
    %v5327 = vmul.f32 %v5103, %v5266
    %v5328 = vmul.f32 %v5104, %v5276
    %v5329 = vmul.f32 %v5105, %v5286
    %v5330 = vmul.f32 %v5106, %v5296
    %v5331 = vmul.f32 %v5107, %v5306
    %v5332 = vmul.f32 %v5108, %v5316
    %v5333 = vmul.f32 %v5317, %v2965
    %v5334 = vmul.f32 %v5318, %v2965
    %v5335 = vmul.f32 %v5319, %v2965
    %v5336 = vmul.f32 %v5320, %v2965
    %v5337 = vmul.f32 %v5321, %v2965
    %v5338 = vmul.f32 %v5322, %v2965
    %v5339 = vmul.f32 %v5323, %v2965
    %v5340 = vmul.f32 %v5324, %v2965
    %v5341 = vmul.f32 %v5325, %v2965
    %v5342 = vmul.f32 %v5326, %v2965
    %v5343 = vmul.f32 %v5327, %v2965
    %v5344 = vmul.f32 %v5328, %v2965
    %v5345 = vmul.f32 %v5329, %v2965
    %v5346 = vmul.f32 %v5330, %v2965
    %v5347 = vmul.f32 %v5331, %v2965
    %v5348 = vmul.f32 %v5332, %v2965
    %v5349 = vadd.f32 %v5333, %v2982
    %v5350 = vadd.f32 %v5334, %v2982
    %v5351 = vadd.f32 %v5335, %v2982
    %v5352 = vadd.f32 %v5336, %v2982
    %v5353 = vadd.f32 %v5337, %v2982
    %v5354 = vadd.f32 %v5338, %v2982
    %v5355 = vadd.f32 %v5339, %v2982
    %v5356 = vadd.f32 %v5340, %v2982
    %v5357 = vadd.f32 %v5341, %v2982
    %v5358 = vadd.f32 %v5342, %v2982
    %v5359 = vadd.f32 %v5343, %v2982
    %v5360 = vadd.f32 %v5344, %v2982
    %v5361 = vadd.f32 %v5345, %v2982
    %v5362 = vadd.f32 %v5346, %v2982
    %v5363 = vadd.f32 %v5347, %v2982
    %v5364 = vadd.f32 %v5348, %v2982
    %v5365 = vsub.f32 %v5349, %v3566
    %v5366 = vsub.f32 %v5350, %v3567
    %v5367 = vsub.f32 %v5351, %v3568
    %v5368 = vsub.f32 %v5352, %v3569
    %v5369 = vsub.f32 %v5353, %v3570
    %v5370 = vsub.f32 %v5354, %v3571
    %v5371 = vsub.f32 %v5355, %v3572
    %v5372 = vsub.f32 %v5356, %v3573
    %v5373 = vsub.f32 %v5357, %v3574
    %v5374 = vsub.f32 %v5358, %v3575
    %v5375 = vsub.f32 %v5359, %v3576
    %v5376 = vsub.f32 %v5360, %v3577
    %v5377 = vsub.f32 %v5361, %v3578
    %v5378 = vsub.f32 %v5362, %v3579
    %v5379 = vsub.f32 %v5363, %v3580
    %v5380 = vsub.f32 %v5364, %v3581
    %5381 = vxpose.xlu0.b32.start [1/16] %v5365, 128
    %5382 = vxpose.xlu0.b32.cont [2/16] %v5366, 128
    %5383 = vxpose.xlu0.b32.cont [3/16] %v5367, 128
    %5384 = vxpose.xlu0.b32.cont [4/16] %v5368, 128
    %5385 = vxpose.xlu0.b32.cont [5/16] %v5369, 128
    %5386 = vxpose.xlu0.b32.cont [6/16] %v5370, 128
    %5387 = vxpose.xlu0.b32.cont [7/16] %v5371, 128
    %5388 = vxpose.xlu0.b32.cont [8/16] %v5372, 128
    %5389 = vxpose.xlu0.b32.cont [9/16] %v5373, 128
    %5390 = vxpose.xlu0.b32.cont [10/16] %v5374, 128
    %5391 = vxpose.xlu0.b32.cont [11/16] %v5375, 128
    %5392 = vxpose.xlu0.b32.cont [12/16] %v5376, 128
    %5393 = vxpose.xlu0.b32.cont [13/16] %v5377, 128
    %5394 = vxpose.xlu0.b32.cont [14/16] %v5378, 128
    %5395 = vxpose.xlu0.b32.cont [15/16] %v5379, 128
    %5396 = vxpose.xlu0.b32.end [16/16] %v5380, 128
    %v5397 = vpop.trf.xlu0
    %v5398 = vpop.trf.xlu0
    %v5399 = vpop.trf.xlu0
    %v5400 = vpop.trf.xlu0
    %v5401 = vpop.trf.xlu0
    %v5402 = vpop.trf.xlu0
    %v5403 = vpop.trf.xlu0
    %v5404 = vpop.trf.xlu0
    %v5405 = vpop.trf.xlu0
    %v5406 = vpop.trf.xlu0
    %v5407 = vpop.trf.xlu0
    %v5408 = vpop.trf.xlu0
    %v5409 = vpop.trf.xlu0
    %v5410 = vpop.trf.xlu0
    %v5411 = vpop.trf.xlu0
    %v5412 = vpop.trf.xlu0
    %5413 = vmatpush.msra.mxu0 %v846
    %5414 = vmatpush.msra.mxu0 %v839
    %5415 = vmatpush.msra.mxu0 %v832
    %5416 = vmatpush.msra.mxu0 %v825
    %5417 = vmatpush.msra.mxu0 %v818
    %5418 = vmatpush.msra.mxu0 %v811
    %5419 = vmatpush.msra.mxu0 %v804
    %5420 = vmatpush.msra.mxu0 %v797
    %5421 = vmatpush.msra.mxu0 %v790
    %5422 = vmatpush.msra.mxu0 %v783
    %5423 = vmatpush.msra.mxu0 %v776
    %5424 = vmatpush.msra.mxu0 %v769
    %5425 = vmatpush.msra.mxu0 %v762
    %5426 = vmatpush.msra.mxu0 %v755
    %5427 = vmatpush.msra.mxu0 %v748
    %5428 = vmatpush.msra.mxu0 %v741
    %5429 = vmatmul.f32.gmra.mxu0 %v5397
    %v5430 = vpop.f32.mrf.mxu0
    %v5431 = vadd.f32 0.0, %v5430
    %5432 = vmatmul.f32.gmra.mxu0 %v5398
    %v5433 = vpop.f32.mrf.mxu0
    %v5434 = vadd.f32 0.0, %v5433
    %5435 = vmatmul.f32.gmra.mxu0 %v5399
    %v5436 = vpop.f32.mrf.mxu0
    %v5437 = vadd.f32 0.0, %v5436
    %5438 = vmatmul.f32.gmra.mxu0 %v5400
    %v5439 = vpop.f32.mrf.mxu0
    %v5440 = vadd.f32 0.0, %v5439
    %5441 = vdwg.mxu0
    %5442 = vmatpush.msra.mxu0 %v847
    %5443 = vmatpush.msra.mxu0 %v840
    %5444 = vmatpush.msra.mxu0 %v833
    %5445 = vmatpush.msra.mxu0 %v826
    %5446 = vmatpush.msra.mxu0 %v819
    %5447 = vmatpush.msra.mxu0 %v812
    %5448 = vmatpush.msra.mxu0 %v805
    %5449 = vmatpush.msra.mxu0 %v798
    %5450 = vmatpush.msra.mxu0 %v791
    %5451 = vmatpush.msra.mxu0 %v784
    %5452 = vmatpush.msra.mxu0 %v777
    %5453 = vmatpush.msra.mxu0 %v770
    %5454 = vmatpush.msra.mxu0 %v763
    %5455 = vmatpush.msra.mxu0 %v756
    %5456 = vmatpush.msra.mxu0 %v749
    %5457 = vmatpush.msra.mxu0 %v742
    %5458 = vmatmul.f32.gmra.mxu0 %v5397
    %v5459 = vpop.f32.mrf.mxu0
    %v5460 = vadd.f32 0.0, %v5459
    %5461 = vmatmul.f32.gmra.mxu0 %v5398
    %v5462 = vpop.f32.mrf.mxu0
    %v5463 = vadd.f32 0.0, %v5462
    %5464 = vmatmul.f32.gmra.mxu0 %v5399
    %v5465 = vpop.f32.mrf.mxu0
    %v5466 = vadd.f32 0.0, %v5465
    %5467 = vmatmul.f32.gmra.mxu0 %v5400
    %v5468 = vpop.f32.mrf.mxu0
    %v5469 = vadd.f32 0.0, %v5468
    %5470 = vdwg.mxu0
    %5471 = vmatpush.msra.mxu0 %v848
    %5472 = vmatpush.msra.mxu0 %v841
    %5473 = vmatpush.msra.mxu0 %v834
    %5474 = vmatpush.msra.mxu0 %v827
    %5475 = vmatpush.msra.mxu0 %v820
    %5476 = vmatpush.msra.mxu0 %v813
    %5477 = vmatpush.msra.mxu0 %v806
    %5478 = vmatpush.msra.mxu0 %v799
    %5479 = vmatpush.msra.mxu0 %v792
    %5480 = vmatpush.msra.mxu0 %v785
    %5481 = vmatpush.msra.mxu0 %v778
    %5482 = vmatpush.msra.mxu0 %v771
    %5483 = vmatpush.msra.mxu0 %v764
    %5484 = vmatpush.msra.mxu0 %v757
    %5485 = vmatpush.msra.mxu0 %v750
    %5486 = vmatpush.msra.mxu0 %v743
    %5487 = vmatmul.f32.gmra.mxu0 %v5397
    %v5488 = vpop.f32.mrf.mxu0
    %v5489 = vadd.f32 0.0, %v5488
    %5490 = vmatmul.f32.gmra.mxu0 %v5398
    %v5491 = vpop.f32.mrf.mxu0
    %v5492 = vadd.f32 0.0, %v5491
    %5493 = vmatmul.f32.gmra.mxu0 %v5399
    %v5494 = vpop.f32.mrf.mxu0
    %v5495 = vadd.f32 0.0, %v5494
    %5496 = vmatmul.f32.gmra.mxu0 %v5400
    %v5497 = vpop.f32.mrf.mxu0
    %v5498 = vadd.f32 0.0, %v5497
    %5499 = vdwg.mxu0
    %5500 = vmatpush.msra.mxu0 %v849
    %5501 = vmatpush.msra.mxu0 %v842
    %5502 = vmatpush.msra.mxu0 %v835
    %5503 = vmatpush.msra.mxu0 %v828
    %5504 = vmatpush.msra.mxu0 %v821
    %5505 = vmatpush.msra.mxu0 %v814
    %5506 = vmatpush.msra.mxu0 %v807
    %5507 = vmatpush.msra.mxu0 %v800
    %5508 = vmatpush.msra.mxu0 %v793
    %5509 = vmatpush.msra.mxu0 %v786
    %5510 = vmatpush.msra.mxu0 %v779
    %5511 = vmatpush.msra.mxu0 %v772
    %5512 = vmatpush.msra.mxu0 %v765
    %5513 = vmatpush.msra.mxu0 %v758
    %5514 = vmatpush.msra.mxu0 %v751
    %5515 = vmatpush.msra.mxu0 %v744
    %5516 = vmatmul.f32.gmra.mxu0 %v5397
    %v5517 = vpop.f32.mrf.mxu0
    %v5518 = vadd.f32 0.0, %v5517
    %5519 = vmatmul.f32.gmra.mxu0 %v5398
    %v5520 = vpop.f32.mrf.mxu0
    %v5521 = vadd.f32 0.0, %v5520
    %5522 = vmatmul.f32.gmra.mxu0 %v5399
    %v5523 = vpop.f32.mrf.mxu0
    %v5524 = vadd.f32 0.0, %v5523
    %5525 = vmatmul.f32.gmra.mxu0 %v5400
    %v5526 = vpop.f32.mrf.mxu0
    %v5527 = vadd.f32 0.0, %v5526
    %5528 = vdwg.mxu0
    %5529 = vmatpush.msra.mxu0 %v850
    %5530 = vmatpush.msra.mxu0 %v843
    %5531 = vmatpush.msra.mxu0 %v836
    %5532 = vmatpush.msra.mxu0 %v829
    %5533 = vmatpush.msra.mxu0 %v822
    %5534 = vmatpush.msra.mxu0 %v815
    %5535 = vmatpush.msra.mxu0 %v808
    %5536 = vmatpush.msra.mxu0 %v801
    %5537 = vmatpush.msra.mxu0 %v794
    %5538 = vmatpush.msra.mxu0 %v787
    %5539 = vmatpush.msra.mxu0 %v780
    %5540 = vmatpush.msra.mxu0 %v773
    %5541 = vmatpush.msra.mxu0 %v766
    %5542 = vmatpush.msra.mxu0 %v759
    %5543 = vmatpush.msra.mxu0 %v752
    %5544 = vmatpush.msra.mxu0 %v745
    %5545 = vmatmul.f32.gmra.mxu0 %v5397
    %v5546 = vpop.f32.mrf.mxu0
    %v5547 = vadd.f32 0.0, %v5546
    %5548 = vmatmul.f32.gmra.mxu0 %v5398
    %v5549 = vpop.f32.mrf.mxu0
    %v5550 = vadd.f32 0.0, %v5549
    %5551 = vmatmul.f32.gmra.mxu0 %v5399
    %v5552 = vpop.f32.mrf.mxu0
    %v5553 = vadd.f32 0.0, %v5552
    %5554 = vmatmul.f32.gmra.mxu0 %v5400
    %v5555 = vpop.f32.mrf.mxu0
    %v5556 = vadd.f32 0.0, %v5555
    %5557 = vdwg.mxu0
    %5558 = vmatpush.msra.mxu0 %v851
    %5559 = vmatpush.msra.mxu0 %v844
    %5560 = vmatpush.msra.mxu0 %v837
    %5561 = vmatpush.msra.mxu0 %v830
    %5562 = vmatpush.msra.mxu0 %v823
    %5563 = vmatpush.msra.mxu0 %v816
    %5564 = vmatpush.msra.mxu0 %v809
    %5565 = vmatpush.msra.mxu0 %v802
    %5566 = vmatpush.msra.mxu0 %v795
    %5567 = vmatpush.msra.mxu0 %v788
    %5568 = vmatpush.msra.mxu0 %v781
    %5569 = vmatpush.msra.mxu0 %v774
    %5570 = vmatpush.msra.mxu0 %v767
    %5571 = vmatpush.msra.mxu0 %v760
    %5572 = vmatpush.msra.mxu0 %v753
    %5573 = vmatpush.msra.mxu0 %v746
    %5574 = vmatmul.f32.gmra.mxu0 %v5397
    %v5575 = vpop.f32.mrf.mxu0
    %v5576 = vadd.f32 0.0, %v5575
    %5577 = vmatmul.f32.gmra.mxu0 %v5398
    %v5578 = vpop.f32.mrf.mxu0
    %v5579 = vadd.f32 0.0, %v5578
    %5580 = vmatmul.f32.gmra.mxu0 %v5399
    %v5581 = vpop.f32.mrf.mxu0
    %v5582 = vadd.f32 0.0, %v5581
    %5583 = vmatmul.f32.gmra.mxu0 %v5400
    %v5584 = vpop.f32.mrf.mxu0
    %v5585 = vadd.f32 0.0, %v5584
    %5586 = vdwg.mxu0
    %5587 = vmatpush.msra.mxu0 %v852
    %5588 = vmatpush.msra.mxu0 %v845
    %5589 = vmatpush.msra.mxu0 %v838
    %5590 = vmatpush.msra.mxu0 %v831
    %5591 = vmatpush.msra.mxu0 %v824
    %5592 = vmatpush.msra.mxu0 %v817
    %5593 = vmatpush.msra.mxu0 %v810
    %5594 = vmatpush.msra.mxu0 %v803
    %5595 = vmatpush.msra.mxu0 %v796
    %5596 = vmatpush.msra.mxu0 %v789
    %5597 = vmatpush.msra.mxu0 %v782
    %5598 = vmatpush.msra.mxu0 %v775
    %5599 = vmatpush.msra.mxu0 %v768
    %5600 = vmatpush.msra.mxu0 %v761
    %5601 = vmatpush.msra.mxu0 %v754
    %5602 = vmatpush.msra.mxu0 %v747
    %5603 = vmatmul.f32.gmra.mxu0 %v5397
    %v5604 = vpop.f32.mrf.mxu0
    %v5605 = vadd.f32 0.0, %v5604
    %5606 = vmatmul.f32.gmra.mxu0 %v5398
    %v5607 = vpop.f32.mrf.mxu0
    %v5608 = vadd.f32 0.0, %v5607
    %5609 = vmatmul.f32.gmra.mxu0 %v5399
    %v5610 = vpop.f32.mrf.mxu0
    %v5611 = vadd.f32 0.0, %v5610
    %5612 = vmatmul.f32.gmra.mxu0 %v5400
    %v5613 = vpop.f32.mrf.mxu0
    %v5614 = vadd.f32 0.0, %v5613
    %5615 = vdwg.mxu0
    %v5616 = vadd.f32 %v3307, %v5431
    %v5617 = vadd.f32 %v3308, %v5460
    %v5618 = vadd.f32 %v3309, %v5489
    %v5619 = vadd.f32 %v3310, %v5518
    %v5620 = vadd.f32 %v3311, %v5547
    %v5621 = vadd.f32 %v3312, %v5576
    %v5622 = vadd.f32 %v3313, %v5605
    %v5623 = vadd.f32 %v3314, %v5434
    %v5624 = vadd.f32 %v3315, %v5463
    %v5625 = vadd.f32 %v3316, %v5492
    %v5626 = vadd.f32 %v3317, %v5521
    %v5627 = vadd.f32 %v3318, %v5550
    %v5628 = vadd.f32 %v3319, %v5579
    %v5629 = vadd.f32 %v3320, %v5608
    %v5630 = vadd.f32 %v3321, %v5437
    %v5631 = vadd.f32 %v3322, %v5466
    %v5632 = vadd.f32 %v3323, %v5495
    %v5633 = vadd.f32 %v3324, %v5524
    %v5634 = vadd.f32 %v3325, %v5553
    %v5635 = vadd.f32 %v3326, %v5582
    %v5636 = vadd.f32 %v3327, %v5611
    %v5637 = vadd.f32 %v3328, %v5440
    %v5638 = vadd.f32 %v3329, %v5469
    %v5639 = vadd.f32 %v3330, %v5498
    %v5640 = vadd.f32 %v3331, %v5527
    %v5641 = vadd.f32 %v3332, %v5556
    %v5642 = vadd.f32 %v3333, %v5585
    %v5643 = vadd.f32 %v3334, %v5614
    %s5644 = scalar_lea.vmem [#allocation5], 224
    %5645 = vst [vmem:[%s5644] sm:$0xff] %v5616
    %5646 = vst [vmem:[%s5644 + $0x8] sm:$0xff] %v5617
    %5647 = vst [vmem:[%s5644 + $0x10] sm:$0xff] %v5618
    %5648 = vst [vmem:[%s5644 + $0x18] sm:$0xff] %v5619
    %5649 = vst [vmem:[%s5644 + $0x20] sm:$0xff] %v5620
    %5650 = vst [vmem:[%s5644 + $0x28] sm:$0xff] %v5621
    %5651 = vst.msk [vmem:[%s5644 + $0x30] sm:$0xff] %vm913, %v5622
    %5652 = vst [vmem:[%s5644 + $0x38] sm:$0xff] %v5623
    %5653 = vst [vmem:[%s5644 + $0x40] sm:$0xff] %v5624
    %5654 = vst [vmem:[%s5644 + $0x48] sm:$0xff] %v5625
    %5655 = vst [vmem:[%s5644 + $0x50] sm:$0xff] %v5626
    %5656 = vst [vmem:[%s5644 + $0x58] sm:$0xff] %v5627
    %5657 = vst [vmem:[%s5644 + $0x60] sm:$0xff] %v5628
    %5658 = vst.msk [vmem:[%s5644 + $0x68] sm:$0xff] %vm913, %v5629
    %5659 = vst [vmem:[%s5644 + $0x70] sm:$0xff] %v5630
    %5660 = vst [vmem:[%s5644 + $0x78] sm:$0xff] %v5631
    %5661 = vst [vmem:[%s5644 + $0x80] sm:$0xff] %v5632
    %5662 = vst [vmem:[%s5644 + $0x88] sm:$0xff] %v5633
    %5663 = vst [vmem:[%s5644 + $0x90] sm:$0xff] %v5634
    %5664 = vst [vmem:[%s5644 + $0x98] sm:$0xff] %v5635
    %5665 = vst.msk [vmem:[%s5644 + $0xa0] sm:$0xff] %vm913, %v5636
    %5666 = vst [vmem:[%s5644 + $0xa8] sm:$0xff] %v5637
    %5667 = vst [vmem:[%s5644 + $0xb0] sm:$0xff] %v5638
    %5668 = vst [vmem:[%s5644 + $0xb8] sm:$0xff] %v5639
    %5669 = vst [vmem:[%s5644 + $0xc0] sm:$0xff] %v5640
    %5670 = vst [vmem:[%s5644 + $0xc8] sm:$0xff] %v5641
    %5671 = vst [vmem:[%s5644 + $0xd0] sm:$0xff] %v5642
    %5672 = vst.msk [vmem:[%s5644 + $0xd8] sm:$0xff] %vm913, %v5643
    // Predicated region
    $region56: #{tpu_custom_call.1} parent=1 // pred_check
      _
    $region57: #{tpu_custom_call.1} parent=1 // pred_check_branch
      %5674 = sbr.rel (0) target = $region59
    $region58: #{tpu_custom_call.1} parent=1 // pred_region
      %5676 = vsyncadd [#allocation4], 0
      %s5677 = sshll.u32 [#allocation5], 4
      %s5678 = int_to_ptr.vmem [resolvable:$true] %s5677
      %s5679 = sshll.u32 %s9, 4
      %s5680 = int_to_ptr.hbm [resolvable:$true] %s5679
      %5685 = dma.vmem_to_hbm [thread:$0]  %s5678, 7168, %s5680, [#allocation4], 896, 896, 56
    $region59: #{tpu_custom_call.1} parent=1 // pred_fallthru
      _
    // Predicated region
    $region60: #{tpu_custom_call.1} parent=1 // pred_check
      _
    $region61: #{tpu_custom_call.1} parent=1 // pred_check_branch
      %5687 = sbr.rel (0) target = $region63
    $region62: #{tpu_custom_call.1} parent=1 // pred_region
      %5689 = dma.done [#allocation4], 7168
    $region63: #{tpu_custom_call.1} parent=1 // pred_fallthru
      _
    %5690 = vsyncpa [#allocation3], 1
    %5691 = vsyncpa [#allocation4], 1

</llo_original>
